<compile_context>
chip_gen: v5e
topology: v5e:2x2
jax: 0.10.0
libtpu: 0.0.40
codegen_flags: <defaults>
</compile_context>

<pallas_src>
import functools

import jax
import jax.numpy as jnp
from jax.experimental import pallas as pl
from jax.experimental.pallas import tpu as pltpu


# ----------------------------------------------------------------------------
# Model configuration (matches EncoderDecoderGenerator defaults)
# ----------------------------------------------------------------------------
IN_OUT_DIM = 32
NUM_LAYERS = 3
INITIAL_NEURONS = 256
LATENT_DIM = INITIAL_NEURONS // 2 ** (NUM_LAYERS - 1)  # 64
BN_EPS = 1e-5
LANE = 128


def _round_up(x, m):
    return ((x + m - 1) // m) * m


def _pad_dim(d):
    return _round_up(max(d, LANE), LANE)


def _layer_dims():
    """(in_dim, out_dim, is_final) for every Linear layer (matches PyTorch module)."""
    dims = []
    # Encoder: 32->256, 256->128, 128->64, then latent 64->64
    neurons = INITIAL_NEURONS
    dims.append((IN_OUT_DIM, INITIAL_NEURONS, False))
    for _ in range(1, NUM_LAYERS):
        dims.append((neurons, neurons // 2, False))
        neurons //= 2
    dims.append((neurons, LATENT_DIM, False))
    # Decoder: 64->128, 128->256, 256->512, then final 512->32 + Sigmoid
    neurons = LATENT_DIM
    for _ in range(NUM_LAYERS):
        dims.append((neurons, neurons * 2, False))
        neurons *= 2
    dims.append((neurons, IN_OUT_DIM, True))
    return dims


# ----------------------------------------------------------------------------
# Pallas kernel: whole MLP (bf16 matmuls + fused BN affine + ReLU + Sigmoid)
# ----------------------------------------------------------------------------
def _mlp_kernel(n_hidden, *refs):
    """refs = (x, [w, scale, shift] * n_hidden, w_final, b_final, out)."""
    x_ref = refs[0]
    out_ref = refs[-1]
    params = refs[1:-1]

    h = x_ref[...]                                   # f32 [TILE_B, 128]
    idx = 0
    for _ in range(n_hidden):
        w = params[idx][...]                         # bf16 [in_pad, out_pad]
        scale = params[idx + 1][...]                 # f32  [1, out_pad]
        shift = params[idx + 2][...]                 # f32  [1, out_pad]
        idx += 3
        y = jnp.dot(h.astype(jnp.bfloat16), w,
                    preferred_element_type=jnp.float32)
        h = jnp.maximum(y * scale + shift, 0.0)      # fused BN(eval) + ReLU

    w_f = params[idx][...]                           # bf16 [in_pad, out_pad]
    b_f = params[idx + 1][...]                       # f32  [1, out_pad]
    y = jnp.dot(h.astype(jnp.bfloat16), w_f,
                preferred_element_type=jnp.float32) + b_f
    out_ref[...] = jax.nn.sigmoid(y)


def encoder_decoder_forward(x, padded_params, tile_b=None):
    """x: [batch, IN_OUT_DIM] f32.  padded_params: output of pad_params()."""
    batch, d_in = x.shape
    d_in_pad = _pad_dim(d_in)
    d_out_pad = padded_params[-1].shape[1]

    if tile_b is None:
        # >=128 rows fills MXU M tiles and amortizes per-step pipeline overhead;
        # capped at 512 so double-buffered x/out tiles + resident weights stay
        # far under v7x's 64 MiB VMEM (v5e/v6e have even more headroom).
        tile_b = min(512, _round_up(batch, LANE))
    batch_pad = _round_up(batch, tile_b)

    # Pad batch rows and feature lanes with zeros (sliced off at the end).
    x_p = jnp.zeros((batch_pad, d_in_pad), jnp.float32).at[:batch, :d_in].set(x)

    n_hidden = (len(padded_params) - 2) // 3
    kernel = functools.partial(_mlp_kernel, n_hidden)

    in_specs = [pl.BlockSpec((tile_b, d_in_pad), lambda i: (i, 0))]
    for p in padded_params:
        # Constant index_map: block never changes across grid steps, so the
        # weights are DMA'd once and stay VMEM-resident.
        in_specs.append(pl.BlockSpec(tuple(p.shape), lambda i: (0, 0)))
    out_spec = pl.BlockSpec((tile_b, d_out_pad), lambda i: (i, 0))

    dims = _layer_dims()
    flops = 2 * batch_pad * sum(_pad_dim(i) * _pad_dim(o) for i, o, _ in dims)
    param_bytes = sum(int(p.size) * p.dtype.itemsize for p in padded_params)
    bytes_accessed = (batch_pad * d_in_pad * 4 + param_bytes
                      + batch_pad * d_out_pad * 4)
    cost = pl.CostEstimate(flops=int(flops),
                           transcendentals=int(batch_pad * d_out_pad),
                           bytes_accessed=int(bytes_accessed))

    out_padded = pl.pallas_call(
        kernel,
        out_shape=jax.ShapeDtypeStruct((batch_pad, d_out_pad), jnp.float32),
        grid_spec=pltpu.PrefetchScalarGridSpec(
            num_scalar_prefetch=0,
            grid=(batch_pad // tile_b,),
            in_specs=in_specs,
            out_specs=out_spec,
        ),
        compiler_params=pltpu.CompilerParams(
            dimension_semantics=("parallel",),   # v7x: split batch over 2 TCs
            vmem_limit_bytes=32 << 20,
        ),
        cost_estimate=cost,
    )(x_p, *padded_params)

    return out_padded[:batch, :IN_OUT_DIM]


# ----------------------------------------------------------------------------
# Deterministic parameter construction (PyTorch-style uniform inits)
# ----------------------------------------------------------------------------
def build_params(key):
    """Unpadded f32 fused params.

    Hidden layers:  (W [in,out], scale [1,out], shift [1,out])
      scale = gamma / sqrt(running_var + eps)
      shift = (b - running_mean) * scale + beta
    Final layer:    (W [in,out], b [1,out])
    """
    flat = []
    for d_in, d_out, is_final in _layer_dims():
        key, kw, kb, kg, kbe, km, kv = jax.random.split(key, 7)
        bound = 1.0 / jnp.sqrt(jnp.float32(d_in))
        W = jax.random.uniform(kw, (d_in, d_out), jnp.float32, -bound, bound)
        b = jax.random.uniform(kb, (1, d_out), jnp.float32, -bound, bound)
        if is_final:
            flat.extend([W, b])
        else:
            gamma = jax.random.uniform(kg, (1, d_out), jnp.float32, 0.5, 1.5)
            beta = jax.random.uniform(kbe, (1, d_out), jnp.float32, -0.1, 0.1)
            r_mean = jax.random.uniform(km, (1, d_out), jnp.float32, -0.2, 0.2)
            r_var = jax.random.uniform(kv, (1, d_out), jnp.float32, 0.5, 1.5)
            scale = gamma / jnp.sqrt(r_var + BN_EPS)
            shift = (b - r_mean) * scale + beta
            flat.extend([W, scale, shift])
    return flat


def pad_params(flat_params):
    """Zero-pads feature dims to multiples of 128 lanes; weights cast to bf16.

    Padded output channels get scale=0/shift=0 so they are exactly 0 after
    ReLU; padded input rows of the next W are also zero, so the math is exact.
    """
    def pad_w(W):
        d_in, d_out = W.shape
        Wp = jnp.zeros((_pad_dim(d_in), _pad_dim(d_out)), jnp.float32)
        return Wp.at[:d_in, :d_out].set(W).astype(jnp.bfloat16)

    def pad_v(v):
        d_out = v.shape[1]
        return jnp.zeros((1, _pad_dim(d_out)), jnp.float32).at[:, :d_out].set(v)

    n_hidden = (len(flat_params) - 2) // 3
    padded, idx = [], 0
    for _ in range(n_hidden):
        W, s, t = flat_params[idx:idx + 3]
        idx += 3
        padded.extend([pad_w(W), pad_v(s), pad_v(t)])
    W, b = flat_params[idx:idx + 2]
    padded.extend([pad_w(W), pad_v(b)])
    return padded


# ----------------------------------------------------------------------------
# Pure-JAX references for sanity checks
# ----------------------------------------------------------------------------
def reference_forward_f32(x, flat_params):
    """Original f32 eval-mode math on unpadded params."""
    n_hidden = (len(flat_params) - 2) // 3
    h, idx = x, 0
    for _ in range(n_hidden):
        w, s, t = flat_params[idx:idx + 3]
        idx += 3
        h = jnp.maximum(h @ w * s + t, 0.0)
    w, b = flat_params[idx:idx + 2]
    return jax.nn.sigmoid(h @ w + b)


def reference_forward_padded(x, padded_params):
    """Same bf16-matmul / padded math as the kernel, in plain JAX."""
    batch, d_in = x.shape
    h = jnp.zeros((batch, _pad_dim(d_in)), jnp.float32).at[:, :d_in].set(x)
    n_hidden = (len(padded_params) - 2) // 3
    idx = 0
    for _ in range(n_hidden):
        w, s, t = padded_params[idx:idx + 3]
        idx += 3
        y = jnp.dot(h.astype(jnp.bfloat16), w, preferred_element_type=jnp.float32)
        h = jnp.maximum(y * s + t, 0.0)
    w, b = padded_params[idx:idx + 2]
    y = jnp.dot(h.astype(jnp.bfloat16), w, preferred_element_type=jnp.float32) + b
    return jax.nn.sigmoid(y)[:, :IN_OUT_DIM]


if __name__ == "__main__":
    key = jax.random.PRNGKey(0)
    key, kx = jax.random.split(key)

    batch = 8
    x = jax.random.normal(kx, (batch, IN_OUT_DIM), jnp.float32)

    flat_params = build_params(key)          # f32, unpadded (reference)
    padded_params = pad_params(flat_params)  # bf16 weights, 128-lane padded

    out = encoder_decoder_forward(x, padded_params)
    out = jax.block_until_ready(out)
    assert out.shape == (batch, IN_OUT_DIM), out.shape

    # Tight check vs. an exactly-matching bf16/padded JAX reference.
    ref_bf16 = reference_forward_padded(x, padded_params)
    assert jnp.allclose(out, ref_bf16, atol=2e-3, rtol=2e-3), float(
        jnp.max(jnp.abs(out - ref_bf16)))

    # Loose check vs. the original f32 un-padded math (bf16 matmul tolerance).
    ref_f32 = reference_forward_f32(x, flat_params)
    assert jnp.allclose(out, ref_f32, atol=5e-2, rtol=5e-2), float(
        jnp.max(jnp.abs(out - ref_f32)))

    print("KERNEL_OK")
</pallas_src>

<mosaic_0001>
module attributes {stable_mosaic.version = 11 : i64} {
  func.func @_mlp_kernel(%arg0: i32, %arg1: memref<128x128xf32, #tpu.memory_space<vmem>>, %arg2: memref<128x256xbf16, #tpu.memory_space<vmem>>, %arg3: memref<1x256xf32, #tpu.memory_space<vmem>>, %arg4: memref<1x256xf32, #tpu.memory_space<vmem>>, %arg5: memref<256x128xbf16, #tpu.memory_space<vmem>>, %arg6: memref<1x128xf32, #tpu.memory_space<vmem>>, %arg7: memref<1x128xf32, #tpu.memory_space<vmem>>, %arg8: memref<128x128xbf16, #tpu.memory_space<vmem>>, %arg9: memref<1x128xf32, #tpu.memory_space<vmem>>, %arg10: memref<1x128xf32, #tpu.memory_space<vmem>>, %arg11: memref<128x128xbf16, #tpu.memory_space<vmem>>, %arg12: memref<1x128xf32, #tpu.memory_space<vmem>>, %arg13: memref<1x128xf32, #tpu.memory_space<vmem>>, %arg14: memref<128x128xbf16, #tpu.memory_space<vmem>>, %arg15: memref<1x128xf32, #tpu.memory_space<vmem>>, %arg16: memref<1x128xf32, #tpu.memory_space<vmem>>, %arg17: memref<128x256xbf16, #tpu.memory_space<vmem>>, %arg18: memref<1x256xf32, #tpu.memory_space<vmem>>, %arg19: memref<1x256xf32, #tpu.memory_space<vmem>>, %arg20: memref<256x512xbf16, #tpu.memory_space<vmem>>, %arg21: memref<1x512xf32, #tpu.memory_space<vmem>>, %arg22: memref<1x512xf32, #tpu.memory_space<vmem>>, %arg23: memref<512x128xbf16, #tpu.memory_space<vmem>>, %arg24: memref<1x128xf32, #tpu.memory_space<vmem>>, %arg25: memref<128x128xf32, #tpu.memory_space<vmem>>) attributes {dimension_semantics = [#tpu.dimension_semantics<parallel>], iteration_bounds = array<i64: 1>, scalar_prefetch = 0 : i64, scratch_operands = 0 : i64, tpu.core_type = #tpu.core_type<tc>, window_params = [{transform_indices = @transform_0, window_bounds = array<i64: 128, 128>}, {pipeline_mode = #tpu.pipeline_mode<synchronous>, transform_indices = @transform_1, window_bounds = array<i64: 128, 256>}, {pipeline_mode = #tpu.pipeline_mode<synchronous>, transform_indices = @transform_2, window_bounds = array<i64: 1, 256>}, {pipeline_mode = #tpu.pipeline_mode<synchronous>, transform_indices = @transform_3, window_bounds = array<i64: 1, 256>}, {pipeline_mode = #tpu.pipeline_mode<synchronous>, transform_indices = @transform_4, window_bounds = array<i64: 256, 128>}, {pipeline_mode = #tpu.pipeline_mode<synchronous>, transform_indices = @transform_5, window_bounds = array<i64: 1, 128>}, {pipeline_mode = #tpu.pipeline_mode<synchronous>, transform_indices = @transform_6, window_bounds = array<i64: 1, 128>}, {pipeline_mode = #tpu.pipeline_mode<synchronous>, transform_indices = @transform_7, window_bounds = array<i64: 128, 128>}, {pipeline_mode = #tpu.pipeline_mode<synchronous>, transform_indices = @transform_8, window_bounds = array<i64: 1, 128>}, {pipeline_mode = #tpu.pipeline_mode<synchronous>, transform_indices = @transform_9, window_bounds = array<i64: 1, 128>}, {pipeline_mode = #tpu.pipeline_mode<synchronous>, transform_indices = @transform_10, window_bounds = array<i64: 128, 128>}, {pipeline_mode = #tpu.pipeline_mode<synchronous>, transform_indices = @transform_11, window_bounds = array<i64: 1, 128>}, {pipeline_mode = #tpu.pipeline_mode<synchronous>, transform_indices = @transform_12, window_bounds = array<i64: 1, 128>}, {pipeline_mode = #tpu.pipeline_mode<synchronous>, transform_indices = @transform_13, window_bounds = array<i64: 128, 128>}, {pipeline_mode = #tpu.pipeline_mode<synchronous>, transform_indices = @transform_14, window_bounds = array<i64: 1, 128>}, {pipeline_mode = #tpu.pipeline_mode<synchronous>, transform_indices = @transform_15, window_bounds = array<i64: 1, 128>}, {pipeline_mode = #tpu.pipeline_mode<synchronous>, transform_indices = @transform_16, window_bounds = array<i64: 128, 256>}, {pipeline_mode = #tpu.pipeline_mode<synchronous>, transform_indices = @transform_17, window_bounds = array<i64: 1, 256>}, {pipeline_mode = #tpu.pipeline_mode<synchronous>, transform_indices = @transform_18, window_bounds = array<i64: 1, 256>}, {pipeline_mode = #tpu.pipeline_mode<synchronous>, transform_indices = @transform_19, window_bounds = array<i64: 256, 512>}, {pipeline_mode = #tpu.pipeline_mode<synchronous>, transform_indices = @transform_20, window_bounds = array<i64: 1, 512>}, {pipeline_mode = #tpu.pipeline_mode<synchronous>, transform_indices = @transform_21, window_bounds = array<i64: 1, 512>}, {pipeline_mode = #tpu.pipeline_mode<synchronous>, transform_indices = @transform_22, window_bounds = array<i64: 512, 128>}, {pipeline_mode = #tpu.pipeline_mode<synchronous>, transform_indices = @transform_23, window_bounds = array<i64: 1, 128>}, {transform_indices = @transform_24, window_bounds = array<i64: 128, 128>}]} {
    %c0 = arith.constant 0 : index
    %c0_0 = arith.constant 0 : index
    %0 = vector.load %arg1[%c0, %c0_0] : memref<128x128xf32, #tpu.memory_space<vmem>>, vector<128x128xf32>
    %c0_1 = arith.constant 0 : index
    %c0_2 = arith.constant 0 : index
    %1 = vector.load %arg2[%c0_1, %c0_2] : memref<128x256xbf16, #tpu.memory_space<vmem>>, vector<128x256xbf16>
    %c0_3 = arith.constant 0 : index
    %c0_4 = arith.constant 0 : index
    %2 = vector.load %arg3[%c0_3, %c0_4] : memref<1x256xf32, #tpu.memory_space<vmem>>, vector<1x256xf32>
    %c0_5 = arith.constant 0 : index
    %c0_6 = arith.constant 0 : index
    %3 = vector.load %arg4[%c0_5, %c0_6] : memref<1x256xf32, #tpu.memory_space<vmem>>, vector<1x256xf32>
    %4 = arith.truncf %0 : vector<128x128xf32> to vector<128x128xbf16>
    %cst = arith.constant dense<0.000000e+00> : vector<128x256xf32>
    %5 = tpu.matmul %4, %1, %cst {dimension_numbers = #tpu.dot_dimension_numbers<[1], [0], [0], [1], [0, 0, 1, 1], [], []>} : vector<128x128xbf16>, vector<128x256xbf16>, vector<128x256xf32> -> vector<128x256xf32>
    %6 = vector.broadcast %2 : vector<1x256xf32> to vector<128x256xf32>
    %7 = arith.mulf %5, %6 : vector<128x256xf32>
    %8 = vector.broadcast %3 : vector<1x256xf32> to vector<128x256xf32>
    %9 = arith.addf %7, %8 : vector<128x256xf32>
    %cst_7 = arith.constant 0.000000e+00 : f32
    %10 = vector.broadcast %cst_7 : f32 to vector<128x256xf32>
    %11 = arith.maximumf %9, %10 : vector<128x256xf32>
    %c0_8 = arith.constant 0 : index
    %c0_9 = arith.constant 0 : index
    %12 = vector.load %arg5[%c0_8, %c0_9] : memref<256x128xbf16, #tpu.memory_space<vmem>>, vector<256x128xbf16>
    %c0_10 = arith.constant 0 : index
    %c0_11 = arith.constant 0 : index
    %13 = vector.load %arg6[%c0_10, %c0_11] : memref<1x128xf32, #tpu.memory_space<vmem>>, vector<1x128xf32>
    %c0_12 = arith.constant 0 : index
    %c0_13 = arith.constant 0 : index
    %14 = vector.load %arg7[%c0_12, %c0_13] : memref<1x128xf32, #tpu.memory_space<vmem>>, vector<1x128xf32>
    %15 = arith.truncf %11 : vector<128x256xf32> to vector<128x256xbf16>
    %cst_14 = arith.constant dense<0.000000e+00> : vector<128x128xf32>
    %16 = tpu.matmul %15, %12, %cst_14 {dimension_numbers = #tpu.dot_dimension_numbers<[1], [0], [0], [1], [0, 0, 1, 1], [], []>} : vector<128x256xbf16>, vector<256x128xbf16>, vector<128x128xf32> -> vector<128x128xf32>
    %17 = vector.broadcast %13 : vector<1x128xf32> to vector<128x128xf32>
    %18 = arith.mulf %16, %17 : vector<128x128xf32>
    %19 = vector.broadcast %14 : vector<1x128xf32> to vector<128x128xf32>
    %20 = arith.addf %18, %19 : vector<128x128xf32>
    %cst_15 = arith.constant 0.000000e+00 : f32
    %21 = vector.broadcast %cst_15 : f32 to vector<128x128xf32>
    %22 = arith.maximumf %20, %21 : vector<128x128xf32>
    %c0_16 = arith.constant 0 : index
    %c0_17 = arith.constant 0 : index
    %23 = vector.load %arg8[%c0_16, %c0_17] : memref<128x128xbf16, #tpu.memory_space<vmem>>, vector<128x128xbf16>
    %c0_18 = arith.constant 0 : index
    %c0_19 = arith.constant 0 : index
    %24 = vector.load %arg9[%c0_18, %c0_19] : memref<1x128xf32, #tpu.memory_space<vmem>>, vector<1x128xf32>
    %c0_20 = arith.constant 0 : index
    %c0_21 = arith.constant 0 : index
    %25 = vector.load %arg10[%c0_20, %c0_21] : memref<1x128xf32, #tpu.memory_space<vmem>>, vector<1x128xf32>
    %26 = arith.truncf %22 : vector<128x128xf32> to vector<128x128xbf16>
    %cst_22 = arith.constant dense<0.000000e+00> : vector<128x128xf32>
    %27 = tpu.matmul %26, %23, %cst_22 {dimension_numbers = #tpu.dot_dimension_numbers<[1], [0], [0], [1], [0, 0, 1, 1], [], []>} : vector<128x128xbf16>, vector<128x128xbf16>, vector<128x128xf32> -> vector<128x128xf32>
    %28 = vector.broadcast %24 : vector<1x128xf32> to vector<128x128xf32>
    %29 = arith.mulf %27, %28 : vector<128x128xf32>
    %30 = vector.broadcast %25 : vector<1x128xf32> to vector<128x128xf32>
    %31 = arith.addf %29, %30 : vector<128x128xf32>
    %cst_23 = arith.constant 0.000000e+00 : f32
    %32 = vector.broadcast %cst_23 : f32 to vector<128x128xf32>
    %33 = arith.maximumf %31, %32 : vector<128x128xf32>
    %c0_24 = arith.constant 0 : index
    %c0_25 = arith.constant 0 : index
    %34 = vector.load %arg11[%c0_24, %c0_25] : memref<128x128xbf16, #tpu.memory_space<vmem>>, vector<128x128xbf16>
    %c0_26 = arith.constant 0 : index
    %c0_27 = arith.constant 0 : index
    %35 = vector.load %arg12[%c0_26, %c0_27] : memref<1x128xf32, #tpu.memory_space<vmem>>, vector<1x128xf32>
    %c0_28 = arith.constant 0 : index
    %c0_29 = arith.constant 0 : index
    %36 = vector.load %arg13[%c0_28, %c0_29] : memref<1x128xf32, #tpu.memory_space<vmem>>, vector<1x128xf32>
    %37 = arith.truncf %33 : vector<128x128xf32> to vector<128x128xbf16>
    %cst_30 = arith.constant dense<0.000000e+00> : vector<128x128xf32>
    %38 = tpu.matmul %37, %34, %cst_30 {dimension_numbers = #tpu.dot_dimension_numbers<[1], [0], [0], [1], [0, 0, 1, 1], [], []>} : vector<128x128xbf16>, vector<128x128xbf16>, vector<128x128xf32> -> vector<128x128xf32>
    %39 = vector.broadcast %35 : vector<1x128xf32> to vector<128x128xf32>
    %40 = arith.mulf %38, %39 : vector<128x128xf32>
    %41 = vector.broadcast %36 : vector<1x128xf32> to vector<128x128xf32>
    %42 = arith.addf %40, %41 : vector<128x128xf32>
    %cst_31 = arith.constant 0.000000e+00 : f32
    %43 = vector.broadcast %cst_31 : f32 to vector<128x128xf32>
    %44 = arith.maximumf %42, %43 : vector<128x128xf32>
    %c0_32 = arith.constant 0 : index
    %c0_33 = arith.constant 0 : index
    %45 = vector.load %arg14[%c0_32, %c0_33] : memref<128x128xbf16, #tpu.memory_space<vmem>>, vector<128x128xbf16>
    %c0_34 = arith.constant 0 : index
    %c0_35 = arith.constant 0 : index
    %46 = vector.load %arg15[%c0_34, %c0_35] : memref<1x128xf32, #tpu.memory_space<vmem>>, vector<1x128xf32>
    %c0_36 = arith.constant 0 : index
    %c0_37 = arith.constant 0 : index
    %47 = vector.load %arg16[%c0_36, %c0_37] : memref<1x128xf32, #tpu.memory_space<vmem>>, vector<1x128xf32>
    %48 = arith.truncf %44 : vector<128x128xf32> to vector<128x128xbf16>
    %cst_38 = arith.constant dense<0.000000e+00> : vector<128x128xf32>
    %49 = tpu.matmul %48, %45, %cst_38 {dimension_numbers = #tpu.dot_dimension_numbers<[1], [0], [0], [1], [0, 0, 1, 1], [], []>} : vector<128x128xbf16>, vector<128x128xbf16>, vector<128x128xf32> -> vector<128x128xf32>
    %50 = vector.broadcast %46 : vector<1x128xf32> to vector<128x128xf32>
    %51 = arith.mulf %49, %50 : vector<128x128xf32>
    %52 = vector.broadcast %47 : vector<1x128xf32> to vector<128x128xf32>
    %53 = arith.addf %51, %52 : vector<128x128xf32>
    %cst_39 = arith.constant 0.000000e+00 : f32
    %54 = vector.broadcast %cst_39 : f32 to vector<128x128xf32>
    %55 = arith.maximumf %53, %54 : vector<128x128xf32>
    %c0_40 = arith.constant 0 : index
    %c0_41 = arith.constant 0 : index
    %56 = vector.load %arg17[%c0_40, %c0_41] : memref<128x256xbf16, #tpu.memory_space<vmem>>, vector<128x256xbf16>
    %c0_42 = arith.constant 0 : index
    %c0_43 = arith.constant 0 : index
    %57 = vector.load %arg18[%c0_42, %c0_43] : memref<1x256xf32, #tpu.memory_space<vmem>>, vector<1x256xf32>
    %c0_44 = arith.constant 0 : index
    %c0_45 = arith.constant 0 : index
    %58 = vector.load %arg19[%c0_44, %c0_45] : memref<1x256xf32, #tpu.memory_space<vmem>>, vector<1x256xf32>
    %59 = arith.truncf %55 : vector<128x128xf32> to vector<128x128xbf16>
    %cst_46 = arith.constant dense<0.000000e+00> : vector<128x256xf32>
    %60 = tpu.matmul %59, %56, %cst_46 {dimension_numbers = #tpu.dot_dimension_numbers<[1], [0], [0], [1], [0, 0, 1, 1], [], []>} : vector<128x128xbf16>, vector<128x256xbf16>, vector<128x256xf32> -> vector<128x256xf32>
    %61 = vector.broadcast %57 : vector<1x256xf32> to vector<128x256xf32>
    %62 = arith.mulf %60, %61 : vector<128x256xf32>
    %63 = vector.broadcast %58 : vector<1x256xf32> to vector<128x256xf32>
    %64 = arith.addf %62, %63 : vector<128x256xf32>
    %cst_47 = arith.constant 0.000000e+00 : f32
    %65 = vector.broadcast %cst_47 : f32 to vector<128x256xf32>
    %66 = arith.maximumf %64, %65 : vector<128x256xf32>
    %c0_48 = arith.constant 0 : index
    %c0_49 = arith.constant 0 : index
    %67 = vector.load %arg20[%c0_48, %c0_49] : memref<256x512xbf16, #tpu.memory_space<vmem>>, vector<256x512xbf16>
    %c0_50 = arith.constant 0 : index
    %c0_51 = arith.constant 0 : index
    %68 = vector.load %arg21[%c0_50, %c0_51] : memref<1x512xf32, #tpu.memory_space<vmem>>, vector<1x512xf32>
    %c0_52 = arith.constant 0 : index
    %c0_53 = arith.constant 0 : index
    %69 = vector.load %arg22[%c0_52, %c0_53] : memref<1x512xf32, #tpu.memory_space<vmem>>, vector<1x512xf32>
    %70 = arith.truncf %66 : vector<128x256xf32> to vector<128x256xbf16>
    %cst_54 = arith.constant dense<0.000000e+00> : vector<128x512xf32>
    %71 = tpu.matmul %70, %67, %cst_54 {dimension_numbers = #tpu.dot_dimension_numbers<[1], [0], [0], [1], [0, 0, 1, 1], [], []>} : vector<128x256xbf16>, vector<256x512xbf16>, vector<128x512xf32> -> vector<128x512xf32>
    %72 = vector.broadcast %68 : vector<1x512xf32> to vector<128x512xf32>
    %73 = arith.mulf %71, %72 : vector<128x512xf32>
    %74 = vector.broadcast %69 : vector<1x512xf32> to vector<128x512xf32>
    %75 = arith.addf %73, %74 : vector<128x512xf32>
    %cst_55 = arith.constant 0.000000e+00 : f32
    %76 = vector.broadcast %cst_55 : f32 to vector<128x512xf32>
    %77 = arith.maximumf %75, %76 : vector<128x512xf32>
    %c0_56 = arith.constant 0 : index
    %c0_57 = arith.constant 0 : index
    %78 = vector.load %arg23[%c0_56, %c0_57] : memref<512x128xbf16, #tpu.memory_space<vmem>>, vector<512x128xbf16>
    %c0_58 = arith.constant 0 : index
    %c0_59 = arith.constant 0 : index
    %79 = vector.load %arg24[%c0_58, %c0_59] : memref<1x128xf32, #tpu.memory_space<vmem>>, vector<1x128xf32>
    %80 = arith.truncf %77 : vector<128x512xf32> to vector<128x512xbf16>
    %cst_60 = arith.constant dense<0.000000e+00> : vector<128x128xf32>
    %81 = tpu.matmul %80, %78, %cst_60 {dimension_numbers = #tpu.dot_dimension_numbers<[1], [0], [0], [1], [0, 0, 1, 1], [], []>} : vector<128x512xbf16>, vector<512x128xbf16>, vector<128x128xf32> -> vector<128x128xf32>
    %82 = vector.broadcast %79 : vector<1x128xf32> to vector<128x128xf32>
    %83 = arith.addf %81, %82 : vector<128x128xf32>
    %84 = arith.negf %83 : vector<128x128xf32>
    %85 = math.exp %84 : vector<128x128xf32>
    %cst_61 = arith.constant 1.000000e+00 : f32
    %86 = vector.broadcast %cst_61 : f32 to vector<128x128xf32>
    %87 = arith.addf %86, %85 : vector<128x128xf32>
    %88 = arith.divf %86, %87 : vector<128x128xf32>
    %c0_62 = arith.constant 0 : index
    %c0_63 = arith.constant 0 : index
    %89 = vector.load %arg25[%c0_62, %c0_63] : memref<128x128xf32, #tpu.memory_space<vmem>>, vector<128x128xf32>
    tpu.vector_store %arg25[%c0_62, %c0_63], %88 {strides = array<i32>} : memref<128x128xf32, #tpu.memory_space<vmem>>, vector<128x128xf32>,
    return
  }
  func.func @transform_0(%arg0: i32) -> (i32, i32) {
    %c0_i32 = arith.constant 0 : i32
    %c0_i32_0 = arith.constant 0 : i32
    return %arg0, %c0_i32 : i32, i32
  }
  func.func @transform_1(%arg0: i32) -> (i32, i32) {
    %c0_i32 = arith.constant 0 : i32
    %c0_i32_0 = arith.constant 0 : i32
    %c0_i32_1 = arith.constant 0 : i32
    return %c0_i32, %c0_i32_0 : i32, i32
  }
  func.func @transform_2(%arg0: i32) -> (i32, i32) {
    %c0_i32 = arith.constant 0 : i32
    %c0_i32_0 = arith.constant 0 : i32
    %c0_i32_1 = arith.constant 0 : i32
    return %c0_i32, %c0_i32_0 : i32, i32
  }
  func.func @transform_3(%arg0: i32) -> (i32, i32) {
    %c0_i32 = arith.constant 0 : i32
    %c0_i32_0 = arith.constant 0 : i32
    %c0_i32_1 = arith.constant 0 : i32
    return %c0_i32, %c0_i32_0 : i32, i32
  }
  func.func @transform_4(%arg0: i32) -> (i32, i32) {
    %c0_i32 = arith.constant 0 : i32
    %c0_i32_0 = arith.constant 0 : i32
    %c0_i32_1 = arith.constant 0 : i32
    return %c0_i32, %c0_i32_0 : i32, i32
  }
  func.func @transform_5(%arg0: i32) -> (i32, i32) {
    %c0_i32 = arith.constant 0 : i32
    %c0_i32_0 = arith.constant 0 : i32
    %c0_i32_1 = arith.constant 0 : i32
    return %c0_i32, %c0_i32_0 : i32, i32
  }
  func.func @transform_6(%arg0: i32) -> (i32, i32) {
    %c0_i32 = arith.constant 0 : i32
    %c0_i32_0 = arith.constant 0 : i32
    %c0_i32_1 = arith.constant 0 : i32
    return %c0_i32, %c0_i32_0 : i32, i32
  }
  func.func @transform_7(%arg0: i32) -> (i32, i32) {
    %c0_i32 = arith.constant 0 : i32
    %c0_i32_0 = arith.constant 0 : i32
    %c0_i32_1 = arith.constant 0 : i32
    return %c0_i32, %c0_i32_0 : i32, i32
  }
  func.func @transform_8(%arg0: i32) -> (i32, i32) {
    %c0_i32 = arith.constant 0 : i32
    %c0_i32_0 = arith.constant 0 : i32
    %c0_i32_1 = arith.constant 0 : i32
    return %c0_i32, %c0_i32_0 : i32, i32
  }
  func.func @transform_9(%arg0: i32) -> (i32, i32) {
    %c0_i32 = arith.constant 0 : i32
    %c0_i32_0 = arith.constant 0 : i32
    %c0_i32_1 = arith.constant 0 : i32
    return %c0_i32, %c0_i32_0 : i32, i32
  }
  func.func @transform_10(%arg0: i32) -> (i32, i32) {
    %c0_i32 = arith.constant 0 : i32
    %c0_i32_0 = arith.constant 0 : i32
    %c0_i32_1 = arith.constant 0 : i32
    return %c0_i32, %c0_i32_0 : i32, i32
  }
  func.func @transform_11(%arg0: i32) -> (i32, i32) {
    %c0_i32 = arith.constant 0 : i32
    %c0_i32_0 = arith.constant 0 : i32
    %c0_i32_1 = arith.constant 0 : i32
    return %c0_i32, %c0_i32_0 : i32, i32
  }
  func.func @transform_12(%arg0: i32) -> (i32, i32) {
    %c0_i32 = arith.constant 0 : i32
    %c0_i32_0 = arith.constant 0 : i32
    %c0_i32_1 = arith.constant 0 : i32
    return %c0_i32, %c0_i32_0 : i32, i32
  }
  func.func @transform_13(%arg0: i32) -> (i32, i32) {
    %c0_i32 = arith.constant 0 : i32
    %c0_i32_0 = arith.constant 0 : i32
    %c0_i32_1 = arith.constant 0 : i32
    return %c0_i32, %c0_i32_0 : i32, i32
  }
  func.func @transform_14(%arg0: i32) -> (i32, i32) {
    %c0_i32 = arith.constant 0 : i32
    %c0_i32_0 = arith.constant 0 : i32
    %c0_i32_1 = arith.constant 0 : i32
    return %c0_i32, %c0_i32_0 : i32, i32
  }
  func.func @transform_15(%arg0: i32) -> (i32, i32) {
    %c0_i32 = arith.constant 0 : i32
    %c0_i32_0 = arith.constant 0 : i32
    %c0_i32_1 = arith.constant 0 : i32
    return %c0_i32, %c0_i32_0 : i32, i32
  }
  func.func @transform_16(%arg0: i32) -> (i32, i32) {
    %c0_i32 = arith.constant 0 : i32
    %c0_i32_0 = arith.constant 0 : i32
    %c0_i32_1 = arith.constant 0 : i32
    return %c0_i32, %c0_i32_0 : i32, i32
  }
  func.func @transform_17(%arg0: i32) -> (i32, i32) {
    %c0_i32 = arith.constant 0 : i32
    %c0_i32_0 = arith.constant 0 : i32
    %c0_i32_1 = arith.constant 0 : i32
    return %c0_i32, %c0_i32_0 : i32, i32
  }
  func.func @transform_18(%arg0: i32) -> (i32, i32) {
    %c0_i32 = arith.constant 0 : i32
    %c0_i32_0 = arith.constant 0 : i32
    %c0_i32_1 = arith.constant 0 : i32
    return %c0_i32, %c0_i32_0 : i32, i32
  }
  func.func @transform_19(%arg0: i32) -> (i32, i32) {
    %c0_i32 = arith.constant 0 : i32
    %c0_i32_0 = arith.constant 0 : i32
    %c0_i32_1 = arith.constant 0 : i32
    return %c0_i32, %c0_i32_0 : i32, i32
  }
  func.func @transform_20(%arg0: i32) -> (i32, i32) {
    %c0_i32 = arith.constant 0 : i32
    %c0_i32_0 = arith.constant 0 : i32
    %c0_i32_1 = arith.constant 0 : i32
    return %c0_i32, %c0_i32_0 : i32, i32
  }
  func.func @transform_21(%arg0: i32) -> (i32, i32) {
    %c0_i32 = arith.constant 0 : i32
    %c0_i32_0 = arith.constant 0 : i32
    %c0_i32_1 = arith.constant 0 : i32
    return %c0_i32, %c0_i32_0 : i32, i32
  }
  func.func @transform_22(%arg0: i32) -> (i32, i32) {
    %c0_i32 = arith.constant 0 : i32
    %c0_i32_0 = arith.constant 0 : i32
    %c0_i32_1 = arith.constant 0 : i32
    return %c0_i32, %c0_i32_0 : i32, i32
  }
  func.func @transform_23(%arg0: i32) -> (i32, i32) {
    %c0_i32 = arith.constant 0 : i32
    %c0_i32_0 = arith.constant 0 : i32
    %c0_i32_1 = arith.constant 0 : i32
    return %c0_i32, %c0_i32_0 : i32, i32
  }
  func.func @transform_24(%arg0: i32) -> (i32, i32) {
    %c0_i32 = arith.constant 0 : i32
    %c0_i32_0 = arith.constant 0 : i32
    return %arg0, %c0_i32 : i32, i32
  }
}

</mosaic_0001>

<llo_original>
// kernel: tpu_custom_call.1
$region0: #{tpu_custom_call.1}
  #allocation0 [shape = 'u32[]', space=smem, size = 0x4, offset = 0x4, fixed_abs, tag = 'smem constant byte address 0x4 - core index']
  #allocation1 [shape = 'u32[72,128]{1,0:T(1,128)}', space=vmem, size = 0x9000, scoped, tag = 'internal scratch']
  %s0 = inlined_call_operand.hbm [shape: f32[128,128], index: 0, kind: input, shape index: {}]
  %s1 = inlined_call_operand.hbm [shape: bf16[128,256], index: 1, kind: input, shape index: {}]
  %s2 = inlined_call_operand.hbm [shape: f32[1,256], index: 2, kind: input, shape index: {}]
  %s3 = inlined_call_operand.hbm [shape: f32[1,256], index: 3, kind: input, shape index: {}]
  %s4 = inlined_call_operand.hbm [shape: bf16[256,128], index: 4, kind: input, shape index: {}]
  %s5 = inlined_call_operand.hbm [shape: f32[1,128], index: 5, kind: input, shape index: {}]
  %s6 = inlined_call_operand.hbm [shape: f32[1,128], index: 6, kind: input, shape index: {}]
  %s7 = inlined_call_operand.hbm [shape: bf16[128,128], index: 7, kind: input, shape index: {}]
  %s8 = inlined_call_operand.hbm [shape: f32[1,128], index: 8, kind: input, shape index: {}]
  %s9 = inlined_call_operand.hbm [shape: f32[1,128], index: 9, kind: input, shape index: {}]
  %s10 = inlined_call_operand.hbm [shape: bf16[128,128], index: 10, kind: input, shape index: {}]
  %s11 = inlined_call_operand.hbm [shape: f32[1,128], index: 11, kind: input, shape index: {}]
  %s12 = inlined_call_operand.hbm [shape: f32[1,128], index: 12, kind: input, shape index: {}]
  %s13 = inlined_call_operand.hbm [shape: bf16[128,128], index: 13, kind: input, shape index: {}]
  %s14 = inlined_call_operand.vmem [shape: f32[1,128], index: 14, kind: input, shape index: {}]
  %s15 = inlined_call_operand.vmem [shape: f32[1,128], index: 15, kind: input, shape index: {}]
  %s16 = inlined_call_operand.hbm [shape: bf16[128,256], index: 16, kind: input, shape index: {}]
  %s17 = inlined_call_operand.vmem [shape: f32[1,256], index: 17, kind: input, shape index: {}]
  %s18 = inlined_call_operand.vmem [shape: f32[1,256], index: 18, kind: input, shape index: {}]
  %s19 = inlined_call_operand.hbm [shape: bf16[256,512], index: 19, kind: input, shape index: {}]
  %s20 = inlined_call_operand.vmem [shape: f32[1,512], index: 20, kind: input, shape index: {}]
  %s21 = inlined_call_operand.vmem [shape: f32[1,512], index: 21, kind: input, shape index: {}]
  %s22 = inlined_call_operand.hbm [shape: bf16[512,128], index: 22, kind: input, shape index: {}]
  %s23 = inlined_call_operand.vmem [shape: f32[1,128], index: 23, kind: input, shape index: {}]
  %s24 = inlined_call_operand.hbm [shape: f32[128,128], index: 24, kind: output, shape index: {}]
  %s25 = sld [smem:[#allocation0]]
  $region174: #{tpu_custom_call.1} parent=0
    _
  %s27 = ssub.s32 1, %s25
  %s28 = scalar_select 0, %s27, %s25
  $region1: #{tpu_custom_call.1} parent=0
    #allocation2 [shape = 'u8[65536]{0}', space=vmem, size = 0x10000, scoped, tag = 'input window, operand 0, single buffered']
    #allocation3 [shape = 's32[1]{0}', space=sflag, size = 0x4, scoped, tag = 'scoped memory for tpu_custom_call.1']
    #allocation4 [shape = 's32[1]{0}', space=sflag, size = 0x4, scoped, tag = 'scoped memory for tpu_custom_call.1']
    #allocation5 [shape = 'u8[65536]{0}', space=vmem, size = 0x10000, scoped, tag = 'input window, operand 1, single buffered']
    #allocation6 [shape = 's32[1]{0}', space=sflag, size = 0x4, scoped, tag = 'scoped memory for tpu_custom_call.1']
    #allocation7 [shape = 'u8[1024]{0}', space=vmem, size = 0x400, scoped, tag = 'input window, operand 2, single buffered']
    #allocation8 [shape = 'u8[1024]{0}', space=vmem, size = 0x400, scoped, tag = 'input window, operand 3, single buffered']
    #allocation9 [shape = 's32[1]{0}', space=sflag, size = 0x4, scoped, tag = 'scoped memory for tpu_custom_call.1']
    #allocation10 [shape = 'u8[65536]{0}', space=vmem, size = 0x10000, scoped, tag = 'input window, operand 4, single buffered']
    #allocation11 [shape = 'u8[512]{0}', space=vmem, size = 0x400, scoped, tag = 'input window, operand 5, single buffered']
    #allocation12 [shape = 's32[1]{0}', space=sflag, size = 0x4, scoped, tag = 'scoped memory for tpu_custom_call.1']
    #allocation13 [shape = 'u8[512]{0}', space=vmem, size = 0x400, scoped, tag = 'input window, operand 6, single buffered']
    #allocation14 [shape = 'u8[32768]{0}', space=vmem, size = 0x8000, scoped, tag = 'input window, operand 7, single buffered']
    #allocation15 [shape = 's32[1]{0}', space=sflag, size = 0x4, scoped, tag = 'scoped memory for tpu_custom_call.1']
    #allocation16 [shape = 'u8[512]{0}', space=vmem, size = 0x400, scoped, tag = 'input window, operand 8, single buffered']
    #allocation17 [shape = 'u8[512]{0}', space=vmem, size = 0x400, scoped, tag = 'input window, operand 9, single buffered']
    #allocation18 [shape = 's32[1]{0}', space=sflag, size = 0x4, scoped, tag = 'scoped memory for tpu_custom_call.1']
    #allocation19 [shape = 'u8[32768]{0}', space=vmem, size = 0x8000, scoped, tag = 'input window, operand 10, single buffered']
    #allocation20 [shape = 'u8[512]{0}', space=vmem, size = 0x400, scoped, tag = 'input window, operand 11, single buffered']
    #allocation21 [shape = 's32[1]{0}', space=sflag, size = 0x4, scoped, tag = 'scoped memory for tpu_custom_call.1']
    #allocation22 [shape = 'u8[512]{0}', space=vmem, size = 0x400, scoped, tag = 'input window, operand 12, single buffered']
    #allocation23 [shape = 'u8[32768]{0}', space=vmem, size = 0x8000, scoped, tag = 'input window, operand 13, single buffered']
    #allocation24 [shape = 's32[1]{0}', space=sflag, size = 0x4, scoped, tag = 'scoped memory for tpu_custom_call.1']
    #allocation25 [shape = 'u8[65536]{0}', space=vmem, size = 0x10000, scoped, tag = 'input window, operand 16, single buffered']
    #allocation26 [shape = 'u8[262144]{0}', space=vmem, size = 0x40000, scoped, tag = 'input window, operand 19, single buffered']
    #allocation27 [shape = 's32[1]{0}', space=sflag, size = 0x4, scoped, tag = 'scoped memory for tpu_custom_call.1']
    #allocation28 [shape = 'u8[131072]{0}', space=vmem, size = 0x20000, scoped, tag = 'input window, operand 22, single buffered']
    #allocation29 [shape = 'u8[65536]{0}', space=vmem, size = 0x10000, scoped, tag = 'output window, operand 0, single buffered']
    %29 = vsyncpa [#allocation3], 0
    %30 = vsyncpa [#allocation6], 0
    %31 = vsyncpa [#allocation9], 0
    %32 = vsyncpa [#allocation12], 0
    %33 = vsyncpa [#allocation15], 0
    %34 = vsyncpa [#allocation18], 0
    %35 = vsyncpa [#allocation21], 0
    %36 = vsyncpa [#allocation24], 0
    %37 = vsyncpa [#allocation27], 0
    %38 = vsyncpa [#allocation4], 0
    // Predicated region
    $region2: #{tpu_custom_call.1} parent=1 // pred_check
      _
    $region3: #{tpu_custom_call.1} parent=1 // pred_check_branch
      %40 = sbr.rel (0) target = $region5
    $region4: #{tpu_custom_call.1} parent=1 // pred_region
      %42 = vsyncadd [#allocation3], 0
      %s43 = sshll.u32 %s0, 4
      %s44 = int_to_ptr.hbm [resolvable:$true] %s43
      %s45 = sshll.u32 [#allocation2], 4
      %s46 = int_to_ptr.vmem [resolvable:$true] %s45
      %51 = dma.hbm_to_vmem [thread:$0]  %s44, 2048, %s46, [#allocation3], 128, 128, 8
    $region5: #{tpu_custom_call.1} parent=1 // pred_fallthru
      _
    // Predicated region
    $region6: #{tpu_custom_call.1} parent=1 // pred_check
      _
    $region7: #{tpu_custom_call.1} parent=1 // pred_check_branch
      %53 = sbr.rel (0) target = $region9
    $region8: #{tpu_custom_call.1} parent=1 // pred_region
      %55 = vsyncadd [#allocation6], 0
      %s56 = sshll.u32 %s1, 4
      %s57 = int_to_ptr.hbm [resolvable:$true] %s56
      %s58 = sshll.u32 [#allocation5], 4
      %s59 = int_to_ptr.vmem [resolvable:$true] %s58
      %64 = dma.hbm_to_vmem [thread:$0]  %s57, 2048, %s59, [#allocation6], 128, 128, 8
    $region9: #{tpu_custom_call.1} parent=1 // pred_fallthru
      _
    // Predicated region
    $region10: #{tpu_custom_call.1} parent=1 // pred_check
      _
    $region11: #{tpu_custom_call.1} parent=1 // pred_check_branch
      %66 = sbr.rel (0) target = $region13
    $region12: #{tpu_custom_call.1} parent=1 // pred_region
      %68 = vsyncadd [#allocation6], 0
      %s70 = sshll.u32 %s2, 4
      %s71 = int_to_ptr.hbm [resolvable:$true] %s70
      %s72 = sshll.u32 [#allocation7], 4
      %s73 = int_to_ptr.vmem [resolvable:$true] %s72
      %75 = dma.hbm_to_vmem [thread:$0]  %s71, 32, %s73, [#allocation6]
    $region13: #{tpu_custom_call.1} parent=1 // pred_fallthru
      _
    // Predicated region
    $region14: #{tpu_custom_call.1} parent=1 // pred_check
      _
    $region15: #{tpu_custom_call.1} parent=1 // pred_check_branch
      %77 = sbr.rel (0) target = $region17
    $region16: #{tpu_custom_call.1} parent=1 // pred_region
      %79 = vsyncadd [#allocation9], 0
      %s81 = sshll.u32 %s3, 4
      %s82 = int_to_ptr.hbm [resolvable:$true] %s81
      %s83 = sshll.u32 [#allocation8], 4
      %s84 = int_to_ptr.vmem [resolvable:$true] %s83
      %86 = dma.hbm_to_vmem [thread:$0]  %s82, 32, %s84, [#allocation9]
    $region17: #{tpu_custom_call.1} parent=1 // pred_fallthru
      _
    // Predicated region
    $region18: #{tpu_custom_call.1} parent=1 // pred_check
      _
    $region19: #{tpu_custom_call.1} parent=1 // pred_check_branch
      %88 = sbr.rel (0) target = $region21
    $region20: #{tpu_custom_call.1} parent=1 // pred_region
      %90 = vsyncadd [#allocation9], 0
      %s91 = sshll.u32 %s4, 4
      %s92 = int_to_ptr.hbm [resolvable:$true] %s91
      %s93 = sshll.u32 [#allocation10], 4
      %s94 = int_to_ptr.vmem [resolvable:$true] %s93
      %99 = dma.hbm_to_vmem [thread:$0]  %s92, 2048, %s94, [#allocation9], 64, 64, 4
    $region21: #{tpu_custom_call.1} parent=1 // pred_fallthru
      _
    // Predicated region
    $region22: #{tpu_custom_call.1} parent=1 // pred_check
      _
    $region23: #{tpu_custom_call.1} parent=1 // pred_check_branch
      %101 = sbr.rel (0) target = $region25
    $region24: #{tpu_custom_call.1} parent=1 // pred_region
      %103 = vsyncadd [#allocation12], 0
      %s105 = sshll.u32 %s5, 4
      %s106 = int_to_ptr.hbm [resolvable:$true] %s105
      %s107 = sshll.u32 [#allocation11], 4
      %s108 = int_to_ptr.vmem [resolvable:$true] %s107
      %110 = dma.hbm_to_vmem [thread:$0]  %s106, 16, %s108, [#allocation12]
    $region25: #{tpu_custom_call.1} parent=1 // pred_fallthru
      _
    // Predicated region
    $region26: #{tpu_custom_call.1} parent=1 // pred_check
      _
    $region27: #{tpu_custom_call.1} parent=1 // pred_check_branch
      %112 = sbr.rel (0) target = $region29
    $region28: #{tpu_custom_call.1} parent=1 // pred_region
      %114 = vsyncadd [#allocation12], 0
      %s116 = sshll.u32 %s6, 4
      %s117 = int_to_ptr.hbm [resolvable:$true] %s116
      %s118 = sshll.u32 [#allocation13], 4
      %s119 = int_to_ptr.vmem [resolvable:$true] %s118
      %121 = dma.hbm_to_vmem [thread:$0]  %s117, 16, %s119, [#allocation12]
    $region29: #{tpu_custom_call.1} parent=1 // pred_fallthru
      _
    // Predicated region
    $region30: #{tpu_custom_call.1} parent=1 // pred_check
      _
    $region31: #{tpu_custom_call.1} parent=1 // pred_check_branch
      %123 = sbr.rel (0) target = $region33
    $region32: #{tpu_custom_call.1} parent=1 // pred_region
      %125 = vsyncadd [#allocation15], 0
      %s126 = sshll.u32 %s7, 4
      %s127 = int_to_ptr.hbm [resolvable:$true] %s126
      %s128 = sshll.u32 [#allocation14], 4
      %s129 = int_to_ptr.vmem [resolvable:$true] %s128
      %134 = dma.hbm_to_vmem [thread:$0]  %s127, 1024, %s129, [#allocation15], 64, 64, 4
    $region33: #{tpu_custom_call.1} parent=1 // pred_fallthru
      _
    // Predicated region
    $region34: #{tpu_custom_call.1} parent=1 // pred_check
      _
    $region35: #{tpu_custom_call.1} parent=1 // pred_check_branch
      %136 = sbr.rel (0) target = $region37
    $region36: #{tpu_custom_call.1} parent=1 // pred_region
      %138 = vsyncadd [#allocation15], 0
      %s140 = sshll.u32 %s8, 4
      %s141 = int_to_ptr.hbm [resolvable:$true] %s140
      %s142 = sshll.u32 [#allocation16], 4
      %s143 = int_to_ptr.vmem [resolvable:$true] %s142
      %145 = dma.hbm_to_vmem [thread:$0]  %s141, 16, %s143, [#allocation15]
    $region37: #{tpu_custom_call.1} parent=1 // pred_fallthru
      _
    // Predicated region
    $region38: #{tpu_custom_call.1} parent=1 // pred_check
      _
    $region39: #{tpu_custom_call.1} parent=1 // pred_check_branch
      %147 = sbr.rel (0) target = $region41
    $region40: #{tpu_custom_call.1} parent=1 // pred_region
      %149 = vsyncadd [#allocation18], 0
      %s151 = sshll.u32 %s9, 4
      %s152 = int_to_ptr.hbm [resolvable:$true] %s151
      %s153 = sshll.u32 [#allocation17], 4
      %s154 = int_to_ptr.vmem [resolvable:$true] %s153
      %156 = dma.hbm_to_vmem [thread:$0]  %s152, 16, %s154, [#allocation18]
    $region41: #{tpu_custom_call.1} parent=1 // pred_fallthru
      _
    // Predicated region
    $region42: #{tpu_custom_call.1} parent=1 // pred_check
      _
    $region43: #{tpu_custom_call.1} parent=1 // pred_check_branch
      %158 = sbr.rel (0) target = $region45
    $region44: #{tpu_custom_call.1} parent=1 // pred_region
      %160 = vsyncadd [#allocation18], 0
      %s161 = sshll.u32 %s10, 4
      %s162 = int_to_ptr.hbm [resolvable:$true] %s161
      %s163 = sshll.u32 [#allocation19], 4
      %s164 = int_to_ptr.vmem [resolvable:$true] %s163
      %169 = dma.hbm_to_vmem [thread:$0]  %s162, 1024, %s164, [#allocation18], 64, 64, 4
    $region45: #{tpu_custom_call.1} parent=1 // pred_fallthru
      _
    // Predicated region
    $region46: #{tpu_custom_call.1} parent=1 // pred_check
      _
    $region47: #{tpu_custom_call.1} parent=1 // pred_check_branch
      %171 = sbr.rel (0) target = $region49
    $region48: #{tpu_custom_call.1} parent=1 // pred_region
      %173 = vsyncadd [#allocation21], 0
      %s175 = sshll.u32 %s11, 4
      %s176 = int_to_ptr.hbm [resolvable:$true] %s175
      %s177 = sshll.u32 [#allocation20], 4
      %s178 = int_to_ptr.vmem [resolvable:$true] %s177
      %180 = dma.hbm_to_vmem [thread:$0]  %s176, 16, %s178, [#allocation21]
    $region49: #{tpu_custom_call.1} parent=1 // pred_fallthru
      _
    // Predicated region
    $region50: #{tpu_custom_call.1} parent=1 // pred_check
      _
    $region51: #{tpu_custom_call.1} parent=1 // pred_check_branch
      %182 = sbr.rel (0) target = $region53
    $region52: #{tpu_custom_call.1} parent=1 // pred_region
      %184 = vsyncadd [#allocation21], 0
      %s186 = sshll.u32 %s12, 4
      %s187 = int_to_ptr.hbm [resolvable:$true] %s186
      %s188 = sshll.u32 [#allocation22], 4
      %s189 = int_to_ptr.vmem [resolvable:$true] %s188
      %191 = dma.hbm_to_vmem [thread:$0]  %s187, 16, %s189, [#allocation21]
    $region53: #{tpu_custom_call.1} parent=1 // pred_fallthru
      _
    // Predicated region
    $region54: #{tpu_custom_call.1} parent=1 // pred_check
      _
    $region55: #{tpu_custom_call.1} parent=1 // pred_check_branch
      %193 = sbr.rel (0) target = $region57
    $region56: #{tpu_custom_call.1} parent=1 // pred_region
      %195 = vsyncadd [#allocation24], 0
      %s196 = sshll.u32 %s13, 4
      %s197 = int_to_ptr.hbm [resolvable:$true] %s196
      %s198 = sshll.u32 [#allocation23], 4
      %s199 = int_to_ptr.vmem [resolvable:$true] %s198
      %204 = dma.hbm_to_vmem [thread:$0]  %s197, 1024, %s199, [#allocation24], 64, 64, 4
    $region57: #{tpu_custom_call.1} parent=1 // pred_fallthru
      _
    // Predicated region
    $region58: #{tpu_custom_call.1} parent=1 // pred_check
      _
    $region59: #{tpu_custom_call.1} parent=1 // pred_check_branch
      %206 = sbr.rel (0) target = $region61
    $region60: #{tpu_custom_call.1} parent=1 // pred_region
      _
    $region61: #{tpu_custom_call.1} parent=1 // pred_fallthru
      _
    // Predicated region
    $region62: #{tpu_custom_call.1} parent=1 // pred_check
      _
    $region63: #{tpu_custom_call.1} parent=1 // pred_check_branch
      %208 = sbr.rel (0) target = $region65
    $region64: #{tpu_custom_call.1} parent=1 // pred_region
      _
    $region65: #{tpu_custom_call.1} parent=1 // pred_fallthru
      _
    // Predicated region
    $region66: #{tpu_custom_call.1} parent=1 // pred_check
      _
    $region67: #{tpu_custom_call.1} parent=1 // pred_check_branch
      %210 = sbr.rel (0) target = $region69
    $region68: #{tpu_custom_call.1} parent=1 // pred_region
      %212 = vsyncadd [#allocation24], 0
      %s213 = sshll.u32 %s16, 4
      %s214 = int_to_ptr.hbm [resolvable:$true] %s213
      %s215 = sshll.u32 [#allocation25], 4
      %s216 = int_to_ptr.vmem [resolvable:$true] %s215
      %221 = dma.hbm_to_vmem [thread:$0]  %s214, 2048, %s216, [#allocation24], 128, 128, 8
    $region69: #{tpu_custom_call.1} parent=1 // pred_fallthru
      _
    // Predicated region
    $region70: #{tpu_custom_call.1} parent=1 // pred_check
      _
    $region71: #{tpu_custom_call.1} parent=1 // pred_check_branch
      %223 = sbr.rel (0) target = $region73
    $region72: #{tpu_custom_call.1} parent=1 // pred_region
      _
    $region73: #{tpu_custom_call.1} parent=1 // pred_fallthru
      _
    // Predicated region
    $region74: #{tpu_custom_call.1} parent=1 // pred_check
      _
    $region75: #{tpu_custom_call.1} parent=1 // pred_check_branch
      %225 = sbr.rel (0) target = $region77
    $region76: #{tpu_custom_call.1} parent=1 // pred_region
      _
    $region77: #{tpu_custom_call.1} parent=1 // pred_fallthru
      _
    // Predicated region
    $region78: #{tpu_custom_call.1} parent=1 // pred_check
      _
    $region79: #{tpu_custom_call.1} parent=1 // pred_check_branch
      %227 = sbr.rel (0) target = $region81
    $region80: #{tpu_custom_call.1} parent=1 // pred_region
      %229 = vsyncadd [#allocation27], 0
      %s230 = sshll.u32 %s19, 4
      %s231 = int_to_ptr.hbm [resolvable:$true] %s230
      %s232 = sshll.u32 [#allocation26], 4
      %s233 = int_to_ptr.vmem [resolvable:$true] %s232
      %238 = dma.hbm_to_vmem [thread:$0]  %s231, 8192, %s233, [#allocation27], 256, 256, 16
    $region81: #{tpu_custom_call.1} parent=1 // pred_fallthru
      _
    // Predicated region
    $region82: #{tpu_custom_call.1} parent=1 // pred_check
      _
    $region83: #{tpu_custom_call.1} parent=1 // pred_check_branch
      %240 = sbr.rel (0) target = $region85
    $region84: #{tpu_custom_call.1} parent=1 // pred_region
      _
    $region85: #{tpu_custom_call.1} parent=1 // pred_fallthru
      _
    // Predicated region
    $region86: #{tpu_custom_call.1} parent=1 // pred_check
      _
    $region87: #{tpu_custom_call.1} parent=1 // pred_check_branch
      %242 = sbr.rel (0) target = $region89
    $region88: #{tpu_custom_call.1} parent=1 // pred_region
      _
    $region89: #{tpu_custom_call.1} parent=1 // pred_fallthru
      _
    // Predicated region
    $region90: #{tpu_custom_call.1} parent=1 // pred_check
      _
    $region91: #{tpu_custom_call.1} parent=1 // pred_check_branch
      %244 = sbr.rel (0) target = $region93
    $region92: #{tpu_custom_call.1} parent=1 // pred_region
      %246 = vsyncadd [#allocation27], 0
      %s247 = sshll.u32 %s22, 4
      %s248 = int_to_ptr.hbm [resolvable:$true] %s247
      %s249 = sshll.u32 [#allocation28], 4
      %s250 = int_to_ptr.vmem [resolvable:$true] %s249
      %255 = dma.hbm_to_vmem [thread:$0]  %s248, 4096, %s250, [#allocation27], 64, 64, 4
    $region93: #{tpu_custom_call.1} parent=1 // pred_fallthru
      _
    // Predicated region
    $region94: #{tpu_custom_call.1} parent=1 // pred_check
      _
    $region95: #{tpu_custom_call.1} parent=1 // pred_check_branch
      %257 = sbr.rel (0) target = $region97
    $region96: #{tpu_custom_call.1} parent=1 // pred_region
      _
    $region97: #{tpu_custom_call.1} parent=1 // pred_fallthru
      _
    // Predicated region
    $region98: #{tpu_custom_call.1} parent=1 // pred_check
      _
    $region99: #{tpu_custom_call.1} parent=1 // pred_check_branch
      %259 = sbr.rel (0) target = $region101
    $region100: #{tpu_custom_call.1} parent=1 // pred_region
      %261 = dma.done [#allocation3], 2048
    $region101: #{tpu_custom_call.1} parent=1 // pred_fallthru
      _
    // Predicated region
    $region102: #{tpu_custom_call.1} parent=1 // pred_check
      _
    $region103: #{tpu_custom_call.1} parent=1 // pred_check_branch
      %263 = sbr.rel (0) target = $region105
    $region104: #{tpu_custom_call.1} parent=1 // pred_region
      %265 = dma.done [#allocation6], 2048
    $region105: #{tpu_custom_call.1} parent=1 // pred_fallthru
      _
    // Predicated region
    $region106: #{tpu_custom_call.1} parent=1 // pred_check
      _
    $region107: #{tpu_custom_call.1} parent=1 // pred_check_branch
      %267 = sbr.rel (0) target = $region109
    $region108: #{tpu_custom_call.1} parent=1 // pred_region
      %269 = dma.done [#allocation6], 32
    $region109: #{tpu_custom_call.1} parent=1 // pred_fallthru
      _
    // Predicated region
    $region110: #{tpu_custom_call.1} parent=1 // pred_check
      _
    $region111: #{tpu_custom_call.1} parent=1 // pred_check_branch
      %271 = sbr.rel (0) target = $region113
    $region112: #{tpu_custom_call.1} parent=1 // pred_region
      %273 = dma.done [#allocation9], 32
    $region113: #{tpu_custom_call.1} parent=1 // pred_fallthru
      _
    // Predicated region
    $region114: #{tpu_custom_call.1} parent=1 // pred_check
      _
    $region115: #{tpu_custom_call.1} parent=1 // pred_check_branch
      %275 = sbr.rel (0) target = $region117
    $region116: #{tpu_custom_call.1} parent=1 // pred_region
      %277 = dma.done [#allocation9], 2048
    $region117: #{tpu_custom_call.1} parent=1 // pred_fallthru
      _
    // Predicated region
    $region118: #{tpu_custom_call.1} parent=1 // pred_check
      _
    $region119: #{tpu_custom_call.1} parent=1 // pred_check_branch
      %279 = sbr.rel (0) target = $region121
    $region120: #{tpu_custom_call.1} parent=1 // pred_region
      %281 = dma.done [#allocation12], 16
    $region121: #{tpu_custom_call.1} parent=1 // pred_fallthru
      _
    // Predicated region
    $region122: #{tpu_custom_call.1} parent=1 // pred_check
      _
    $region123: #{tpu_custom_call.1} parent=1 // pred_check_branch
      %283 = sbr.rel (0) target = $region125
    $region124: #{tpu_custom_call.1} parent=1 // pred_region
      %285 = dma.done [#allocation12], 16
    $region125: #{tpu_custom_call.1} parent=1 // pred_fallthru
      _
    // Predicated region
    $region126: #{tpu_custom_call.1} parent=1 // pred_check
      _
    $region127: #{tpu_custom_call.1} parent=1 // pred_check_branch
      %287 = sbr.rel (0) target = $region129
    $region128: #{tpu_custom_call.1} parent=1 // pred_region
      %289 = dma.done [#allocation15], 1024
    $region129: #{tpu_custom_call.1} parent=1 // pred_fallthru
      _
    // Predicated region
    $region130: #{tpu_custom_call.1} parent=1 // pred_check
      _
    $region131: #{tpu_custom_call.1} parent=1 // pred_check_branch
      %291 = sbr.rel (0) target = $region133
    $region132: #{tpu_custom_call.1} parent=1 // pred_region
      %293 = dma.done [#allocation15], 16
    $region133: #{tpu_custom_call.1} parent=1 // pred_fallthru
      _
    // Predicated region
    $region134: #{tpu_custom_call.1} parent=1 // pred_check
      _
    $region135: #{tpu_custom_call.1} parent=1 // pred_check_branch
      %295 = sbr.rel (0) target = $region137
    $region136: #{tpu_custom_call.1} parent=1 // pred_region
      %297 = dma.done [#allocation18], 16
    $region137: #{tpu_custom_call.1} parent=1 // pred_fallthru
      _
    // Predicated region
    $region138: #{tpu_custom_call.1} parent=1 // pred_check
      _
    $region139: #{tpu_custom_call.1} parent=1 // pred_check_branch
      %299 = sbr.rel (0) target = $region141
    $region140: #{tpu_custom_call.1} parent=1 // pred_region
      %301 = dma.done [#allocation18], 1024
    $region141: #{tpu_custom_call.1} parent=1 // pred_fallthru
      _
    // Predicated region
    $region142: #{tpu_custom_call.1} parent=1 // pred_check
      _
    $region143: #{tpu_custom_call.1} parent=1 // pred_check_branch
      %303 = sbr.rel (0) target = $region145
    $region144: #{tpu_custom_call.1} parent=1 // pred_region
      %305 = dma.done [#allocation21], 16
    $region145: #{tpu_custom_call.1} parent=1 // pred_fallthru
      _
    // Predicated region
    $region146: #{tpu_custom_call.1} parent=1 // pred_check
      _
    $region147: #{tpu_custom_call.1} parent=1 // pred_check_branch
      %307 = sbr.rel (0) target = $region149
    $region148: #{tpu_custom_call.1} parent=1 // pred_region
      %309 = dma.done [#allocation21], 16
    $region149: #{tpu_custom_call.1} parent=1 // pred_fallthru
      _
    // Predicated region
    $region150: #{tpu_custom_call.1} parent=1 // pred_check
      _
    $region151: #{tpu_custom_call.1} parent=1 // pred_check_branch
      %311 = sbr.rel (0) target = $region153
    $region152: #{tpu_custom_call.1} parent=1 // pred_region
      %313 = dma.done [#allocation24], 1024
    $region153: #{tpu_custom_call.1} parent=1 // pred_fallthru
      _
    // Predicated region
    $region154: #{tpu_custom_call.1} parent=1 // pred_check
      _
    $region155: #{tpu_custom_call.1} parent=1 // pred_check_branch
      %315 = sbr.rel (0) target = $region157
    $region156: #{tpu_custom_call.1} parent=1 // pred_region
      %317 = dma.done [#allocation24], 2048
    $region157: #{tpu_custom_call.1} parent=1 // pred_fallthru
      _
    // Predicated region
    $region158: #{tpu_custom_call.1} parent=1 // pred_check
      _
    $region159: #{tpu_custom_call.1} parent=1 // pred_check_branch
      %319 = sbr.rel (0) target = $region161
    $region160: #{tpu_custom_call.1} parent=1 // pred_region
      %321 = dma.done [#allocation27], 8192
    $region161: #{tpu_custom_call.1} parent=1 // pred_fallthru
      _
    // Predicated region
    $region162: #{tpu_custom_call.1} parent=1 // pred_check
      _
    $region163: #{tpu_custom_call.1} parent=1 // pred_check_branch
      %323 = sbr.rel (0) target = $region165
    $region164: #{tpu_custom_call.1} parent=1 // pred_region
      %325 = dma.done [#allocation27], 4096
    $region165: #{tpu_custom_call.1} parent=1 // pred_fallthru
      _
    %v326 = vld [vmem:[#allocation2] sm:$0xff]
    %v327 = vld [vmem:[#allocation2 + $0x8] sm:$0xff]
    %v328 = vld [vmem:[#allocation2 + $0x10] sm:$0xff]
    %v329 = vld [vmem:[#allocation2 + $0x18] sm:$0xff]
    %v330 = vld [vmem:[#allocation2 + $0x20] sm:$0xff]
    %v331 = vld [vmem:[#allocation2 + $0x28] sm:$0xff]
    %v332 = vld [vmem:[#allocation2 + $0x30] sm:$0xff]
    %v333 = vld [vmem:[#allocation2 + $0x38] sm:$0xff]
    %v334 = vld [vmem:[#allocation2 + $0x40] sm:$0xff]
    %v335 = vld [vmem:[#allocation2 + $0x48] sm:$0xff]
    %v336 = vld [vmem:[#allocation2 + $0x50] sm:$0xff]
    %v337 = vld [vmem:[#allocation2 + $0x58] sm:$0xff]
    %v338 = vld [vmem:[#allocation2 + $0x60] sm:$0xff]
    %v339 = vld [vmem:[#allocation2 + $0x68] sm:$0xff]
    %v340 = vld [vmem:[#allocation2 + $0x70] sm:$0xff]
    %v341 = vld [vmem:[#allocation2 + $0x78] sm:$0xff]
    %v342 = vld [vmem:[#allocation5] sm:$0xff]
    %v343 = vld [vmem:[#allocation5 + $0x8] sm:$0xff]
    %v344 = vld [vmem:[#allocation5 + $0x10] sm:$0xff]
    %v345 = vld [vmem:[#allocation5 + $0x18] sm:$0xff]
    %v346 = vld [vmem:[#allocation5 + $0x20] sm:$0xff]
    %v347 = vld [vmem:[#allocation5 + $0x28] sm:$0xff]
    %v348 = vld [vmem:[#allocation5 + $0x30] sm:$0xff]
    %v349 = vld [vmem:[#allocation5 + $0x38] sm:$0xff]
    %v350 = vld [vmem:[#allocation5 + $0x40] sm:$0xff]
    %v351 = vld [vmem:[#allocation5 + $0x48] sm:$0xff]
    %v352 = vld [vmem:[#allocation5 + $0x50] sm:$0xff]
    %v353 = vld [vmem:[#allocation5 + $0x58] sm:$0xff]
    %v354 = vld [vmem:[#allocation5 + $0x60] sm:$0xff]
    %v355 = vld [vmem:[#allocation5 + $0x68] sm:$0xff]
    %v356 = vld [vmem:[#allocation5 + $0x70] sm:$0xff]
    %v357 = vld [vmem:[#allocation5 + $0x78] sm:$0xff]
    %v358 = vld [vmem:[#allocation7] sm:$0x3]
    %v359 = vld [vmem:[#allocation8] sm:$0x3]
    %v360 = vpack.c.bf16 %v327, %v326
    %v361 = vpack.c.bf16 %v329, %v328
    %v362 = vpack.c.bf16 %v331, %v330
    %v363 = vpack.c.bf16 %v333, %v332
    %v364 = vpack.c.bf16 %v335, %v334
    %v365 = vpack.c.bf16 %v337, %v336
    %v366 = vpack.c.bf16 %v339, %v338
    %v367 = vpack.c.bf16 %v341, %v340
    %v384 = vunpack.c.l.b16 %v342
    %v385 = vunpack.c.h.b16 %v342
    %v386 = vunpack.c.l.b16 %v343
    %v387 = vunpack.c.h.b16 %v343
    %v388 = vunpack.c.l.b16 %v344
    %v389 = vunpack.c.h.b16 %v344
    %v390 = vunpack.c.l.b16 %v345
    %v391 = vunpack.c.h.b16 %v345
    %v392 = vunpack.c.l.b16 %v346
    %v393 = vunpack.c.h.b16 %v346
    %v394 = vunpack.c.l.b16 %v347
    %v395 = vunpack.c.h.b16 %v347
    %v396 = vunpack.c.l.b16 %v348
    %v397 = vunpack.c.h.b16 %v348
    %v398 = vunpack.c.l.b16 %v349
    %v399 = vunpack.c.h.b16 %v349
    %v400 = vunpack.c.l.b16 %v350
    %v401 = vunpack.c.h.b16 %v350
    %v402 = vunpack.c.l.b16 %v351
    %v403 = vunpack.c.h.b16 %v351
    %v404 = vunpack.c.l.b16 %v352
    %v405 = vunpack.c.h.b16 %v352
    %v406 = vunpack.c.l.b16 %v353
    %v407 = vunpack.c.h.b16 %v353
    %v408 = vunpack.c.l.b16 %v354
    %v409 = vunpack.c.h.b16 %v354
    %v410 = vunpack.c.l.b16 %v355
    %v411 = vunpack.c.h.b16 %v355
    %v412 = vunpack.c.l.b16 %v356
    %v413 = vunpack.c.h.b16 %v356
    %v414 = vunpack.c.l.b16 %v357
    %v415 = vunpack.c.h.b16 %v357
    %v416 = vpack.c.b16 %v386, %v384
    %v417 = vpack.c.b16 %v387, %v385
    %v418 = vpack.c.b16 %v390, %v388
    %v419 = vpack.c.b16 %v391, %v389
    %v420 = vpack.c.b16 %v394, %v392
    %v421 = vpack.c.b16 %v395, %v393
    %v422 = vpack.c.b16 %v398, %v396
    %v423 = vpack.c.b16 %v399, %v397
    %v424 = vpack.c.b16 %v402, %v400
    %v425 = vpack.c.b16 %v403, %v401
    %v426 = vpack.c.b16 %v406, %v404
    %v427 = vpack.c.b16 %v407, %v405
    %v428 = vpack.c.b16 %v410, %v408
    %v429 = vpack.c.b16 %v411, %v409
    %v430 = vpack.c.b16 %v414, %v412
    %v431 = vpack.c.b16 %v415, %v413
    %448 = vmatpush.bf16.msra.mxu0 %v430
    %449 = vmatpush.bf16.msra.mxu0 %v428
    %450 = vmatpush.bf16.msra.mxu0 %v426
    %451 = vmatpush.bf16.msra.mxu0 %v424
    %452 = vmatpush.bf16.msra.mxu0 %v422
    %453 = vmatpush.bf16.msra.mxu0 %v420
    %454 = vmatpush.bf16.msra.mxu0 %v418
    %455 = vmatpush.bf16.msra.mxu0 %v416
    %456 = vmatmul.bf16.gmra.mxu0 %v360
    %v457 = vpop.f32.mrf.mxu0
    %v458 = vadd.f32 0.0, %v457
    %v459 = vpop.f32.mrf.mxu0
    %v460 = vadd.f32 0.0, %v459
    %461 = vmatmul.bf16.gmra.mxu0 %v361
    %v462 = vpop.f32.mrf.mxu0
    %v463 = vadd.f32 0.0, %v462
    %v464 = vpop.f32.mrf.mxu0
    %v465 = vadd.f32 0.0, %v464
    %466 = vmatmul.bf16.gmra.mxu0 %v362
    %v467 = vpop.f32.mrf.mxu0
    %v468 = vadd.f32 0.0, %v467
    %v469 = vpop.f32.mrf.mxu0
    %v470 = vadd.f32 0.0, %v469
    %471 = vmatmul.bf16.gmra.mxu0 %v363
    %v472 = vpop.f32.mrf.mxu0
    %v473 = vadd.f32 0.0, %v472
    %v474 = vpop.f32.mrf.mxu0
    %v475 = vadd.f32 0.0, %v474
    %476 = vmatmul.bf16.gmra.mxu0 %v364
    %v477 = vpop.f32.mrf.mxu0
    %v478 = vadd.f32 0.0, %v477
    %v479 = vpop.f32.mrf.mxu0
    %v480 = vadd.f32 0.0, %v479
    %481 = vmatmul.bf16.gmra.mxu0 %v365
    %v482 = vpop.f32.mrf.mxu0
    %v483 = vadd.f32 0.0, %v482
    %v484 = vpop.f32.mrf.mxu0
    %v485 = vadd.f32 0.0, %v484
    %486 = vmatmul.bf16.gmra.mxu0 %v366
    %v487 = vpop.f32.mrf.mxu0
    %v488 = vadd.f32 0.0, %v487
    %v489 = vpop.f32.mrf.mxu0
    %v490 = vadd.f32 0.0, %v489
    %491 = vmatmul.bf16.gmra.mxu0 %v367
    %v492 = vpop.f32.mrf.mxu0
    %v493 = vadd.f32 0.0, %v492
    %v494 = vpop.f32.mrf.mxu0
    %v495 = vadd.f32 0.0, %v494
    %496 = vdwg.mxu0
    %497 = vmatpush.bf16.msra.mxu0 %v431
    %498 = vmatpush.bf16.msra.mxu0 %v429
    %499 = vmatpush.bf16.msra.mxu0 %v427
    %500 = vmatpush.bf16.msra.mxu0 %v425
    %501 = vmatpush.bf16.msra.mxu0 %v423
    %502 = vmatpush.bf16.msra.mxu0 %v421
    %503 = vmatpush.bf16.msra.mxu0 %v419
    %504 = vmatpush.bf16.msra.mxu0 %v417
    %505 = vmatmul.bf16.gmra.mxu0 %v360
    %v506 = vpop.f32.mrf.mxu0
    %v507 = vadd.f32 0.0, %v506
    %v508 = vpop.f32.mrf.mxu0
    %v509 = vadd.f32 0.0, %v508
    %510 = vmatmul.bf16.gmra.mxu0 %v361
    %v511 = vpop.f32.mrf.mxu0
    %v512 = vadd.f32 0.0, %v511
    %v513 = vpop.f32.mrf.mxu0
    %v514 = vadd.f32 0.0, %v513
    %515 = vmatmul.bf16.gmra.mxu0 %v362
    %v516 = vpop.f32.mrf.mxu0
    %v517 = vadd.f32 0.0, %v516
    %v518 = vpop.f32.mrf.mxu0
    %v519 = vadd.f32 0.0, %v518
    %520 = vmatmul.bf16.gmra.mxu0 %v363
    %v521 = vpop.f32.mrf.mxu0
    %v522 = vadd.f32 0.0, %v521
    %v523 = vpop.f32.mrf.mxu0
    %v524 = vadd.f32 0.0, %v523
    %525 = vmatmul.bf16.gmra.mxu0 %v364
    %v526 = vpop.f32.mrf.mxu0
    %v527 = vadd.f32 0.0, %v526
    %v528 = vpop.f32.mrf.mxu0
    %v529 = vadd.f32 0.0, %v528
    %530 = vmatmul.bf16.gmra.mxu0 %v365
    %v531 = vpop.f32.mrf.mxu0
    %v532 = vadd.f32 0.0, %v531
    %v533 = vpop.f32.mrf.mxu0
    %v534 = vadd.f32 0.0, %v533
    %535 = vmatmul.bf16.gmra.mxu0 %v366
    %v536 = vpop.f32.mrf.mxu0
    %v537 = vadd.f32 0.0, %v536
    %v538 = vpop.f32.mrf.mxu0
    %v539 = vadd.f32 0.0, %v538
    %540 = vmatmul.bf16.gmra.mxu0 %v367
    %v541 = vpop.f32.mrf.mxu0
    %v542 = vadd.f32 0.0, %v541
    %v543 = vpop.f32.mrf.mxu0
    %v544 = vadd.f32 0.0, %v543
    %545 = vdwg.mxu0
    %v547 = vperm.slane %v358, 0
    %v548 = vperm.slane %v358, 1
    %v551 = vmul.f32 %v458, %v547
    %v552 = vmul.f32 %v507, %v548
    %v553 = vmul.f32 %v460, %v547
    %v554 = vmul.f32 %v509, %v548
    %v555 = vmul.f32 %v463, %v547
    %v556 = vmul.f32 %v512, %v548
    %v557 = vmul.f32 %v465, %v547
    %v558 = vmul.f32 %v514, %v548
    %v559 = vmul.f32 %v468, %v547
    %v560 = vmul.f32 %v517, %v548
    %v561 = vmul.f32 %v470, %v547
    %v562 = vmul.f32 %v519, %v548
    %v563 = vmul.f32 %v473, %v547
    %v564 = vmul.f32 %v522, %v548
    %v565 = vmul.f32 %v475, %v547
    %v566 = vmul.f32 %v524, %v548
    %v567 = vmul.f32 %v478, %v547
    %v568 = vmul.f32 %v527, %v548
    %v569 = vmul.f32 %v480, %v547
    %v570 = vmul.f32 %v529, %v548
    %v571 = vmul.f32 %v483, %v547
    %v572 = vmul.f32 %v532, %v548
    %v573 = vmul.f32 %v485, %v547
    %v574 = vmul.f32 %v534, %v548
    %v575 = vmul.f32 %v488, %v547
    %v576 = vmul.f32 %v537, %v548
    %v577 = vmul.f32 %v490, %v547
    %v578 = vmul.f32 %v539, %v548
    %v579 = vmul.f32 %v493, %v547
    %v580 = vmul.f32 %v542, %v548
    %v581 = vmul.f32 %v495, %v547
    %v582 = vmul.f32 %v544, %v548
    %v584 = vperm.slane %v359, 0
    %v585 = vperm.slane %v359, 1
    %v588 = vadd.f32 %v551, %v584
    %v589 = vadd.f32 %v552, %v585
    %v590 = vadd.f32 %v553, %v584
    %v591 = vadd.f32 %v554, %v585
    %v592 = vadd.f32 %v555, %v584
    %v593 = vadd.f32 %v556, %v585
    %v594 = vadd.f32 %v557, %v584
    %v595 = vadd.f32 %v558, %v585
    %v596 = vadd.f32 %v559, %v584
    %v597 = vadd.f32 %v560, %v585
    %v598 = vadd.f32 %v561, %v584
    %v599 = vadd.f32 %v562, %v585
    %v600 = vadd.f32 %v563, %v584
    %v601 = vadd.f32 %v564, %v585
    %v602 = vadd.f32 %v565, %v584
    %v603 = vadd.f32 %v566, %v585
    %v604 = vadd.f32 %v567, %v584
    %v605 = vadd.f32 %v568, %v585
    %v606 = vadd.f32 %v569, %v584
    %v607 = vadd.f32 %v570, %v585
    %v608 = vadd.f32 %v571, %v584
    %v609 = vadd.f32 %v572, %v585
    %v610 = vadd.f32 %v573, %v584
    %v611 = vadd.f32 %v574, %v585
    %v612 = vadd.f32 %v575, %v584
    %v613 = vadd.f32 %v576, %v585
    %v614 = vadd.f32 %v577, %v584
    %v615 = vadd.f32 %v578, %v585
    %v616 = vadd.f32 %v579, %v584
    %v617 = vadd.f32 %v580, %v585
    %v618 = vadd.f32 %v581, %v584
    %v619 = vadd.f32 %v582, %v585
    %v620 = vmax.f32 %v588, 0.0
    %v621 = vmax.f32 %v589, 0.0
    %v622 = vmax.f32 %v590, 0.0
    %v623 = vmax.f32 %v591, 0.0
    %v624 = vmax.f32 %v592, 0.0
    %v625 = vmax.f32 %v593, 0.0
    %v626 = vmax.f32 %v594, 0.0
    %v627 = vmax.f32 %v595, 0.0
    %v628 = vmax.f32 %v596, 0.0
    %v629 = vmax.f32 %v597, 0.0
    %v630 = vmax.f32 %v598, 0.0
    %v631 = vmax.f32 %v599, 0.0
    %v632 = vmax.f32 %v600, 0.0
    %v633 = vmax.f32 %v601, 0.0
    %v634 = vmax.f32 %v602, 0.0
    %v635 = vmax.f32 %v603, 0.0
    %v636 = vmax.f32 %v604, 0.0
    %v637 = vmax.f32 %v605, 0.0
    %v638 = vmax.f32 %v606, 0.0
    %v639 = vmax.f32 %v607, 0.0
    %v640 = vmax.f32 %v608, 0.0
    %v641 = vmax.f32 %v609, 0.0
    %v642 = vmax.f32 %v610, 0.0
    %v643 = vmax.f32 %v611, 0.0
    %v644 = vmax.f32 %v612, 0.0
    %v645 = vmax.f32 %v613, 0.0
    %v646 = vmax.f32 %v614, 0.0
    %v647 = vmax.f32 %v615, 0.0
    %v648 = vmax.f32 %v616, 0.0
    %v649 = vmax.f32 %v617, 0.0
    %v650 = vmax.f32 %v618, 0.0
    %v651 = vmax.f32 %v619, 0.0
    %v652 = vld [vmem:[#allocation10] sm:$0xf]
    %v653 = vld [vmem:[#allocation10 + $0x4] sm:$0xf]
    %v654 = vld [vmem:[#allocation10 + $0x8] sm:$0xf]
    %v655 = vld [vmem:[#allocation10 + $0xc] sm:$0xf]
    %v656 = vld [vmem:[#allocation10 + $0x10] sm:$0xf]
    %v657 = vld [vmem:[#allocation10 + $0x14] sm:$0xf]
    %v658 = vld [vmem:[#allocation10 + $0x18] sm:$0xf]
    %v659 = vld [vmem:[#allocation10 + $0x1c] sm:$0xf]
    %v660 = vld [vmem:[#allocation10 + $0x20] sm:$0xf]
    %v661 = vld [vmem:[#allocation10 + $0x24] sm:$0xf]
    %v662 = vld [vmem:[#allocation10 + $0x28] sm:$0xf]
    %v663 = vld [vmem:[#allocation10 + $0x2c] sm:$0xf]
    %v664 = vld [vmem:[#allocation10 + $0x30] sm:$0xf]
    %v665 = vld [vmem:[#allocation10 + $0x34] sm:$0xf]
    %v666 = vld [vmem:[#allocation10 + $0x38] sm:$0xf]
    %v667 = vld [vmem:[#allocation10 + $0x3c] sm:$0xf]
    %v668 = vld [vmem:[#allocation10 + $0x40] sm:$0xf]
    %v669 = vld [vmem:[#allocation10 + $0x44] sm:$0xf]
    %v670 = vld [vmem:[#allocation10 + $0x48] sm:$0xf]
    %v671 = vld [vmem:[#allocation10 + $0x4c] sm:$0xf]
    %v672 = vld [vmem:[#allocation10 + $0x50] sm:$0xf]
    %v673 = vld [vmem:[#allocation10 + $0x54] sm:$0xf]
    %v674 = vld [vmem:[#allocation10 + $0x58] sm:$0xf]
    %v675 = vld [vmem:[#allocation10 + $0x5c] sm:$0xf]
    %v676 = vld [vmem:[#allocation10 + $0x60] sm:$0xf]
    %v677 = vld [vmem:[#allocation10 + $0x64] sm:$0xf]
    %v678 = vld [vmem:[#allocation10 + $0x68] sm:$0xf]
    %v679 = vld [vmem:[#allocation10 + $0x6c] sm:$0xf]
    %v680 = vld [vmem:[#allocation10 + $0x70] sm:$0xf]
    %v681 = vld [vmem:[#allocation10 + $0x74] sm:$0xf]
    %v682 = vld [vmem:[#allocation10 + $0x78] sm:$0xf]
    %v683 = vld [vmem:[#allocation10 + $0x7c] sm:$0xf]
    %v684 = vld [vmem:[#allocation11] sm:$0x1]
    %v685 = vld [vmem:[#allocation13] sm:$0x1]
    %v686 = vpack.c.bf16 %v622, %v620
    %v687 = vpack.c.bf16 %v623, %v621
    %v688 = vpack.c.bf16 %v626, %v624
    %v689 = vpack.c.bf16 %v627, %v625
    %v690 = vpack.c.bf16 %v630, %v628
    %v691 = vpack.c.bf16 %v631, %v629
    %v692 = vpack.c.bf16 %v634, %v632
    %v693 = vpack.c.bf16 %v635, %v633
    %v694 = vpack.c.bf16 %v638, %v636
    %v695 = vpack.c.bf16 %v639, %v637
    %v696 = vpack.c.bf16 %v642, %v640
    %v697 = vpack.c.bf16 %v643, %v641
    %v698 = vpack.c.bf16 %v646, %v644
    %v699 = vpack.c.bf16 %v647, %v645
    %v700 = vpack.c.bf16 %v650, %v648
    %v701 = vpack.c.bf16 %v651, %v649
    %v734 = vunpack.c.l.b16 %v652
    %v735 = vunpack.c.l.b16 %v653
    %v736 = vunpack.c.l.b16 %v654
    %v737 = vunpack.c.l.b16 %v655
    %v738 = vunpack.c.l.b16 %v656
    %v739 = vunpack.c.l.b16 %v657
    %v740 = vunpack.c.l.b16 %v658
    %v741 = vunpack.c.l.b16 %v659
    %v742 = vunpack.c.l.b16 %v660
    %v743 = vunpack.c.l.b16 %v661
    %v744 = vunpack.c.l.b16 %v662
    %v745 = vunpack.c.l.b16 %v663
    %v746 = vunpack.c.l.b16 %v664
    %v747 = vunpack.c.l.b16 %v665
    %v748 = vunpack.c.l.b16 %v666
    %v749 = vunpack.c.l.b16 %v667
    %v750 = vunpack.c.l.b16 %v668
    %v751 = vunpack.c.l.b16 %v669
    %v752 = vunpack.c.l.b16 %v670
    %v753 = vunpack.c.l.b16 %v671
    %v754 = vunpack.c.l.b16 %v672
    %v755 = vunpack.c.l.b16 %v673
    %v756 = vunpack.c.l.b16 %v674
    %v757 = vunpack.c.l.b16 %v675
    %v758 = vunpack.c.l.b16 %v676
    %v759 = vunpack.c.l.b16 %v677
    %v760 = vunpack.c.l.b16 %v678
    %v761 = vunpack.c.l.b16 %v679
    %v762 = vunpack.c.l.b16 %v680
    %v763 = vunpack.c.l.b16 %v681
    %v764 = vunpack.c.l.b16 %v682
    %v765 = vunpack.c.l.b16 %v683
    %v766 = vpack.c.b16 %v735, %v734
    %v767 = vpack.c.b16 %v737, %v736
    %v768 = vpack.c.b16 %v739, %v738
    %v769 = vpack.c.b16 %v741, %v740
    %v770 = vpack.c.b16 %v743, %v742
    %v771 = vpack.c.b16 %v745, %v744
    %v772 = vpack.c.b16 %v747, %v746
    %v773 = vpack.c.b16 %v749, %v748
    %v774 = vpack.c.b16 %v751, %v750
    %v775 = vpack.c.b16 %v753, %v752
    %v776 = vpack.c.b16 %v755, %v754
    %v777 = vpack.c.b16 %v757, %v756
    %v778 = vpack.c.b16 %v759, %v758
    %v779 = vpack.c.b16 %v761, %v760
    %v780 = vpack.c.b16 %v763, %v762
    %v781 = vpack.c.b16 %v765, %v764
    %798 = vmatpush.bf16.msra.mxu0 %v773
    %799 = vmatpush.bf16.msra.mxu0 %v772
    %800 = vmatpush.bf16.msra.mxu0 %v771
    %801 = vmatpush.bf16.msra.mxu0 %v770
    %802 = vmatpush.bf16.msra.mxu0 %v769
    %803 = vmatpush.bf16.msra.mxu0 %v768
    %804 = vmatpush.bf16.msra.mxu0 %v767
    %805 = vmatpush.bf16.msra.mxu0 %v766
    %806 = vmatmul.bf16.gmra.mxu0 %v686
    %v807 = vpop.f32.mrf.mxu0
    %v808 = vadd.f32 0.0, %v807
    %v809 = vpop.f32.mrf.mxu0
    %v810 = vadd.f32 0.0, %v809
    %811 = vmatmul.bf16.gmra.mxu0 %v688
    %v812 = vpop.f32.mrf.mxu0
    %v813 = vadd.f32 0.0, %v812
    %v814 = vpop.f32.mrf.mxu0
    %v815 = vadd.f32 0.0, %v814
    %816 = vmatmul.bf16.gmra.mxu0 %v690
    %v817 = vpop.f32.mrf.mxu0
    %v818 = vadd.f32 0.0, %v817
    %v819 = vpop.f32.mrf.mxu0
    %v820 = vadd.f32 0.0, %v819
    %821 = vmatmul.bf16.gmra.mxu0 %v692
    %v822 = vpop.f32.mrf.mxu0
    %v823 = vadd.f32 0.0, %v822
    %v824 = vpop.f32.mrf.mxu0
    %v825 = vadd.f32 0.0, %v824
    %826 = vmatmul.bf16.gmra.mxu0 %v694
    %v827 = vpop.f32.mrf.mxu0
    %v828 = vadd.f32 0.0, %v827
    %v829 = vpop.f32.mrf.mxu0
    %v830 = vadd.f32 0.0, %v829
    %831 = vmatmul.bf16.gmra.mxu0 %v696
    %v832 = vpop.f32.mrf.mxu0
    %v833 = vadd.f32 0.0, %v832
    %v834 = vpop.f32.mrf.mxu0
    %v835 = vadd.f32 0.0, %v834
    %836 = vmatmul.bf16.gmra.mxu0 %v698
    %v837 = vpop.f32.mrf.mxu0
    %v838 = vadd.f32 0.0, %v837
    %v839 = vpop.f32.mrf.mxu0
    %v840 = vadd.f32 0.0, %v839
    %841 = vmatmul.bf16.gmra.mxu0 %v700
    %v842 = vpop.f32.mrf.mxu0
    %v843 = vadd.f32 0.0, %v842
    %v844 = vpop.f32.mrf.mxu0
    %v845 = vadd.f32 0.0, %v844
    %846 = vdwg.mxu0
    %847 = vmatpush.bf16.msra.mxu0 %v781
    %848 = vmatpush.bf16.msra.mxu0 %v780
    %849 = vmatpush.bf16.msra.mxu0 %v779
    %850 = vmatpush.bf16.msra.mxu0 %v778
    %851 = vmatpush.bf16.msra.mxu0 %v777
    %852 = vmatpush.bf16.msra.mxu0 %v776
    %853 = vmatpush.bf16.msra.mxu0 %v775
    %854 = vmatpush.bf16.msra.mxu0 %v774
    %855 = vmatmul.bf16.gmra.mxu0 %v687
    %v856 = vpop.f32.mrf.mxu0
    %v857 = vadd.f32 %v808, %v856
    %v858 = vpop.f32.mrf.mxu0
    %v859 = vadd.f32 %v810, %v858
    %860 = vmatmul.bf16.gmra.mxu0 %v689
    %v861 = vpop.f32.mrf.mxu0
    %v862 = vadd.f32 %v813, %v861
    %v863 = vpop.f32.mrf.mxu0
    %v864 = vadd.f32 %v815, %v863
    %865 = vmatmul.bf16.gmra.mxu0 %v691
    %v866 = vpop.f32.mrf.mxu0
    %v867 = vadd.f32 %v818, %v866
    %v868 = vpop.f32.mrf.mxu0
    %v869 = vadd.f32 %v820, %v868
    %870 = vmatmul.bf16.gmra.mxu0 %v693
    %v871 = vpop.f32.mrf.mxu0
    %v872 = vadd.f32 %v823, %v871
    %v873 = vpop.f32.mrf.mxu0
    %v874 = vadd.f32 %v825, %v873
    %875 = vmatmul.bf16.gmra.mxu0 %v695
    %v876 = vpop.f32.mrf.mxu0
    %v877 = vadd.f32 %v828, %v876
    %v878 = vpop.f32.mrf.mxu0
    %v879 = vadd.f32 %v830, %v878
    %880 = vmatmul.bf16.gmra.mxu0 %v697
    %v881 = vpop.f32.mrf.mxu0
    %v882 = vadd.f32 %v833, %v881
    %v883 = vpop.f32.mrf.mxu0
    %v884 = vadd.f32 %v835, %v883
    %885 = vmatmul.bf16.gmra.mxu0 %v699
    %v886 = vpop.f32.mrf.mxu0
    %v887 = vadd.f32 %v838, %v886
    %v888 = vpop.f32.mrf.mxu0
    %v889 = vadd.f32 %v840, %v888
    %890 = vmatmul.bf16.gmra.mxu0 %v701
    %v891 = vpop.f32.mrf.mxu0
    %v892 = vadd.f32 %v843, %v891
    %v893 = vpop.f32.mrf.mxu0
    %v894 = vadd.f32 %v845, %v893
    %895 = vdwg.mxu0
    %v897 = vperm.slane %v684, 0
    %v899 = vmul.f32 %v857, %v897
    %v900 = vmul.f32 %v859, %v897
    %v901 = vmul.f32 %v862, %v897
    %v902 = vmul.f32 %v864, %v897
    %v903 = vmul.f32 %v867, %v897
    %v904 = vmul.f32 %v869, %v897
    %v905 = vmul.f32 %v872, %v897
    %v906 = vmul.f32 %v874, %v897
    %v907 = vmul.f32 %v877, %v897
    %v908 = vmul.f32 %v879, %v897
    %v909 = vmul.f32 %v882, %v897
    %v910 = vmul.f32 %v884, %v897
    %v911 = vmul.f32 %v887, %v897
    %v912 = vmul.f32 %v889, %v897
    %v913 = vmul.f32 %v892, %v897
    %v914 = vmul.f32 %v894, %v897
    %v916 = vperm.slane %v685, 0
    %v918 = vadd.f32 %v899, %v916
    %v919 = vadd.f32 %v900, %v916
    %v920 = vadd.f32 %v901, %v916
    %v921 = vadd.f32 %v902, %v916
    %v922 = vadd.f32 %v903, %v916
    %v923 = vadd.f32 %v904, %v916
    %v924 = vadd.f32 %v905, %v916
    %v925 = vadd.f32 %v906, %v916
    %v926 = vadd.f32 %v907, %v916
    %v927 = vadd.f32 %v908, %v916
    %v928 = vadd.f32 %v909, %v916
    %v929 = vadd.f32 %v910, %v916
    %v930 = vadd.f32 %v911, %v916
    %v931 = vadd.f32 %v912, %v916
    %v932 = vadd.f32 %v913, %v916
    %v933 = vadd.f32 %v914, %v916
    %v934 = vmax.f32 %v918, 0.0
    %v935 = vmax.f32 %v919, 0.0
    %v936 = vmax.f32 %v920, 0.0
    %v937 = vmax.f32 %v921, 0.0
    %v938 = vmax.f32 %v922, 0.0
    %v939 = vmax.f32 %v923, 0.0
    %v940 = vmax.f32 %v924, 0.0
    %v941 = vmax.f32 %v925, 0.0
    %v942 = vmax.f32 %v926, 0.0
    %v943 = vmax.f32 %v927, 0.0
    %v944 = vmax.f32 %v928, 0.0
    %v945 = vmax.f32 %v929, 0.0
    %v946 = vmax.f32 %v930, 0.0
    %v947 = vmax.f32 %v931, 0.0
    %v948 = vmax.f32 %v932, 0.0
    %v949 = vmax.f32 %v933, 0.0
    %v950 = vld [vmem:[#allocation14] sm:$0xf]
    %v951 = vld [vmem:[#allocation14 + $0x4] sm:$0xf]
    %v952 = vld [vmem:[#allocation14 + $0x8] sm:$0xf]
    %v953 = vld [vmem:[#allocation14 + $0xc] sm:$0xf]
    %v954 = vld [vmem:[#allocation14 + $0x10] sm:$0xf]
    %v955 = vld [vmem:[#allocation14 + $0x14] sm:$0xf]
    %v956 = vld [vmem:[#allocation14 + $0x18] sm:$0xf]
    %v957 = vld [vmem:[#allocation14 + $0x1c] sm:$0xf]
    %v958 = vld [vmem:[#allocation14 + $0x20] sm:$0xf]
    %v959 = vld [vmem:[#allocation14 + $0x24] sm:$0xf]
    %v960 = vld [vmem:[#allocation14 + $0x28] sm:$0xf]
    %v961 = vld [vmem:[#allocation14 + $0x2c] sm:$0xf]
    %v962 = vld [vmem:[#allocation14 + $0x30] sm:$0xf]
    %v963 = vld [vmem:[#allocation14 + $0x34] sm:$0xf]
    %v964 = vld [vmem:[#allocation14 + $0x38] sm:$0xf]
    %v965 = vld [vmem:[#allocation14 + $0x3c] sm:$0xf]
    %v966 = vld [vmem:[#allocation16] sm:$0x1]
    %v967 = vld [vmem:[#allocation17] sm:$0x1]
    %v968 = vpack.c.bf16 %v935, %v934
    %v969 = vpack.c.bf16 %v937, %v936
    %v970 = vpack.c.bf16 %v939, %v938
    %v971 = vpack.c.bf16 %v941, %v940
    %v972 = vpack.c.bf16 %v943, %v942
    %v973 = vpack.c.bf16 %v945, %v944
    %v974 = vpack.c.bf16 %v947, %v946
    %v975 = vpack.c.bf16 %v949, %v948
    %v992 = vunpack.c.l.b16 %v950
    %v993 = vunpack.c.l.b16 %v951
    %v994 = vunpack.c.l.b16 %v952
    %v995 = vunpack.c.l.b16 %v953
    %v996 = vunpack.c.l.b16 %v954
    %v997 = vunpack.c.l.b16 %v955
    %v998 = vunpack.c.l.b16 %v956
    %v999 = vunpack.c.l.b16 %v957
    %v1000 = vunpack.c.l.b16 %v958
    %v1001 = vunpack.c.l.b16 %v959
    %v1002 = vunpack.c.l.b16 %v960
    %v1003 = vunpack.c.l.b16 %v961
    %v1004 = vunpack.c.l.b16 %v962
    %v1005 = vunpack.c.l.b16 %v963
    %v1006 = vunpack.c.l.b16 %v964
    %v1007 = vunpack.c.l.b16 %v965
    %v1008 = vpack.c.b16 %v993, %v992
    %v1009 = vpack.c.b16 %v995, %v994
    %v1010 = vpack.c.b16 %v997, %v996
    %v1011 = vpack.c.b16 %v999, %v998
    %v1012 = vpack.c.b16 %v1001, %v1000
    %v1013 = vpack.c.b16 %v1003, %v1002
    %v1014 = vpack.c.b16 %v1005, %v1004
    %v1015 = vpack.c.b16 %v1007, %v1006
    %1024 = vmatpush.bf16.msra.mxu0 %v1015
    %1025 = vmatpush.bf16.msra.mxu0 %v1014
    %1026 = vmatpush.bf16.msra.mxu0 %v1013
    %1027 = vmatpush.bf16.msra.mxu0 %v1012
    %1028 = vmatpush.bf16.msra.mxu0 %v1011
    %1029 = vmatpush.bf16.msra.mxu0 %v1010
    %1030 = vmatpush.bf16.msra.mxu0 %v1009
    %1031 = vmatpush.bf16.msra.mxu0 %v1008
    %1032 = vmatmul.bf16.gmra.mxu0 %v968
    %v1033 = vpop.f32.mrf.mxu0
    %v1034 = vadd.f32 0.0, %v1033
    %v1035 = vpop.f32.mrf.mxu0
    %v1036 = vadd.f32 0.0, %v1035
    %1037 = vmatmul.bf16.gmra.mxu0 %v969
    %v1038 = vpop.f32.mrf.mxu0
    %v1039 = vadd.f32 0.0, %v1038
    %v1040 = vpop.f32.mrf.mxu0
    %v1041 = vadd.f32 0.0, %v1040
    %1042 = vmatmul.bf16.gmra.mxu0 %v970
    %v1043 = vpop.f32.mrf.mxu0
    %v1044 = vadd.f32 0.0, %v1043
    %v1045 = vpop.f32.mrf.mxu0
    %v1046 = vadd.f32 0.0, %v1045
    %1047 = vmatmul.bf16.gmra.mxu0 %v971
    %v1048 = vpop.f32.mrf.mxu0
    %v1049 = vadd.f32 0.0, %v1048
    %v1050 = vpop.f32.mrf.mxu0
    %v1051 = vadd.f32 0.0, %v1050
    %1052 = vmatmul.bf16.gmra.mxu0 %v972
    %v1053 = vpop.f32.mrf.mxu0
    %v1054 = vadd.f32 0.0, %v1053
    %v1055 = vpop.f32.mrf.mxu0
    %v1056 = vadd.f32 0.0, %v1055
    %1057 = vmatmul.bf16.gmra.mxu0 %v973
    %v1058 = vpop.f32.mrf.mxu0
    %v1059 = vadd.f32 0.0, %v1058
    %v1060 = vpop.f32.mrf.mxu0
    %v1061 = vadd.f32 0.0, %v1060
    %1062 = vmatmul.bf16.gmra.mxu0 %v974
    %v1063 = vpop.f32.mrf.mxu0
    %v1064 = vadd.f32 0.0, %v1063
    %v1065 = vpop.f32.mrf.mxu0
    %v1066 = vadd.f32 0.0, %v1065
    %1067 = vmatmul.bf16.gmra.mxu0 %v975
    %v1068 = vpop.f32.mrf.mxu0
    %v1069 = vadd.f32 0.0, %v1068
    %v1070 = vpop.f32.mrf.mxu0
    %v1071 = vadd.f32 0.0, %v1070
    %1072 = vdwg.mxu0
    %v1074 = vperm.slane %v966, 0
    %v1076 = vmul.f32 %v1034, %v1074
    %v1077 = vmul.f32 %v1036, %v1074
    %v1078 = vmul.f32 %v1039, %v1074
    %v1079 = vmul.f32 %v1041, %v1074
    %v1080 = vmul.f32 %v1044, %v1074
    %v1081 = vmul.f32 %v1046, %v1074
    %v1082 = vmul.f32 %v1049, %v1074
    %v1083 = vmul.f32 %v1051, %v1074
    %v1084 = vmul.f32 %v1054, %v1074
    %v1085 = vmul.f32 %v1056, %v1074
    %v1086 = vmul.f32 %v1059, %v1074
    %v1087 = vmul.f32 %v1061, %v1074
    %v1088 = vmul.f32 %v1064, %v1074
    %v1089 = vmul.f32 %v1066, %v1074
    %v1090 = vmul.f32 %v1069, %v1074
    %v1091 = vmul.f32 %v1071, %v1074
    %v1093 = vperm.slane %v967, 0
    %v1095 = vadd.f32 %v1076, %v1093
    %v1096 = vadd.f32 %v1077, %v1093
    %v1097 = vadd.f32 %v1078, %v1093
    %v1098 = vadd.f32 %v1079, %v1093
    %v1099 = vadd.f32 %v1080, %v1093
    %v1100 = vadd.f32 %v1081, %v1093
    %v1101 = vadd.f32 %v1082, %v1093
    %v1102 = vadd.f32 %v1083, %v1093
    %v1103 = vadd.f32 %v1084, %v1093
    %v1104 = vadd.f32 %v1085, %v1093
    %v1105 = vadd.f32 %v1086, %v1093
    %v1106 = vadd.f32 %v1087, %v1093
    %v1107 = vadd.f32 %v1088, %v1093
    %v1108 = vadd.f32 %v1089, %v1093
    %v1109 = vadd.f32 %v1090, %v1093
    %v1110 = vadd.f32 %v1091, %v1093
    %v1111 = vmax.f32 %v1095, 0.0
    %v1112 = vmax.f32 %v1096, 0.0
    %v1113 = vmax.f32 %v1097, 0.0
    %v1114 = vmax.f32 %v1098, 0.0
    %v1115 = vmax.f32 %v1099, 0.0
    %v1116 = vmax.f32 %v1100, 0.0
    %v1117 = vmax.f32 %v1101, 0.0
    %v1118 = vmax.f32 %v1102, 0.0
    %v1119 = vmax.f32 %v1103, 0.0
    %v1120 = vmax.f32 %v1104, 0.0
    %v1121 = vmax.f32 %v1105, 0.0
    %v1122 = vmax.f32 %v1106, 0.0
    %v1123 = vmax.f32 %v1107, 0.0
    %v1124 = vmax.f32 %v1108, 0.0
    %v1125 = vmax.f32 %v1109, 0.0
    %v1126 = vmax.f32 %v1110, 0.0
    %v1127 = vld [vmem:[#allocation19] sm:$0xf]
    %v1128 = vld [vmem:[#allocation19 + $0x4] sm:$0xf]
    %v1129 = vld [vmem:[#allocation19 + $0x8] sm:$0xf]
    %v1130 = vld [vmem:[#allocation19 + $0xc] sm:$0xf]
    %v1131 = vld [vmem:[#allocation19 + $0x10] sm:$0xf]
    %v1132 = vld [vmem:[#allocation19 + $0x14] sm:$0xf]
    %v1133 = vld [vmem:[#allocation19 + $0x18] sm:$0xf]
    %v1134 = vld [vmem:[#allocation19 + $0x1c] sm:$0xf]
    %v1135 = vld [vmem:[#allocation19 + $0x20] sm:$0xf]
    %v1136 = vld [vmem:[#allocation19 + $0x24] sm:$0xf]
    %v1137 = vld [vmem:[#allocation19 + $0x28] sm:$0xf]
    %v1138 = vld [vmem:[#allocation19 + $0x2c] sm:$0xf]
    %v1139 = vld [vmem:[#allocation19 + $0x30] sm:$0xf]
    %v1140 = vld [vmem:[#allocation19 + $0x34] sm:$0xf]
    %v1141 = vld [vmem:[#allocation19 + $0x38] sm:$0xf]
    %v1142 = vld [vmem:[#allocation19 + $0x3c] sm:$0xf]
    %v1143 = vld [vmem:[#allocation20] sm:$0x1]
    %v1144 = vld [vmem:[#allocation22] sm:$0x1]
    %v1145 = vpack.c.bf16 %v1112, %v1111
    %v1146 = vpack.c.bf16 %v1114, %v1113
    %v1147 = vpack.c.bf16 %v1116, %v1115
    %v1148 = vpack.c.bf16 %v1118, %v1117
    %v1149 = vpack.c.bf16 %v1120, %v1119
    %v1150 = vpack.c.bf16 %v1122, %v1121
    %v1151 = vpack.c.bf16 %v1124, %v1123
    %v1152 = vpack.c.bf16 %v1126, %v1125
    %v1169 = vunpack.c.l.b16 %v1127
    %v1170 = vunpack.c.l.b16 %v1128
    %v1171 = vunpack.c.l.b16 %v1129
    %v1172 = vunpack.c.l.b16 %v1130
    %v1173 = vunpack.c.l.b16 %v1131
    %v1174 = vunpack.c.l.b16 %v1132
    %v1175 = vunpack.c.l.b16 %v1133
    %v1176 = vunpack.c.l.b16 %v1134
    %v1177 = vunpack.c.l.b16 %v1135
    %v1178 = vunpack.c.l.b16 %v1136
    %v1179 = vunpack.c.l.b16 %v1137
    %v1180 = vunpack.c.l.b16 %v1138
    %v1181 = vunpack.c.l.b16 %v1139
    %v1182 = vunpack.c.l.b16 %v1140
    %v1183 = vunpack.c.l.b16 %v1141
    %v1184 = vunpack.c.l.b16 %v1142
    %v1185 = vpack.c.b16 %v1170, %v1169
    %v1186 = vpack.c.b16 %v1172, %v1171
    %v1187 = vpack.c.b16 %v1174, %v1173
    %v1188 = vpack.c.b16 %v1176, %v1175
    %v1189 = vpack.c.b16 %v1178, %v1177
    %v1190 = vpack.c.b16 %v1180, %v1179
    %v1191 = vpack.c.b16 %v1182, %v1181
    %v1192 = vpack.c.b16 %v1184, %v1183
    %1201 = vmatpush.bf16.msra.mxu0 %v1192
    %1202 = vmatpush.bf16.msra.mxu0 %v1191
    %1203 = vmatpush.bf16.msra.mxu0 %v1190
    %1204 = vmatpush.bf16.msra.mxu0 %v1189
    %1205 = vmatpush.bf16.msra.mxu0 %v1188
    %1206 = vmatpush.bf16.msra.mxu0 %v1187
    %1207 = vmatpush.bf16.msra.mxu0 %v1186
    %1208 = vmatpush.bf16.msra.mxu0 %v1185
    %1209 = vmatmul.bf16.gmra.mxu0 %v1145
    %v1210 = vpop.f32.mrf.mxu0
    %v1211 = vadd.f32 0.0, %v1210
    %v1212 = vpop.f32.mrf.mxu0
    %v1213 = vadd.f32 0.0, %v1212
    %1214 = vmatmul.bf16.gmra.mxu0 %v1146
    %v1215 = vpop.f32.mrf.mxu0
    %v1216 = vadd.f32 0.0, %v1215
    %v1217 = vpop.f32.mrf.mxu0
    %v1218 = vadd.f32 0.0, %v1217
    %1219 = vmatmul.bf16.gmra.mxu0 %v1147
    %v1220 = vpop.f32.mrf.mxu0
    %v1221 = vadd.f32 0.0, %v1220
    %v1222 = vpop.f32.mrf.mxu0
    %v1223 = vadd.f32 0.0, %v1222
    %1224 = vmatmul.bf16.gmra.mxu0 %v1148
    %v1225 = vpop.f32.mrf.mxu0
    %v1226 = vadd.f32 0.0, %v1225
    %v1227 = vpop.f32.mrf.mxu0
    %v1228 = vadd.f32 0.0, %v1227
    %1229 = vmatmul.bf16.gmra.mxu0 %v1149
    %v1230 = vpop.f32.mrf.mxu0
    %v1231 = vadd.f32 0.0, %v1230
    %v1232 = vpop.f32.mrf.mxu0
    %v1233 = vadd.f32 0.0, %v1232
    %1234 = vmatmul.bf16.gmra.mxu0 %v1150
    %v1235 = vpop.f32.mrf.mxu0
    %v1236 = vadd.f32 0.0, %v1235
    %v1237 = vpop.f32.mrf.mxu0
    %v1238 = vadd.f32 0.0, %v1237
    %1239 = vmatmul.bf16.gmra.mxu0 %v1151
    %v1240 = vpop.f32.mrf.mxu0
    %v1241 = vadd.f32 0.0, %v1240
    %v1242 = vpop.f32.mrf.mxu0
    %v1243 = vadd.f32 0.0, %v1242
    %1244 = vmatmul.bf16.gmra.mxu0 %v1152
    %v1245 = vpop.f32.mrf.mxu0
    %v1246 = vadd.f32 0.0, %v1245
    %v1247 = vpop.f32.mrf.mxu0
    %v1248 = vadd.f32 0.0, %v1247
    %1249 = vdwg.mxu0
    %v1251 = vperm.slane %v1143, 0
    %v1253 = vmul.f32 %v1211, %v1251
    %v1254 = vmul.f32 %v1213, %v1251
    %v1255 = vmul.f32 %v1216, %v1251
    %v1256 = vmul.f32 %v1218, %v1251
    %v1257 = vmul.f32 %v1221, %v1251
    %v1258 = vmul.f32 %v1223, %v1251
    %v1259 = vmul.f32 %v1226, %v1251
    %v1260 = vmul.f32 %v1228, %v1251
    %v1261 = vmul.f32 %v1231, %v1251
    %v1262 = vmul.f32 %v1233, %v1251
    %v1263 = vmul.f32 %v1236, %v1251
    %v1264 = vmul.f32 %v1238, %v1251
    %v1265 = vmul.f32 %v1241, %v1251
    %v1266 = vmul.f32 %v1243, %v1251
    %v1267 = vmul.f32 %v1246, %v1251
    %v1268 = vmul.f32 %v1248, %v1251
    %v1270 = vperm.slane %v1144, 0
    %v1272 = vadd.f32 %v1253, %v1270
    %v1273 = vadd.f32 %v1254, %v1270
    %v1274 = vadd.f32 %v1255, %v1270
    %v1275 = vadd.f32 %v1256, %v1270
    %v1276 = vadd.f32 %v1257, %v1270
    %v1277 = vadd.f32 %v1258, %v1270
    %v1278 = vadd.f32 %v1259, %v1270
    %v1279 = vadd.f32 %v1260, %v1270
    %v1280 = vadd.f32 %v1261, %v1270
    %v1281 = vadd.f32 %v1262, %v1270
    %v1282 = vadd.f32 %v1263, %v1270
    %v1283 = vadd.f32 %v1264, %v1270
    %v1284 = vadd.f32 %v1265, %v1270
    %v1285 = vadd.f32 %v1266, %v1270
    %v1286 = vadd.f32 %v1267, %v1270
    %v1287 = vadd.f32 %v1268, %v1270
    %v1288 = vmax.f32 %v1272, 0.0
    %v1289 = vmax.f32 %v1273, 0.0
    %v1290 = vmax.f32 %v1274, 0.0
    %v1291 = vmax.f32 %v1275, 0.0
    %v1292 = vmax.f32 %v1276, 0.0
    %v1293 = vmax.f32 %v1277, 0.0
    %v1294 = vmax.f32 %v1278, 0.0
    %v1295 = vmax.f32 %v1279, 0.0
    %v1296 = vmax.f32 %v1280, 0.0
    %v1297 = vmax.f32 %v1281, 0.0
    %v1298 = vmax.f32 %v1282, 0.0
    %v1299 = vmax.f32 %v1283, 0.0
    %v1300 = vmax.f32 %v1284, 0.0
    %v1301 = vmax.f32 %v1285, 0.0
    %v1302 = vmax.f32 %v1286, 0.0
    %v1303 = vmax.f32 %v1287, 0.0
    %v1304 = vld [vmem:[#allocation23] sm:$0xf]
    %v1305 = vld [vmem:[#allocation23 + $0x4] sm:$0xf]
    %v1306 = vld [vmem:[#allocation23 + $0x8] sm:$0xf]
    %v1307 = vld [vmem:[#allocation23 + $0xc] sm:$0xf]
    %v1308 = vld [vmem:[#allocation23 + $0x10] sm:$0xf]
    %v1309 = vld [vmem:[#allocation23 + $0x14] sm:$0xf]
    %v1310 = vld [vmem:[#allocation23 + $0x18] sm:$0xf]
    %v1311 = vld [vmem:[#allocation23 + $0x1c] sm:$0xf]
    %v1312 = vld [vmem:[#allocation23 + $0x20] sm:$0xf]
    %v1313 = vld [vmem:[#allocation23 + $0x24] sm:$0xf]
    %v1314 = vld [vmem:[#allocation23 + $0x28] sm:$0xf]
    %v1315 = vld [vmem:[#allocation23 + $0x2c] sm:$0xf]
    %v1316 = vld [vmem:[#allocation23 + $0x30] sm:$0xf]
    %v1317 = vld [vmem:[#allocation23 + $0x34] sm:$0xf]
    %v1318 = vld [vmem:[#allocation23 + $0x38] sm:$0xf]
    %v1319 = vld [vmem:[#allocation23 + $0x3c] sm:$0xf]
    %v1320 = vld [vmem:[%s14] sm:$0x1]
    %v1321 = vld [vmem:[%s15] sm:$0x1]
    %v1322 = vpack.c.bf16 %v1289, %v1288
    %v1323 = vpack.c.bf16 %v1291, %v1290
    %v1324 = vpack.c.bf16 %v1293, %v1292
    %v1325 = vpack.c.bf16 %v1295, %v1294
    %v1326 = vpack.c.bf16 %v1297, %v1296
    %v1327 = vpack.c.bf16 %v1299, %v1298
    %v1328 = vpack.c.bf16 %v1301, %v1300
    %v1329 = vpack.c.bf16 %v1303, %v1302
    %v1346 = vunpack.c.l.b16 %v1304
    %v1347 = vunpack.c.l.b16 %v1305
    %v1348 = vunpack.c.l.b16 %v1306
    %v1349 = vunpack.c.l.b16 %v1307
    %v1350 = vunpack.c.l.b16 %v1308
    %v1351 = vunpack.c.l.b16 %v1309
    %v1352 = vunpack.c.l.b16 %v1310
    %v1353 = vunpack.c.l.b16 %v1311
    %v1354 = vunpack.c.l.b16 %v1312
    %v1355 = vunpack.c.l.b16 %v1313
    %v1356 = vunpack.c.l.b16 %v1314
    %v1357 = vunpack.c.l.b16 %v1315
    %v1358 = vunpack.c.l.b16 %v1316
    %v1359 = vunpack.c.l.b16 %v1317
    %v1360 = vunpack.c.l.b16 %v1318
    %v1361 = vunpack.c.l.b16 %v1319
    %v1362 = vpack.c.b16 %v1347, %v1346
    %v1363 = vpack.c.b16 %v1349, %v1348
    %v1364 = vpack.c.b16 %v1351, %v1350
    %v1365 = vpack.c.b16 %v1353, %v1352
    %v1366 = vpack.c.b16 %v1355, %v1354
    %v1367 = vpack.c.b16 %v1357, %v1356
    %v1368 = vpack.c.b16 %v1359, %v1358
    %v1369 = vpack.c.b16 %v1361, %v1360
    %1378 = vmatpush.bf16.msra.mxu0 %v1369
    %1379 = vmatpush.bf16.msra.mxu0 %v1368
    %1380 = vmatpush.bf16.msra.mxu0 %v1367
    %1381 = vmatpush.bf16.msra.mxu0 %v1366
    %1382 = vmatpush.bf16.msra.mxu0 %v1365
    %1383 = vmatpush.bf16.msra.mxu0 %v1364
    %1384 = vmatpush.bf16.msra.mxu0 %v1363
    %1385 = vmatpush.bf16.msra.mxu0 %v1362
    %1386 = vmatmul.bf16.gmra.mxu0 %v1322
    %v1387 = vpop.f32.mrf.mxu0
    %v1388 = vadd.f32 0.0, %v1387
    %v1389 = vpop.f32.mrf.mxu0
    %v1390 = vadd.f32 0.0, %v1389
    %1391 = vmatmul.bf16.gmra.mxu0 %v1323
    %v1392 = vpop.f32.mrf.mxu0
    %v1393 = vadd.f32 0.0, %v1392
    %v1394 = vpop.f32.mrf.mxu0
    %v1395 = vadd.f32 0.0, %v1394
    %1396 = vmatmul.bf16.gmra.mxu0 %v1324
    %v1397 = vpop.f32.mrf.mxu0
    %v1398 = vadd.f32 0.0, %v1397
    %v1399 = vpop.f32.mrf.mxu0
    %v1400 = vadd.f32 0.0, %v1399
    %1401 = vmatmul.bf16.gmra.mxu0 %v1325
    %v1402 = vpop.f32.mrf.mxu0
    %v1403 = vadd.f32 0.0, %v1402
    %v1404 = vpop.f32.mrf.mxu0
    %v1405 = vadd.f32 0.0, %v1404
    %1406 = vmatmul.bf16.gmra.mxu0 %v1326
    %v1407 = vpop.f32.mrf.mxu0
    %v1408 = vadd.f32 0.0, %v1407
    %v1409 = vpop.f32.mrf.mxu0
    %v1410 = vadd.f32 0.0, %v1409
    %1411 = vmatmul.bf16.gmra.mxu0 %v1327
    %v1412 = vpop.f32.mrf.mxu0
    %v1413 = vadd.f32 0.0, %v1412
    %v1414 = vpop.f32.mrf.mxu0
    %v1415 = vadd.f32 0.0, %v1414
    %1416 = vmatmul.bf16.gmra.mxu0 %v1328
    %v1417 = vpop.f32.mrf.mxu0
    %v1418 = vadd.f32 0.0, %v1417
    %v1419 = vpop.f32.mrf.mxu0
    %v1420 = vadd.f32 0.0, %v1419
    %1421 = vmatmul.bf16.gmra.mxu0 %v1329
    %v1422 = vpop.f32.mrf.mxu0
    %v1423 = vadd.f32 0.0, %v1422
    %v1424 = vpop.f32.mrf.mxu0
    %v1425 = vadd.f32 0.0, %v1424
    %1426 = vdwg.mxu0
    %v1428 = vperm.slane %v1320, 0
    %v1430 = vmul.f32 %v1388, %v1428
    %v1431 = vmul.f32 %v1390, %v1428
    %v1432 = vmul.f32 %v1393, %v1428
    %v1433 = vmul.f32 %v1395, %v1428
    %v1434 = vmul.f32 %v1398, %v1428
    %v1435 = vmul.f32 %v1400, %v1428
    %v1436 = vmul.f32 %v1403, %v1428
    %v1437 = vmul.f32 %v1405, %v1428
    %v1438 = vmul.f32 %v1408, %v1428
    %v1439 = vmul.f32 %v1410, %v1428
    %v1440 = vmul.f32 %v1413, %v1428
    %v1441 = vmul.f32 %v1415, %v1428
    %v1442 = vmul.f32 %v1418, %v1428
    %v1443 = vmul.f32 %v1420, %v1428
    %v1444 = vmul.f32 %v1423, %v1428
    %v1445 = vmul.f32 %v1425, %v1428
    %v1447 = vperm.slane %v1321, 0
    %v1449 = vadd.f32 %v1430, %v1447
    %v1450 = vadd.f32 %v1431, %v1447
    %v1451 = vadd.f32 %v1432, %v1447
    %v1452 = vadd.f32 %v1433, %v1447
    %v1453 = vadd.f32 %v1434, %v1447
    %v1454 = vadd.f32 %v1435, %v1447
    %v1455 = vadd.f32 %v1436, %v1447
    %v1456 = vadd.f32 %v1437, %v1447
    %v1457 = vadd.f32 %v1438, %v1447
    %v1458 = vadd.f32 %v1439, %v1447
    %v1459 = vadd.f32 %v1440, %v1447
    %v1460 = vadd.f32 %v1441, %v1447
    %v1461 = vadd.f32 %v1442, %v1447
    %v1462 = vadd.f32 %v1443, %v1447
    %v1463 = vadd.f32 %v1444, %v1447
    %v1464 = vadd.f32 %v1445, %v1447
    %v1465 = vmax.f32 %v1449, 0.0
    %v1466 = vmax.f32 %v1450, 0.0
    %v1467 = vmax.f32 %v1451, 0.0
    %v1468 = vmax.f32 %v1452, 0.0
    %v1469 = vmax.f32 %v1453, 0.0
    %v1470 = vmax.f32 %v1454, 0.0
    %v1471 = vmax.f32 %v1455, 0.0
    %v1472 = vmax.f32 %v1456, 0.0
    %v1473 = vmax.f32 %v1457, 0.0
    %v1474 = vmax.f32 %v1458, 0.0
    %v1475 = vmax.f32 %v1459, 0.0
    %v1476 = vmax.f32 %v1460, 0.0
    %v1477 = vmax.f32 %v1461, 0.0
    %v1478 = vmax.f32 %v1462, 0.0
    %v1479 = vmax.f32 %v1463, 0.0
    %v1480 = vmax.f32 %v1464, 0.0
    %v1481 = vld [vmem:[#allocation25] sm:$0xff]
    %v1482 = vld [vmem:[#allocation25 + $0x8] sm:$0xff]
    %v1483 = vld [vmem:[#allocation25 + $0x10] sm:$0xff]
    %v1484 = vld [vmem:[#allocation25 + $0x18] sm:$0xff]
    %v1485 = vld [vmem:[#allocation25 + $0x20] sm:$0xff]
    %v1486 = vld [vmem:[#allocation25 + $0x28] sm:$0xff]
    %v1487 = vld [vmem:[#allocation25 + $0x30] sm:$0xff]
    %v1488 = vld [vmem:[#allocation25 + $0x38] sm:$0xff]
    %v1489 = vld [vmem:[#allocation25 + $0x40] sm:$0xff]
    %v1490 = vld [vmem:[#allocation25 + $0x48] sm:$0xff]
    %v1491 = vld [vmem:[#allocation25 + $0x50] sm:$0xff]
    %v1492 = vld [vmem:[#allocation25 + $0x58] sm:$0xff]
    %v1493 = vld [vmem:[#allocation25 + $0x60] sm:$0xff]
    %v1494 = vld [vmem:[#allocation25 + $0x68] sm:$0xff]
    %v1495 = vld [vmem:[#allocation25 + $0x70] sm:$0xff]
    %v1496 = vld [vmem:[#allocation25 + $0x78] sm:$0xff]
    %v1497 = vld [vmem:[%s17] sm:$0x3]
    %v1498 = vld [vmem:[%s18] sm:$0x3]
    %v1499 = vpack.c.bf16 %v1466, %v1465
    %v1500 = vpack.c.bf16 %v1468, %v1467
    %v1501 = vpack.c.bf16 %v1470, %v1469
    %v1502 = vpack.c.bf16 %v1472, %v1471
    %v1503 = vpack.c.bf16 %v1474, %v1473
    %v1504 = vpack.c.bf16 %v1476, %v1475
    %v1505 = vpack.c.bf16 %v1478, %v1477
    %v1506 = vpack.c.bf16 %v1480, %v1479
    %v1523 = vunpack.c.l.b16 %v1481
    %v1524 = vunpack.c.h.b16 %v1481
    %v1525 = vunpack.c.l.b16 %v1482
    %v1526 = vunpack.c.h.b16 %v1482
    %v1527 = vunpack.c.l.b16 %v1483
    %v1528 = vunpack.c.h.b16 %v1483
    %v1529 = vunpack.c.l.b16 %v1484
    %v1530 = vunpack.c.h.b16 %v1484
    %v1531 = vunpack.c.l.b16 %v1485
    %v1532 = vunpack.c.h.b16 %v1485
    %v1533 = vunpack.c.l.b16 %v1486
    %v1534 = vunpack.c.h.b16 %v1486
    %v1535 = vunpack.c.l.b16 %v1487
    %v1536 = vunpack.c.h.b16 %v1487
    %v1537 = vunpack.c.l.b16 %v1488
    %v1538 = vunpack.c.h.b16 %v1488
    %v1539 = vunpack.c.l.b16 %v1489
    %v1540 = vunpack.c.h.b16 %v1489
    %v1541 = vunpack.c.l.b16 %v1490
    %v1542 = vunpack.c.h.b16 %v1490
    %v1543 = vunpack.c.l.b16 %v1491
    %v1544 = vunpack.c.h.b16 %v1491
    %v1545 = vunpack.c.l.b16 %v1492
    %v1546 = vunpack.c.h.b16 %v1492
    %v1547 = vunpack.c.l.b16 %v1493
    %v1548 = vunpack.c.h.b16 %v1493
    %v1549 = vunpack.c.l.b16 %v1494
    %v1550 = vunpack.c.h.b16 %v1494
    %v1551 = vunpack.c.l.b16 %v1495
    %v1552 = vunpack.c.h.b16 %v1495
    %v1553 = vunpack.c.l.b16 %v1496
    %v1554 = vunpack.c.h.b16 %v1496
    %v1555 = vpack.c.b16 %v1525, %v1523
    %v1556 = vpack.c.b16 %v1526, %v1524
    %v1557 = vpack.c.b16 %v1529, %v1527
    %v1558 = vpack.c.b16 %v1530, %v1528
    %v1559 = vpack.c.b16 %v1533, %v1531
    %v1560 = vpack.c.b16 %v1534, %v1532
    %v1561 = vpack.c.b16 %v1537, %v1535
    %v1562 = vpack.c.b16 %v1538, %v1536
    %v1563 = vpack.c.b16 %v1541, %v1539
    %v1564 = vpack.c.b16 %v1542, %v1540
    %v1565 = vpack.c.b16 %v1545, %v1543
    %v1566 = vpack.c.b16 %v1546, %v1544
    %v1567 = vpack.c.b16 %v1549, %v1547
    %v1568 = vpack.c.b16 %v1550, %v1548
    %v1569 = vpack.c.b16 %v1553, %v1551
    %v1570 = vpack.c.b16 %v1554, %v1552
    %1587 = vmatpush.bf16.msra.mxu0 %v1569
    %1588 = vmatpush.bf16.msra.mxu0 %v1567
    %1589 = vmatpush.bf16.msra.mxu0 %v1565
    %1590 = vmatpush.bf16.msra.mxu0 %v1563
    %1591 = vmatpush.bf16.msra.mxu0 %v1561
    %1592 = vmatpush.bf16.msra.mxu0 %v1559
    %1593 = vmatpush.bf16.msra.mxu0 %v1557
    %1594 = vmatpush.bf16.msra.mxu0 %v1555
    %1595 = vmatmul.bf16.gmra.mxu0 %v1499
    %v1596 = vpop.f32.mrf.mxu0
    %v1597 = vadd.f32 0.0, %v1596
    %v1598 = vpop.f32.mrf.mxu0
    %v1599 = vadd.f32 0.0, %v1598
    %1600 = vmatmul.bf16.gmra.mxu0 %v1500
    %v1601 = vpop.f32.mrf.mxu0
    %v1602 = vadd.f32 0.0, %v1601
    %v1603 = vpop.f32.mrf.mxu0
    %v1604 = vadd.f32 0.0, %v1603
    %1605 = vmatmul.bf16.gmra.mxu0 %v1501
    %v1606 = vpop.f32.mrf.mxu0
    %v1607 = vadd.f32 0.0, %v1606
    %v1608 = vpop.f32.mrf.mxu0
    %v1609 = vadd.f32 0.0, %v1608
    %1610 = vmatmul.bf16.gmra.mxu0 %v1502
    %v1611 = vpop.f32.mrf.mxu0
    %v1612 = vadd.f32 0.0, %v1611
    %v1613 = vpop.f32.mrf.mxu0
    %v1614 = vadd.f32 0.0, %v1613
    %1615 = vmatmul.bf16.gmra.mxu0 %v1503
    %v1616 = vpop.f32.mrf.mxu0
    %v1617 = vadd.f32 0.0, %v1616
    %v1618 = vpop.f32.mrf.mxu0
    %v1619 = vadd.f32 0.0, %v1618
    %1620 = vmatmul.bf16.gmra.mxu0 %v1504
    %v1621 = vpop.f32.mrf.mxu0
    %v1622 = vadd.f32 0.0, %v1621
    %v1623 = vpop.f32.mrf.mxu0
    %v1624 = vadd.f32 0.0, %v1623
    %1625 = vmatmul.bf16.gmra.mxu0 %v1505
    %v1626 = vpop.f32.mrf.mxu0
    %v1627 = vadd.f32 0.0, %v1626
    %v1628 = vpop.f32.mrf.mxu0
    %v1629 = vadd.f32 0.0, %v1628
    %1630 = vmatmul.bf16.gmra.mxu0 %v1506
    %v1631 = vpop.f32.mrf.mxu0
    %v1632 = vadd.f32 0.0, %v1631
    %v1633 = vpop.f32.mrf.mxu0
    %v1634 = vadd.f32 0.0, %v1633
    %1635 = vdwg.mxu0
    %1636 = vmatpush.bf16.msra.mxu0 %v1570
    %1637 = vmatpush.bf16.msra.mxu0 %v1568
    %1638 = vmatpush.bf16.msra.mxu0 %v1566
    %1639 = vmatpush.bf16.msra.mxu0 %v1564
    %1640 = vmatpush.bf16.msra.mxu0 %v1562
    %1641 = vmatpush.bf16.msra.mxu0 %v1560
    %1642 = vmatpush.bf16.msra.mxu0 %v1558
    %1643 = vmatpush.bf16.msra.mxu0 %v1556
    %1644 = vmatmul.bf16.gmra.mxu0 %v1499
    %v1645 = vpop.f32.mrf.mxu0
    %v1646 = vadd.f32 0.0, %v1645
    %v1647 = vpop.f32.mrf.mxu0
    %v1648 = vadd.f32 0.0, %v1647
    %1649 = vmatmul.bf16.gmra.mxu0 %v1500
    %v1650 = vpop.f32.mrf.mxu0
    %v1651 = vadd.f32 0.0, %v1650
    %v1652 = vpop.f32.mrf.mxu0
    %v1653 = vadd.f32 0.0, %v1652
    %1654 = vmatmul.bf16.gmra.mxu0 %v1501
    %v1655 = vpop.f32.mrf.mxu0
    %v1656 = vadd.f32 0.0, %v1655
    %v1657 = vpop.f32.mrf.mxu0
    %v1658 = vadd.f32 0.0, %v1657
    %1659 = vmatmul.bf16.gmra.mxu0 %v1502
    %v1660 = vpop.f32.mrf.mxu0
    %v1661 = vadd.f32 0.0, %v1660
    %v1662 = vpop.f32.mrf.mxu0
    %v1663 = vadd.f32 0.0, %v1662
    %1664 = vmatmul.bf16.gmra.mxu0 %v1503
    %v1665 = vpop.f32.mrf.mxu0
    %v1666 = vadd.f32 0.0, %v1665
    %v1667 = vpop.f32.mrf.mxu0
    %v1668 = vadd.f32 0.0, %v1667
    %1669 = vmatmul.bf16.gmra.mxu0 %v1504
    %v1670 = vpop.f32.mrf.mxu0
    %v1671 = vadd.f32 0.0, %v1670
    %v1672 = vpop.f32.mrf.mxu0
    %v1673 = vadd.f32 0.0, %v1672
    %1674 = vmatmul.bf16.gmra.mxu0 %v1505
    %v1675 = vpop.f32.mrf.mxu0
    %v1676 = vadd.f32 0.0, %v1675
    %v1677 = vpop.f32.mrf.mxu0
    %v1678 = vadd.f32 0.0, %v1677
    %1679 = vmatmul.bf16.gmra.mxu0 %v1506
    %v1680 = vpop.f32.mrf.mxu0
    %v1681 = vadd.f32 0.0, %v1680
    %v1682 = vpop.f32.mrf.mxu0
    %v1683 = vadd.f32 0.0, %v1682
    %1684 = vdwg.mxu0
    %v1686 = vperm.slane %v1497, 0
    %v1687 = vperm.slane %v1497, 1
    %v1690 = vmul.f32 %v1597, %v1686
    %v1691 = vmul.f32 %v1646, %v1687
    %v1692 = vmul.f32 %v1599, %v1686
    %v1693 = vmul.f32 %v1648, %v1687
    %v1694 = vmul.f32 %v1602, %v1686
    %v1695 = vmul.f32 %v1651, %v1687
    %v1696 = vmul.f32 %v1604, %v1686
    %v1697 = vmul.f32 %v1653, %v1687
    %v1698 = vmul.f32 %v1607, %v1686
    %v1699 = vmul.f32 %v1656, %v1687
    %v1700 = vmul.f32 %v1609, %v1686
    %v1701 = vmul.f32 %v1658, %v1687
    %v1702 = vmul.f32 %v1612, %v1686
    %v1703 = vmul.f32 %v1661, %v1687
    %v1704 = vmul.f32 %v1614, %v1686
    %v1705 = vmul.f32 %v1663, %v1687
    %v1706 = vmul.f32 %v1617, %v1686
    %v1707 = vmul.f32 %v1666, %v1687
    %v1708 = vmul.f32 %v1619, %v1686
    %v1709 = vmul.f32 %v1668, %v1687
    %v1710 = vmul.f32 %v1622, %v1686
    %v1711 = vmul.f32 %v1671, %v1687
    %v1712 = vmul.f32 %v1624, %v1686
    %v1713 = vmul.f32 %v1673, %v1687
    %v1714 = vmul.f32 %v1627, %v1686
    %v1715 = vmul.f32 %v1676, %v1687
    %v1716 = vmul.f32 %v1629, %v1686
    %v1717 = vmul.f32 %v1678, %v1687
    %v1718 = vmul.f32 %v1632, %v1686
    %v1719 = vmul.f32 %v1681, %v1687
    %v1720 = vmul.f32 %v1634, %v1686
    %v1721 = vmul.f32 %v1683, %v1687
    %v1723 = vperm.slane %v1498, 0
    %v1724 = vperm.slane %v1498, 1
    %v1727 = vadd.f32 %v1690, %v1723
    %v1728 = vadd.f32 %v1691, %v1724
    %v1729 = vadd.f32 %v1692, %v1723
    %v1730 = vadd.f32 %v1693, %v1724
    %v1731 = vadd.f32 %v1694, %v1723
    %v1732 = vadd.f32 %v1695, %v1724
    %v1733 = vadd.f32 %v1696, %v1723
    %v1734 = vadd.f32 %v1697, %v1724
    %v1735 = vadd.f32 %v1698, %v1723
    %v1736 = vadd.f32 %v1699, %v1724
    %v1737 = vadd.f32 %v1700, %v1723
    %v1738 = vadd.f32 %v1701, %v1724
    %v1739 = vadd.f32 %v1702, %v1723
    %v1740 = vadd.f32 %v1703, %v1724
    %v1741 = vadd.f32 %v1704, %v1723
    %v1742 = vadd.f32 %v1705, %v1724
    %v1743 = vadd.f32 %v1706, %v1723
    %v1744 = vadd.f32 %v1707, %v1724
    %v1745 = vadd.f32 %v1708, %v1723
    %v1746 = vadd.f32 %v1709, %v1724
    %v1747 = vadd.f32 %v1710, %v1723
    %v1748 = vadd.f32 %v1711, %v1724
    %v1749 = vadd.f32 %v1712, %v1723
    %v1750 = vadd.f32 %v1713, %v1724
    %v1751 = vadd.f32 %v1714, %v1723
    %v1752 = vadd.f32 %v1715, %v1724
    %v1753 = vadd.f32 %v1716, %v1723
    %v1754 = vadd.f32 %v1717, %v1724
    %v1755 = vadd.f32 %v1718, %v1723
    %v1756 = vadd.f32 %v1719, %v1724
    %v1757 = vadd.f32 %v1720, %v1723
    %v1758 = vadd.f32 %v1721, %v1724
    %v1759 = vmax.f32 %v1727, 0.0
    %v1760 = vmax.f32 %v1728, 0.0
    %v1761 = vmax.f32 %v1729, 0.0
    %v1762 = vmax.f32 %v1730, 0.0
    %v1763 = vmax.f32 %v1731, 0.0
    %v1764 = vmax.f32 %v1732, 0.0
    %v1765 = vmax.f32 %v1733, 0.0
    %v1766 = vmax.f32 %v1734, 0.0
    %v1767 = vmax.f32 %v1735, 0.0
    %v1768 = vmax.f32 %v1736, 0.0
    %v1769 = vmax.f32 %v1737, 0.0
    %v1770 = vmax.f32 %v1738, 0.0
    %v1771 = vmax.f32 %v1739, 0.0
    %v1772 = vmax.f32 %v1740, 0.0
    %v1773 = vmax.f32 %v1741, 0.0
    %v1774 = vmax.f32 %v1742, 0.0
    %v1775 = vmax.f32 %v1743, 0.0
    %v1776 = vmax.f32 %v1744, 0.0
    %v1777 = vmax.f32 %v1745, 0.0
    %v1778 = vmax.f32 %v1746, 0.0
    %v1779 = vmax.f32 %v1747, 0.0
    %v1780 = vmax.f32 %v1748, 0.0
    %v1781 = vmax.f32 %v1749, 0.0
    %v1782 = vmax.f32 %v1750, 0.0
    %v1783 = vmax.f32 %v1751, 0.0
    %v1784 = vmax.f32 %v1752, 0.0
    %v1785 = vmax.f32 %v1753, 0.0
    %v1786 = vmax.f32 %v1754, 0.0
    %v1787 = vmax.f32 %v1755, 0.0
    %v1788 = vmax.f32 %v1756, 0.0
    %v1789 = vmax.f32 %v1757, 0.0
    %v1790 = vmax.f32 %v1758, 0.0
    %v1791 = vld [vmem:[#allocation26] sm:$0xff]
    %v1792 = vld [vmem:[#allocation26 + $0x8] sm:$0xff]
    %v1793 = vld [vmem:[#allocation26 + $0x10] sm:$0xff]
    %v1794 = vld [vmem:[#allocation26 + $0x18] sm:$0xff]
    %v1795 = vld [vmem:[#allocation26 + $0x20] sm:$0xff]
    %v1796 = vld [vmem:[#allocation26 + $0x28] sm:$0xff]
    %v1797 = vld [vmem:[#allocation26 + $0x30] sm:$0xff]
    %v1798 = vld [vmem:[#allocation26 + $0x38] sm:$0xff]
    %v1799 = vld [vmem:[#allocation26 + $0x40] sm:$0xff]
    %v1800 = vld [vmem:[#allocation26 + $0x48] sm:$0xff]
    %v1801 = vld [vmem:[#allocation26 + $0x50] sm:$0xff]
    %v1802 = vld [vmem:[#allocation26 + $0x58] sm:$0xff]
    %v1803 = vld [vmem:[#allocation26 + $0x60] sm:$0xff]
    %v1804 = vld [vmem:[#allocation26 + $0x68] sm:$0xff]
    %v1805 = vld [vmem:[#allocation26 + $0x70] sm:$0xff]
    %v1806 = vld [vmem:[#allocation26 + $0x78] sm:$0xff]
    %v1807 = vld [vmem:[#allocation26 + $0x80] sm:$0xff]
    %v1808 = vld [vmem:[#allocation26 + $0x88] sm:$0xff]
    %v1809 = vld [vmem:[#allocation26 + $0x90] sm:$0xff]
    %v1810 = vld [vmem:[#allocation26 + $0x98] sm:$0xff]
    %v1811 = vld [vmem:[#allocation26 + $0xa0] sm:$0xff]
    %v1812 = vld [vmem:[#allocation26 + $0xa8] sm:$0xff]
    %v1813 = vld [vmem:[#allocation26 + $0xb0] sm:$0xff]
    %v1814 = vld [vmem:[#allocation26 + $0xb8] sm:$0xff]
    %v1815 = vld [vmem:[#allocation26 + $0xc0] sm:$0xff]
    %v1816 = vld [vmem:[#allocation26 + $0xc8] sm:$0xff]
    %v1817 = vld [vmem:[#allocation26 + $0xd0] sm:$0xff]
    %v1818 = vld [vmem:[#allocation26 + $0xd8] sm:$0xff]
    %v1819 = vld [vmem:[#allocation26 + $0xe0] sm:$0xff]
    %v1820 = vld [vmem:[#allocation26 + $0xe8] sm:$0xff]
    %v1821 = vld [vmem:[#allocation26 + $0xf0] sm:$0xff]
    %v1822 = vld [vmem:[#allocation26 + $0xf8] sm:$0xff]
    %v1823 = vld [vmem:[#allocation26 + $0x100] sm:$0xff]
    %v1824 = vld [vmem:[#allocation26 + $0x108] sm:$0xff]
    %v1825 = vld [vmem:[#allocation26 + $0x110] sm:$0xff]
    %v1826 = vld [vmem:[#allocation26 + $0x118] sm:$0xff]
    %v1827 = vld [vmem:[#allocation26 + $0x120] sm:$0xff]
    %v1828 = vld [vmem:[#allocation26 + $0x128] sm:$0xff]
    %v1829 = vld [vmem:[#allocation26 + $0x130] sm:$0xff]
    %v1830 = vld [vmem:[#allocation26 + $0x138] sm:$0xff]
    %v1831 = vld [vmem:[#allocation26 + $0x140] sm:$0xff]
    %v1832 = vld [vmem:[#allocation26 + $0x148] sm:$0xff]
    %v1833 = vld [vmem:[#allocation26 + $0x150] sm:$0xff]
    %v1834 = vld [vmem:[#allocation26 + $0x158] sm:$0xff]
    %v1835 = vld [vmem:[#allocation26 + $0x160] sm:$0xff]
    %v1836 = vld [vmem:[#allocation26 + $0x168] sm:$0xff]
    %v1837 = vld [vmem:[#allocation26 + $0x170] sm:$0xff]
    %v1838 = vld [vmem:[#allocation26 + $0x178] sm:$0xff]
    %v1839 = vld [vmem:[#allocation26 + $0x180] sm:$0xff]
    %v1840 = vld [vmem:[#allocation26 + $0x188] sm:$0xff]
    %v1841 = vld [vmem:[#allocation26 + $0x190] sm:$0xff]
    %v1842 = vld [vmem:[#allocation26 + $0x198] sm:$0xff]
    %v1843 = vld [vmem:[#allocation26 + $0x1a0] sm:$0xff]
    %v1844 = vld [vmem:[#allocation26 + $0x1a8] sm:$0xff]
    %v1845 = vld [vmem:[#allocation26 + $0x1b0] sm:$0xff]
    %v1846 = vld [vmem:[#allocation26 + $0x1b8] sm:$0xff]
    %v1847 = vld [vmem:[#allocation26 + $0x1c0] sm:$0xff]
    %v1848 = vld [vmem:[#allocation26 + $0x1c8] sm:$0xff]
    %v1849 = vld [vmem:[#allocation26 + $0x1d0] sm:$0xff]
    %v1850 = vld [vmem:[#allocation26 + $0x1d8] sm:$0xff]
    %v1851 = vld [vmem:[#allocation26 + $0x1e0] sm:$0xff]
    %v1852 = vld [vmem:[#allocation26 + $0x1e8] sm:$0xff]
    %v1853 = vld [vmem:[#allocation26 + $0x1f0] sm:$0xff]
    %v1854 = vld [vmem:[#allocation26 + $0x1f8] sm:$0xff]
    %v1855 = vld [vmem:[%s20] sm:$0xf]
    %v1856 = vld [vmem:[%s21] sm:$0xf]
    %v1857 = vpack.c.bf16 %v1761, %v1759
    %v1858 = vpack.c.bf16 %v1762, %v1760
    %v1859 = vpack.c.bf16 %v1765, %v1763
    %v1860 = vpack.c.bf16 %v1766, %v1764
    %v1861 = vpack.c.bf16 %v1769, %v1767
    %v1862 = vpack.c.bf16 %v1770, %v1768
    %v1863 = vpack.c.bf16 %v1773, %v1771
    %v1864 = vpack.c.bf16 %v1774, %v1772
    %v1865 = vpack.c.bf16 %v1777, %v1775
    %v1866 = vpack.c.bf16 %v1778, %v1776
    %v1867 = vpack.c.bf16 %v1781, %v1779
    %v1868 = vpack.c.bf16 %v1782, %v1780
    %v1869 = vpack.c.bf16 %v1785, %v1783
    %v1870 = vpack.c.bf16 %v1786, %v1784
    %v1871 = vpack.c.bf16 %v1789, %v1787
    %v1872 = vpack.c.bf16 %v1790, %v1788
    %v1937 = vunpack.c.l.b16 %v1791
    %v1938 = vunpack.c.h.b16 %v1791
    %v1939 = vunpack.c.l.b16 %v1792
    %v1940 = vunpack.c.h.b16 %v1792
    %v1941 = vunpack.c.l.b16 %v1793
    %v1942 = vunpack.c.h.b16 %v1793
    %v1943 = vunpack.c.l.b16 %v1794
    %v1944 = vunpack.c.h.b16 %v1794
    %v1945 = vunpack.c.l.b16 %v1795
    %v1946 = vunpack.c.h.b16 %v1795
    %v1947 = vunpack.c.l.b16 %v1796
    %v1948 = vunpack.c.h.b16 %v1796
    %v1949 = vunpack.c.l.b16 %v1797
    %v1950 = vunpack.c.h.b16 %v1797
    %v1951 = vunpack.c.l.b16 %v1798
    %v1952 = vunpack.c.h.b16 %v1798
    %v1953 = vunpack.c.l.b16 %v1799
    %v1954 = vunpack.c.h.b16 %v1799
    %v1955 = vunpack.c.l.b16 %v1800
    %v1956 = vunpack.c.h.b16 %v1800
    %v1957 = vunpack.c.l.b16 %v1801
    %v1958 = vunpack.c.h.b16 %v1801
    %v1959 = vunpack.c.l.b16 %v1802
    %v1960 = vunpack.c.h.b16 %v1802
    %v1961 = vunpack.c.l.b16 %v1803
    %v1962 = vunpack.c.h.b16 %v1803
    %v1963 = vunpack.c.l.b16 %v1804
    %v1964 = vunpack.c.h.b16 %v1804
    %v1965 = vunpack.c.l.b16 %v1805
    %v1966 = vunpack.c.h.b16 %v1805
    %v1967 = vunpack.c.l.b16 %v1806
    %v1968 = vunpack.c.h.b16 %v1806
    %v1969 = vunpack.c.l.b16 %v1807
    %v1970 = vunpack.c.h.b16 %v1807
    %v1971 = vunpack.c.l.b16 %v1808
    %v1972 = vunpack.c.h.b16 %v1808
    %v1973 = vunpack.c.l.b16 %v1809
    %v1974 = vunpack.c.h.b16 %v1809
    %v1975 = vunpack.c.l.b16 %v1810
    %v1976 = vunpack.c.h.b16 %v1810
    %v1977 = vunpack.c.l.b16 %v1811
    %v1978 = vunpack.c.h.b16 %v1811
    %v1979 = vunpack.c.l.b16 %v1812
    %v1980 = vunpack.c.h.b16 %v1812
    %v1981 = vunpack.c.l.b16 %v1813
    %v1982 = vunpack.c.h.b16 %v1813
    %v1983 = vunpack.c.l.b16 %v1814
    %v1984 = vunpack.c.h.b16 %v1814
    %v1985 = vunpack.c.l.b16 %v1815
    %v1986 = vunpack.c.h.b16 %v1815
    %v1987 = vunpack.c.l.b16 %v1816
    %v1988 = vunpack.c.h.b16 %v1816
    %v1989 = vunpack.c.l.b16 %v1817
    %v1990 = vunpack.c.h.b16 %v1817
    %v1991 = vunpack.c.l.b16 %v1818
    %v1992 = vunpack.c.h.b16 %v1818
    %v1993 = vunpack.c.l.b16 %v1819
    %v1994 = vunpack.c.h.b16 %v1819
    %v1995 = vunpack.c.l.b16 %v1820
    %v1996 = vunpack.c.h.b16 %v1820
    %v1997 = vunpack.c.l.b16 %v1821
    %v1998 = vunpack.c.h.b16 %v1821
    %v1999 = vunpack.c.l.b16 %v1822
    %v2000 = vunpack.c.h.b16 %v1822
    %v2001 = vunpack.c.l.b16 %v1823
    %v2002 = vunpack.c.h.b16 %v1823
    %v2003 = vunpack.c.l.b16 %v1824
    %v2004 = vunpack.c.h.b16 %v1824
    %v2005 = vunpack.c.l.b16 %v1825
    %v2006 = vunpack.c.h.b16 %v1825
    %v2007 = vunpack.c.l.b16 %v1826
    %v2008 = vunpack.c.h.b16 %v1826
    %v2009 = vunpack.c.l.b16 %v1827
    %v2010 = vunpack.c.h.b16 %v1827
    %v2011 = vunpack.c.l.b16 %v1828
    %v2012 = vunpack.c.h.b16 %v1828
    %v2013 = vunpack.c.l.b16 %v1829
    %v2014 = vunpack.c.h.b16 %v1829
    %v2015 = vunpack.c.l.b16 %v1830
    %v2016 = vunpack.c.h.b16 %v1830
    %v2017 = vunpack.c.l.b16 %v1831
    %v2018 = vunpack.c.h.b16 %v1831
    %v2019 = vunpack.c.l.b16 %v1832
    %v2020 = vunpack.c.h.b16 %v1832
    %v2021 = vunpack.c.l.b16 %v1833
    %v2022 = vunpack.c.h.b16 %v1833
    %v2023 = vunpack.c.l.b16 %v1834
    %v2024 = vunpack.c.h.b16 %v1834
    %v2025 = vunpack.c.l.b16 %v1835
    %v2026 = vunpack.c.h.b16 %v1835
    %v2027 = vunpack.c.l.b16 %v1836
    %v2028 = vunpack.c.h.b16 %v1836
    %v2029 = vunpack.c.l.b16 %v1837
    %v2030 = vunpack.c.h.b16 %v1837
    %v2031 = vunpack.c.l.b16 %v1838
    %v2032 = vunpack.c.h.b16 %v1838
    %v2033 = vunpack.c.l.b16 %v1839
    %v2034 = vunpack.c.h.b16 %v1839
    %v2035 = vunpack.c.l.b16 %v1840
    %v2036 = vunpack.c.h.b16 %v1840
    %v2037 = vunpack.c.l.b16 %v1841
    %v2038 = vunpack.c.h.b16 %v1841
    %v2039 = vunpack.c.l.b16 %v1842
    %v2040 = vunpack.c.h.b16 %v1842
    %v2041 = vunpack.c.l.b16 %v1843
    %v2042 = vunpack.c.h.b16 %v1843
    %v2043 = vunpack.c.l.b16 %v1844
    %v2044 = vunpack.c.h.b16 %v1844
    %v2045 = vunpack.c.l.b16 %v1845
    %v2046 = vunpack.c.h.b16 %v1845
    %v2047 = vunpack.c.l.b16 %v1846
    %v2048 = vunpack.c.h.b16 %v1846
    %v2049 = vunpack.c.l.b16 %v1847
    %v2050 = vunpack.c.h.b16 %v1847
    %v2051 = vunpack.c.l.b16 %v1848
    %v2052 = vunpack.c.h.b16 %v1848
    %v2053 = vunpack.c.l.b16 %v1849
    %v2054 = vunpack.c.h.b16 %v1849
    %v2055 = vunpack.c.l.b16 %v1850
    %v2056 = vunpack.c.h.b16 %v1850
    %v2057 = vunpack.c.l.b16 %v1851
    %v2058 = vunpack.c.h.b16 %v1851
    %v2059 = vunpack.c.l.b16 %v1852
    %v2060 = vunpack.c.h.b16 %v1852
    %v2061 = vunpack.c.l.b16 %v1853
    %v2062 = vunpack.c.h.b16 %v1853
    %v2063 = vunpack.c.l.b16 %v1854
    %v2064 = vunpack.c.h.b16 %v1854
    %v2065 = vpack.c.b16 %v1941, %v1937
    %v2066 = vpack.c.b16 %v1942, %v1938
    %v2067 = vpack.c.b16 %v1943, %v1939
    %v2068 = vpack.c.b16 %v1944, %v1940
    %v2069 = vpack.c.b16 %v1949, %v1945
    %v2070 = vpack.c.b16 %v1950, %v1946
    %v2071 = vpack.c.b16 %v1951, %v1947
    %v2072 = vpack.c.b16 %v1952, %v1948
    %v2073 = vpack.c.b16 %v1957, %v1953
    %v2074 = vpack.c.b16 %v1958, %v1954
    %v2075 = vpack.c.b16 %v1959, %v1955
    %v2076 = vpack.c.b16 %v1960, %v1956
    %v2077 = vpack.c.b16 %v1965, %v1961
    %v2078 = vpack.c.b16 %v1966, %v1962
    %v2079 = vpack.c.b16 %v1967, %v1963
    %v2080 = vpack.c.b16 %v1968, %v1964
    %v2081 = vpack.c.b16 %v1973, %v1969
    %v2082 = vpack.c.b16 %v1974, %v1970
    %v2083 = vpack.c.b16 %v1975, %v1971
    %v2084 = vpack.c.b16 %v1976, %v1972
    %v2085 = vpack.c.b16 %v1981, %v1977
    %v2086 = vpack.c.b16 %v1982, %v1978
    %v2087 = vpack.c.b16 %v1983, %v1979
    %v2088 = vpack.c.b16 %v1984, %v1980
    %v2089 = vpack.c.b16 %v1989, %v1985
    %v2090 = vpack.c.b16 %v1990, %v1986
    %v2091 = vpack.c.b16 %v1991, %v1987
    %v2092 = vpack.c.b16 %v1992, %v1988
    %v2093 = vpack.c.b16 %v1997, %v1993
    %v2094 = vpack.c.b16 %v1998, %v1994
    %v2095 = vpack.c.b16 %v1999, %v1995
    %v2096 = vpack.c.b16 %v2000, %v1996
    %v2097 = vpack.c.b16 %v2005, %v2001
    %v2098 = vpack.c.b16 %v2006, %v2002
    %v2099 = vpack.c.b16 %v2007, %v2003
    %v2100 = vpack.c.b16 %v2008, %v2004
    %v2101 = vpack.c.b16 %v2013, %v2009
    %v2102 = vpack.c.b16 %v2014, %v2010
    %v2103 = vpack.c.b16 %v2015, %v2011
    %v2104 = vpack.c.b16 %v2016, %v2012
    %v2105 = vpack.c.b16 %v2021, %v2017
    %v2106 = vpack.c.b16 %v2022, %v2018
    %v2107 = vpack.c.b16 %v2023, %v2019
    %v2108 = vpack.c.b16 %v2024, %v2020
    %v2109 = vpack.c.b16 %v2029, %v2025
    %v2110 = vpack.c.b16 %v2030, %v2026
    %v2111 = vpack.c.b16 %v2031, %v2027
    %v2112 = vpack.c.b16 %v2032, %v2028
    %v2113 = vpack.c.b16 %v2037, %v2033
    %v2114 = vpack.c.b16 %v2038, %v2034
    %v2115 = vpack.c.b16 %v2039, %v2035
    %v2116 = vpack.c.b16 %v2040, %v2036
    %v2117 = vpack.c.b16 %v2045, %v2041
    %v2118 = vpack.c.b16 %v2046, %v2042
    %v2119 = vpack.c.b16 %v2047, %v2043
    %v2120 = vpack.c.b16 %v2048, %v2044
    %v2121 = vpack.c.b16 %v2053, %v2049
    %v2122 = vpack.c.b16 %v2054, %v2050
    %v2123 = vpack.c.b16 %v2055, %v2051
    %v2124 = vpack.c.b16 %v2056, %v2052
    %v2125 = vpack.c.b16 %v2061, %v2057
    %v2126 = vpack.c.b16 %v2062, %v2058
    %v2127 = vpack.c.b16 %v2063, %v2059
    %v2128 = vpack.c.b16 %v2064, %v2060
    %2193 = vmatpush.bf16.msra.mxu0 %v2093
    %2194 = vmatpush.bf16.msra.mxu0 %v2089
    %2195 = vmatpush.bf16.msra.mxu0 %v2085
    %2196 = vmatpush.bf16.msra.mxu0 %v2081
    %2197 = vmatpush.bf16.msra.mxu0 %v2077
    %2198 = vmatpush.bf16.msra.mxu0 %v2073
    %2199 = vmatpush.bf16.msra.mxu0 %v2069
    %2200 = vmatpush.bf16.msra.mxu0 %v2065
    %2201 = vmatmul.bf16.gmra.mxu0 %v1857
    %v2202 = vpop.f32.mrf.mxu0
    %v2203 = vadd.f32 0.0, %v2202
    %v2204 = vpop.f32.mrf.mxu0
    %v2205 = vadd.f32 0.0, %v2204
    %2206 = vmatmul.bf16.gmra.mxu0 %v1859
    %v2207 = vpop.f32.mrf.mxu0
    %v2208 = vadd.f32 0.0, %v2207
    %v2209 = vpop.f32.mrf.mxu0
    %v2210 = vadd.f32 0.0, %v2209
    %2211 = vmatmul.bf16.gmra.mxu0 %v1861
    %v2212 = vpop.f32.mrf.mxu0
    %v2213 = vadd.f32 0.0, %v2212
    %v2214 = vpop.f32.mrf.mxu0
    %v2215 = vadd.f32 0.0, %v2214
    %2216 = vmatmul.bf16.gmra.mxu0 %v1863
    %v2217 = vpop.f32.mrf.mxu0
    %v2218 = vadd.f32 0.0, %v2217
    %v2219 = vpop.f32.mrf.mxu0
    %v2220 = vadd.f32 0.0, %v2219
    %2221 = vmatmul.bf16.gmra.mxu0 %v1865
    %v2222 = vpop.f32.mrf.mxu0
    %v2223 = vadd.f32 0.0, %v2222
    %v2224 = vpop.f32.mrf.mxu0
    %v2225 = vadd.f32 0.0, %v2224
    %2226 = vmatmul.bf16.gmra.mxu0 %v1867
    %v2227 = vpop.f32.mrf.mxu0
    %v2228 = vadd.f32 0.0, %v2227
    %v2229 = vpop.f32.mrf.mxu0
    %v2230 = vadd.f32 0.0, %v2229
    %2231 = vmatmul.bf16.gmra.mxu0 %v1869
    %v2232 = vpop.f32.mrf.mxu0
    %v2233 = vadd.f32 0.0, %v2232
    %v2234 = vpop.f32.mrf.mxu0
    %v2235 = vadd.f32 0.0, %v2234
    %2236 = vmatmul.bf16.gmra.mxu0 %v1871
    %v2237 = vpop.f32.mrf.mxu0
    %v2238 = vadd.f32 0.0, %v2237
    %v2239 = vpop.f32.mrf.mxu0
    %v2240 = vadd.f32 0.0, %v2239
    %2241 = vdwg.mxu0
    %2242 = vmatpush.bf16.msra.mxu0 %v2125
    %2243 = vmatpush.bf16.msra.mxu0 %v2121
    %2244 = vmatpush.bf16.msra.mxu0 %v2117
    %2245 = vmatpush.bf16.msra.mxu0 %v2113
    %2246 = vmatpush.bf16.msra.mxu0 %v2109
    %2247 = vmatpush.bf16.msra.mxu0 %v2105
    %2248 = vmatpush.bf16.msra.mxu0 %v2101
    %2249 = vmatpush.bf16.msra.mxu0 %v2097
    %2250 = vmatmul.bf16.gmra.mxu0 %v1858
    %v2251 = vpop.f32.mrf.mxu0
    %v2252 = vadd.f32 %v2203, %v2251
    %v2253 = vpop.f32.mrf.mxu0
    %v2254 = vadd.f32 %v2205, %v2253
    %2255 = vmatmul.bf16.gmra.mxu0 %v1860
    %v2256 = vpop.f32.mrf.mxu0
    %v2257 = vadd.f32 %v2208, %v2256
    %v2258 = vpop.f32.mrf.mxu0
    %v2259 = vadd.f32 %v2210, %v2258
    %2260 = vmatmul.bf16.gmra.mxu0 %v1862
    %v2261 = vpop.f32.mrf.mxu0
    %v2262 = vadd.f32 %v2213, %v2261
    %v2263 = vpop.f32.mrf.mxu0
    %v2264 = vadd.f32 %v2215, %v2263
    %2265 = vmatmul.bf16.gmra.mxu0 %v1864
    %v2266 = vpop.f32.mrf.mxu0
    %v2267 = vadd.f32 %v2218, %v2266
    %v2268 = vpop.f32.mrf.mxu0
    %v2269 = vadd.f32 %v2220, %v2268
    %2270 = vmatmul.bf16.gmra.mxu0 %v1866
    %v2271 = vpop.f32.mrf.mxu0
    %v2272 = vadd.f32 %v2223, %v2271
    %v2273 = vpop.f32.mrf.mxu0
    %v2274 = vadd.f32 %v2225, %v2273
    %2275 = vmatmul.bf16.gmra.mxu0 %v1868
    %v2276 = vpop.f32.mrf.mxu0
    %v2277 = vadd.f32 %v2228, %v2276
    %v2278 = vpop.f32.mrf.mxu0
    %v2279 = vadd.f32 %v2230, %v2278
    %2280 = vmatmul.bf16.gmra.mxu0 %v1870
    %v2281 = vpop.f32.mrf.mxu0
    %v2282 = vadd.f32 %v2233, %v2281
    %v2283 = vpop.f32.mrf.mxu0
    %v2284 = vadd.f32 %v2235, %v2283
    %2285 = vmatmul.bf16.gmra.mxu0 %v1872
    %v2286 = vpop.f32.mrf.mxu0
    %v2287 = vadd.f32 %v2238, %v2286
    %v2288 = vpop.f32.mrf.mxu0
    %v2289 = vadd.f32 %v2240, %v2288
    %2290 = vdwg.mxu0
    %2291 = vmatpush.bf16.msra.mxu0 %v2094
    %2292 = vmatpush.bf16.msra.mxu0 %v2090
    %2293 = vmatpush.bf16.msra.mxu0 %v2086
    %2294 = vmatpush.bf16.msra.mxu0 %v2082
    %2295 = vmatpush.bf16.msra.mxu0 %v2078
    %2296 = vmatpush.bf16.msra.mxu0 %v2074
    %2297 = vmatpush.bf16.msra.mxu0 %v2070
    %2298 = vmatpush.bf16.msra.mxu0 %v2066
    %2299 = vmatmul.bf16.gmra.mxu0 %v1857
    %v2300 = vpop.f32.mrf.mxu0
    %v2301 = vadd.f32 0.0, %v2300
    %v2302 = vpop.f32.mrf.mxu0
    %v2303 = vadd.f32 0.0, %v2302
    %2304 = vmatmul.bf16.gmra.mxu0 %v1859
    %v2305 = vpop.f32.mrf.mxu0
    %v2306 = vadd.f32 0.0, %v2305
    %v2307 = vpop.f32.mrf.mxu0
    %v2308 = vadd.f32 0.0, %v2307
    %2309 = vmatmul.bf16.gmra.mxu0 %v1861
    %v2310 = vpop.f32.mrf.mxu0
    %v2311 = vadd.f32 0.0, %v2310
    %v2312 = vpop.f32.mrf.mxu0
    %v2313 = vadd.f32 0.0, %v2312
    %2314 = vmatmul.bf16.gmra.mxu0 %v1863
    %v2315 = vpop.f32.mrf.mxu0
    %v2316 = vadd.f32 0.0, %v2315
    %v2317 = vpop.f32.mrf.mxu0
    %v2318 = vadd.f32 0.0, %v2317
    %2319 = vmatmul.bf16.gmra.mxu0 %v1865
    %v2320 = vpop.f32.mrf.mxu0
    %v2321 = vadd.f32 0.0, %v2320
    %v2322 = vpop.f32.mrf.mxu0
    %v2323 = vadd.f32 0.0, %v2322
    %2324 = vmatmul.bf16.gmra.mxu0 %v1867
    %v2325 = vpop.f32.mrf.mxu0
    %v2326 = vadd.f32 0.0, %v2325
    %v2327 = vpop.f32.mrf.mxu0
    %v2328 = vadd.f32 0.0, %v2327
    %2329 = vmatmul.bf16.gmra.mxu0 %v1869
    %v2330 = vpop.f32.mrf.mxu0
    %v2331 = vadd.f32 0.0, %v2330
    %v2332 = vpop.f32.mrf.mxu0
    %v2333 = vadd.f32 0.0, %v2332
    %2334 = vmatmul.bf16.gmra.mxu0 %v1871
    %v2335 = vpop.f32.mrf.mxu0
    %v2336 = vadd.f32 0.0, %v2335
    %v2337 = vpop.f32.mrf.mxu0
    %v2338 = vadd.f32 0.0, %v2337
    %2339 = vdwg.mxu0
    %2340 = vmatpush.bf16.msra.mxu0 %v2126
    %2341 = vmatpush.bf16.msra.mxu0 %v2122
    %2342 = vmatpush.bf16.msra.mxu0 %v2118
    %2343 = vmatpush.bf16.msra.mxu0 %v2114
    %2344 = vmatpush.bf16.msra.mxu0 %v2110
    %2345 = vmatpush.bf16.msra.mxu0 %v2106
    %2346 = vmatpush.bf16.msra.mxu0 %v2102
    %2347 = vmatpush.bf16.msra.mxu0 %v2098
    %2348 = vmatmul.bf16.gmra.mxu0 %v1858
    %v2349 = vpop.f32.mrf.mxu0
    %v2350 = vadd.f32 %v2301, %v2349
    %v2351 = vpop.f32.mrf.mxu0
    %v2352 = vadd.f32 %v2303, %v2351
    %2353 = vmatmul.bf16.gmra.mxu0 %v1860
    %v2354 = vpop.f32.mrf.mxu0
    %v2355 = vadd.f32 %v2306, %v2354
    %v2356 = vpop.f32.mrf.mxu0
    %v2357 = vadd.f32 %v2308, %v2356
    %2358 = vmatmul.bf16.gmra.mxu0 %v1862
    %v2359 = vpop.f32.mrf.mxu0
    %v2360 = vadd.f32 %v2311, %v2359
    %v2361 = vpop.f32.mrf.mxu0
    %v2362 = vadd.f32 %v2313, %v2361
    %2363 = vmatmul.bf16.gmra.mxu0 %v1864
    %v2364 = vpop.f32.mrf.mxu0
    %v2365 = vadd.f32 %v2316, %v2364
    %v2366 = vpop.f32.mrf.mxu0
    %v2367 = vadd.f32 %v2318, %v2366
    %2368 = vmatmul.bf16.gmra.mxu0 %v1866
    %v2369 = vpop.f32.mrf.mxu0
    %v2370 = vadd.f32 %v2321, %v2369
    %v2371 = vpop.f32.mrf.mxu0
    %v2372 = vadd.f32 %v2323, %v2371
    %2373 = vmatmul.bf16.gmra.mxu0 %v1868
    %v2374 = vpop.f32.mrf.mxu0
    %v2375 = vadd.f32 %v2326, %v2374
    %v2376 = vpop.f32.mrf.mxu0
    %v2377 = vadd.f32 %v2328, %v2376
    %2378 = vmatmul.bf16.gmra.mxu0 %v1870
    %v2379 = vpop.f32.mrf.mxu0
    %v2380 = vadd.f32 %v2331, %v2379
    %v2381 = vpop.f32.mrf.mxu0
    %v2382 = vadd.f32 %v2333, %v2381
    %2383 = vmatmul.bf16.gmra.mxu0 %v1872
    %v2384 = vpop.f32.mrf.mxu0
    %v2385 = vadd.f32 %v2336, %v2384
    %v2386 = vpop.f32.mrf.mxu0
    %v2387 = vadd.f32 %v2338, %v2386
    %2388 = vdwg.mxu0
    %2389 = vmatpush.bf16.msra.mxu0 %v2095
    %2390 = vmatpush.bf16.msra.mxu0 %v2091
    %2391 = vmatpush.bf16.msra.mxu0 %v2087
    %2392 = vmatpush.bf16.msra.mxu0 %v2083
    %2393 = vmatpush.bf16.msra.mxu0 %v2079
    %2394 = vmatpush.bf16.msra.mxu0 %v2075
    %2395 = vmatpush.bf16.msra.mxu0 %v2071
    %2396 = vmatpush.bf16.msra.mxu0 %v2067
    %2397 = vmatmul.bf16.gmra.mxu0 %v1857
    %v2398 = vpop.f32.mrf.mxu0
    %v2399 = vadd.f32 0.0, %v2398
    %v2400 = vpop.f32.mrf.mxu0
    %v2401 = vadd.f32 0.0, %v2400
    %2402 = vmatmul.bf16.gmra.mxu0 %v1859
    %v2403 = vpop.f32.mrf.mxu0
    %v2404 = vadd.f32 0.0, %v2403
    %v2405 = vpop.f32.mrf.mxu0
    %v2406 = vadd.f32 0.0, %v2405
    %2407 = vmatmul.bf16.gmra.mxu0 %v1861
    %v2408 = vpop.f32.mrf.mxu0
    %v2409 = vadd.f32 0.0, %v2408
    %v2410 = vpop.f32.mrf.mxu0
    %v2411 = vadd.f32 0.0, %v2410
    %2412 = vmatmul.bf16.gmra.mxu0 %v1863
    %v2413 = vpop.f32.mrf.mxu0
    %v2414 = vadd.f32 0.0, %v2413
    %v2415 = vpop.f32.mrf.mxu0
    %v2416 = vadd.f32 0.0, %v2415
    %2417 = vmatmul.bf16.gmra.mxu0 %v1865
    %v2418 = vpop.f32.mrf.mxu0
    %v2419 = vadd.f32 0.0, %v2418
    %v2420 = vpop.f32.mrf.mxu0
    %v2421 = vadd.f32 0.0, %v2420
    %2422 = vmatmul.bf16.gmra.mxu0 %v1867
    %v2423 = vpop.f32.mrf.mxu0
    %v2424 = vadd.f32 0.0, %v2423
    %v2425 = vpop.f32.mrf.mxu0
    %v2426 = vadd.f32 0.0, %v2425
    %2427 = vmatmul.bf16.gmra.mxu0 %v1869
    %v2428 = vpop.f32.mrf.mxu0
    %v2429 = vadd.f32 0.0, %v2428
    %v2430 = vpop.f32.mrf.mxu0
    %v2431 = vadd.f32 0.0, %v2430
    %2432 = vmatmul.bf16.gmra.mxu0 %v1871
    %v2433 = vpop.f32.mrf.mxu0
    %v2434 = vadd.f32 0.0, %v2433
    %v2435 = vpop.f32.mrf.mxu0
    %v2436 = vadd.f32 0.0, %v2435
    %2437 = vdwg.mxu0
    %2438 = vmatpush.bf16.msra.mxu0 %v2127
    %2439 = vmatpush.bf16.msra.mxu0 %v2123
    %2440 = vmatpush.bf16.msra.mxu0 %v2119
    %2441 = vmatpush.bf16.msra.mxu0 %v2115
    %2442 = vmatpush.bf16.msra.mxu0 %v2111
    %2443 = vmatpush.bf16.msra.mxu0 %v2107
    %2444 = vmatpush.bf16.msra.mxu0 %v2103
    %2445 = vmatpush.bf16.msra.mxu0 %v2099
    %2446 = vmatmul.bf16.gmra.mxu0 %v1858
    %v2447 = vpop.f32.mrf.mxu0
    %v2448 = vadd.f32 %v2399, %v2447
    %v2449 = vpop.f32.mrf.mxu0
    %v2450 = vadd.f32 %v2401, %v2449
    %2451 = vmatmul.bf16.gmra.mxu0 %v1860
    %v2452 = vpop.f32.mrf.mxu0
    %v2453 = vadd.f32 %v2404, %v2452
    %v2454 = vpop.f32.mrf.mxu0
    %v2455 = vadd.f32 %v2406, %v2454
    %2456 = vmatmul.bf16.gmra.mxu0 %v1862
    %v2457 = vpop.f32.mrf.mxu0
    %v2458 = vadd.f32 %v2409, %v2457
    %v2459 = vpop.f32.mrf.mxu0
    %v2460 = vadd.f32 %v2411, %v2459
    %2461 = vmatmul.bf16.gmra.mxu0 %v1864
    %v2462 = vpop.f32.mrf.mxu0
    %v2463 = vadd.f32 %v2414, %v2462
    %v2464 = vpop.f32.mrf.mxu0
    %v2465 = vadd.f32 %v2416, %v2464
    %2466 = vmatmul.bf16.gmra.mxu0 %v1866
    %v2467 = vpop.f32.mrf.mxu0
    %v2468 = vadd.f32 %v2419, %v2467
    %v2469 = vpop.f32.mrf.mxu0
    %v2470 = vadd.f32 %v2421, %v2469
    %2471 = vmatmul.bf16.gmra.mxu0 %v1868
    %v2472 = vpop.f32.mrf.mxu0
    %v2473 = vadd.f32 %v2424, %v2472
    %v2474 = vpop.f32.mrf.mxu0
    %v2475 = vadd.f32 %v2426, %v2474
    %2476 = vmatmul.bf16.gmra.mxu0 %v1870
    %v2477 = vpop.f32.mrf.mxu0
    %v2478 = vadd.f32 %v2429, %v2477
    %v2479 = vpop.f32.mrf.mxu0
    %v2480 = vadd.f32 %v2431, %v2479
    %2481 = vmatmul.bf16.gmra.mxu0 %v1872
    %v2482 = vpop.f32.mrf.mxu0
    %v2483 = vadd.f32 %v2434, %v2482
    %v2484 = vpop.f32.mrf.mxu0
    %v2485 = vadd.f32 %v2436, %v2484
    %2486 = vdwg.mxu0
    %2487 = vmatpush.bf16.msra.mxu0 %v2096
    %2488 = vmatpush.bf16.msra.mxu0 %v2092
    %2489 = vmatpush.bf16.msra.mxu0 %v2088
    %2490 = vmatpush.bf16.msra.mxu0 %v2084
    %2491 = vmatpush.bf16.msra.mxu0 %v2080
    %2492 = vmatpush.bf16.msra.mxu0 %v2076
    %2493 = vmatpush.bf16.msra.mxu0 %v2072
    %2494 = vmatpush.bf16.msra.mxu0 %v2068
    %2495 = vmatmul.bf16.gmra.mxu0 %v1857
    %v2496 = vpop.f32.mrf.mxu0
    %v2497 = vadd.f32 0.0, %v2496
    %v2498 = vpop.f32.mrf.mxu0
    %v2499 = vadd.f32 0.0, %v2498
    %2500 = vmatmul.bf16.gmra.mxu0 %v1859
    %v2501 = vpop.f32.mrf.mxu0
    %v2502 = vadd.f32 0.0, %v2501
    %v2503 = vpop.f32.mrf.mxu0
    %v2504 = vadd.f32 0.0, %v2503
    %2505 = vmatmul.bf16.gmra.mxu0 %v1861
    %v2506 = vpop.f32.mrf.mxu0
    %v2507 = vadd.f32 0.0, %v2506
    %v2508 = vpop.f32.mrf.mxu0
    %v2509 = vadd.f32 0.0, %v2508
    %2510 = vmatmul.bf16.gmra.mxu0 %v1863
    %v2511 = vpop.f32.mrf.mxu0
    %v2512 = vadd.f32 0.0, %v2511
    %v2513 = vpop.f32.mrf.mxu0
    %v2514 = vadd.f32 0.0, %v2513
    %2515 = vmatmul.bf16.gmra.mxu0 %v1865
    %v2516 = vpop.f32.mrf.mxu0
    %v2517 = vadd.f32 0.0, %v2516
    %v2518 = vpop.f32.mrf.mxu0
    %v2519 = vadd.f32 0.0, %v2518
    %2520 = vmatmul.bf16.gmra.mxu0 %v1867
    %v2521 = vpop.f32.mrf.mxu0
    %v2522 = vadd.f32 0.0, %v2521
    %v2523 = vpop.f32.mrf.mxu0
    %v2524 = vadd.f32 0.0, %v2523
    %2525 = vmatmul.bf16.gmra.mxu0 %v1869
    %v2526 = vpop.f32.mrf.mxu0
    %v2527 = vadd.f32 0.0, %v2526
    %v2528 = vpop.f32.mrf.mxu0
    %v2529 = vadd.f32 0.0, %v2528
    %2530 = vmatmul.bf16.gmra.mxu0 %v1871
    %v2531 = vpop.f32.mrf.mxu0
    %v2532 = vadd.f32 0.0, %v2531
    %v2533 = vpop.f32.mrf.mxu0
    %v2534 = vadd.f32 0.0, %v2533
    %2535 = vdwg.mxu0
    %2536 = vmatpush.bf16.msra.mxu0 %v2128
    %2537 = vmatpush.bf16.msra.mxu0 %v2124
    %2538 = vmatpush.bf16.msra.mxu0 %v2120
    %2539 = vmatpush.bf16.msra.mxu0 %v2116
    %2540 = vmatpush.bf16.msra.mxu0 %v2112
    %2541 = vmatpush.bf16.msra.mxu0 %v2108
    %2542 = vmatpush.bf16.msra.mxu0 %v2104
    %2543 = vmatpush.bf16.msra.mxu0 %v2100
    %2544 = vmatmul.bf16.gmra.mxu0 %v1858
    %v2545 = vpop.f32.mrf.mxu0
    %v2546 = vadd.f32 %v2497, %v2545
    %v2547 = vpop.f32.mrf.mxu0
    %v2548 = vadd.f32 %v2499, %v2547
    %2549 = vmatmul.bf16.gmra.mxu0 %v1860
    %v2550 = vpop.f32.mrf.mxu0
    %v2551 = vadd.f32 %v2502, %v2550
    %v2552 = vpop.f32.mrf.mxu0
    %v2553 = vadd.f32 %v2504, %v2552
    %2554 = vmatmul.bf16.gmra.mxu0 %v1862
    %v2555 = vpop.f32.mrf.mxu0
    %v2556 = vadd.f32 %v2507, %v2555
    %v2557 = vpop.f32.mrf.mxu0
    %v2558 = vadd.f32 %v2509, %v2557
    %2559 = vmatmul.bf16.gmra.mxu0 %v1864
    %v2560 = vpop.f32.mrf.mxu0
    %v2561 = vadd.f32 %v2512, %v2560
    %v2562 = vpop.f32.mrf.mxu0
    %v2563 = vadd.f32 %v2514, %v2562
    %2564 = vmatmul.bf16.gmra.mxu0 %v1866
    %v2565 = vpop.f32.mrf.mxu0
    %v2566 = vadd.f32 %v2517, %v2565
    %v2567 = vpop.f32.mrf.mxu0
    %v2568 = vadd.f32 %v2519, %v2567
    %2569 = vmatmul.bf16.gmra.mxu0 %v1868
    %v2570 = vpop.f32.mrf.mxu0
    %v2571 = vadd.f32 %v2522, %v2570
    %v2572 = vpop.f32.mrf.mxu0
    %v2573 = vadd.f32 %v2524, %v2572
    %2574 = vmatmul.bf16.gmra.mxu0 %v1870
    %v2575 = vpop.f32.mrf.mxu0
    %v2576 = vadd.f32 %v2527, %v2575
    %v2577 = vpop.f32.mrf.mxu0
    %v2578 = vadd.f32 %v2529, %v2577
    %2579 = vmatmul.bf16.gmra.mxu0 %v1872
    %v2580 = vpop.f32.mrf.mxu0
    %v2581 = vadd.f32 %v2532, %v2580
    %v2582 = vpop.f32.mrf.mxu0
    %v2583 = vadd.f32 %v2534, %v2582
    %2584 = vdwg.mxu0
    %v2586 = vperm.slane %v1855, 0
    %v2587 = vperm.slane %v1855, 1
    %v2588 = vperm.slane %v1855, 2
    %v2589 = vperm.slane %v1855, 3
    %v2594 = vmul.f32 %v2252, %v2586
    %v2595 = vmul.f32 %v2350, %v2587
    %v2596 = vmul.f32 %v2448, %v2588
    %v2597 = vmul.f32 %v2546, %v2589
    %v2598 = vmul.f32 %v2254, %v2586
    %v2599 = vmul.f32 %v2352, %v2587
    %v2600 = vmul.f32 %v2450, %v2588
    %v2601 = vmul.f32 %v2548, %v2589
    %v2602 = vmul.f32 %v2257, %v2586
    %v2603 = vmul.f32 %v2355, %v2587
    %v2604 = vmul.f32 %v2453, %v2588
    %v2605 = vmul.f32 %v2551, %v2589
    %v2606 = vmul.f32 %v2259, %v2586
    %v2607 = vmul.f32 %v2357, %v2587
    %v2608 = vmul.f32 %v2455, %v2588
    %v2609 = vmul.f32 %v2553, %v2589
    %v2610 = vmul.f32 %v2262, %v2586
    %v2611 = vmul.f32 %v2360, %v2587
    %v2612 = vmul.f32 %v2458, %v2588
    %v2613 = vmul.f32 %v2556, %v2589
    %v2614 = vmul.f32 %v2264, %v2586
    %v2615 = vmul.f32 %v2362, %v2587
    %v2616 = vmul.f32 %v2460, %v2588
    %v2617 = vmul.f32 %v2558, %v2589
    %v2618 = vmul.f32 %v2267, %v2586
    %v2619 = vmul.f32 %v2365, %v2587
    %v2620 = vmul.f32 %v2463, %v2588
    %v2621 = vmul.f32 %v2561, %v2589
    %v2622 = vmul.f32 %v2269, %v2586
    %v2623 = vmul.f32 %v2367, %v2587
    %v2624 = vmul.f32 %v2465, %v2588
    %v2625 = vmul.f32 %v2563, %v2589
    %v2626 = vmul.f32 %v2272, %v2586
    %v2627 = vmul.f32 %v2370, %v2587
    %v2628 = vmul.f32 %v2468, %v2588
    %v2629 = vmul.f32 %v2566, %v2589
    %v2630 = vmul.f32 %v2274, %v2586
    %v2631 = vmul.f32 %v2372, %v2587
    %v2632 = vmul.f32 %v2470, %v2588
    %v2633 = vmul.f32 %v2568, %v2589
    %v2634 = vmul.f32 %v2277, %v2586
    %v2635 = vmul.f32 %v2375, %v2587
    %v2636 = vmul.f32 %v2473, %v2588
    %v2637 = vmul.f32 %v2571, %v2589
    %v2638 = vmul.f32 %v2279, %v2586
    %v2639 = vmul.f32 %v2377, %v2587
    %v2640 = vmul.f32 %v2475, %v2588
    %v2641 = vmul.f32 %v2573, %v2589
    %v2642 = vmul.f32 %v2282, %v2586
    %v2643 = vmul.f32 %v2380, %v2587
    %v2644 = vmul.f32 %v2478, %v2588
    %v2645 = vmul.f32 %v2576, %v2589
    %v2646 = vmul.f32 %v2284, %v2586
    %v2647 = vmul.f32 %v2382, %v2587
    %v2648 = vmul.f32 %v2480, %v2588
    %v2649 = vmul.f32 %v2578, %v2589
    %v2650 = vmul.f32 %v2287, %v2586
    %v2651 = vmul.f32 %v2385, %v2587
    %v2652 = vmul.f32 %v2483, %v2588
    %v2653 = vmul.f32 %v2581, %v2589
    %v2654 = vmul.f32 %v2289, %v2586
    %v2655 = vmul.f32 %v2387, %v2587
    %v2656 = vmul.f32 %v2485, %v2588
    %v2657 = vmul.f32 %v2583, %v2589
    %v2659 = vperm.slane %v1856, 0
    %v2660 = vperm.slane %v1856, 1
    %v2661 = vperm.slane %v1856, 2
    %v2662 = vperm.slane %v1856, 3
    %v2667 = vadd.f32 %v2594, %v2659
    %v2668 = vadd.f32 %v2595, %v2660
    %v2669 = vadd.f32 %v2596, %v2661
    %v2670 = vadd.f32 %v2597, %v2662
    %v2671 = vadd.f32 %v2598, %v2659
    %v2672 = vadd.f32 %v2599, %v2660
    %v2673 = vadd.f32 %v2600, %v2661
    %v2674 = vadd.f32 %v2601, %v2662
    %v2675 = vadd.f32 %v2602, %v2659
    %v2676 = vadd.f32 %v2603, %v2660
    %v2677 = vadd.f32 %v2604, %v2661
    %v2678 = vadd.f32 %v2605, %v2662
    %v2679 = vadd.f32 %v2606, %v2659
    %v2680 = vadd.f32 %v2607, %v2660
    %v2681 = vadd.f32 %v2608, %v2661
    %v2682 = vadd.f32 %v2609, %v2662
    %v2683 = vadd.f32 %v2610, %v2659
    %v2684 = vadd.f32 %v2611, %v2660
    %v2685 = vadd.f32 %v2612, %v2661
    %v2686 = vadd.f32 %v2613, %v2662
    %v2687 = vadd.f32 %v2614, %v2659
    %v2688 = vadd.f32 %v2615, %v2660
    %v2689 = vadd.f32 %v2616, %v2661
    %v2690 = vadd.f32 %v2617, %v2662
    %v2691 = vadd.f32 %v2618, %v2659
    %v2692 = vadd.f32 %v2619, %v2660
    %v2693 = vadd.f32 %v2620, %v2661
    %v2694 = vadd.f32 %v2621, %v2662
    %v2695 = vadd.f32 %v2622, %v2659
    %v2696 = vadd.f32 %v2623, %v2660
    %v2697 = vadd.f32 %v2624, %v2661
    %v2698 = vadd.f32 %v2625, %v2662
    %v2699 = vadd.f32 %v2626, %v2659
    %v2700 = vadd.f32 %v2627, %v2660
    %v2701 = vadd.f32 %v2628, %v2661
    %v2702 = vadd.f32 %v2629, %v2662
    %v2703 = vadd.f32 %v2630, %v2659
    %v2704 = vadd.f32 %v2631, %v2660
    %v2705 = vadd.f32 %v2632, %v2661
    %v2706 = vadd.f32 %v2633, %v2662
    %v2707 = vadd.f32 %v2634, %v2659
    %v2708 = vadd.f32 %v2635, %v2660
    %v2709 = vadd.f32 %v2636, %v2661
    %v2710 = vadd.f32 %v2637, %v2662
    %v2711 = vadd.f32 %v2638, %v2659
    %v2712 = vadd.f32 %v2639, %v2660
    %v2713 = vadd.f32 %v2640, %v2661
    %v2714 = vadd.f32 %v2641, %v2662
    %v2715 = vadd.f32 %v2642, %v2659
    %v2716 = vadd.f32 %v2643, %v2660
    %v2717 = vadd.f32 %v2644, %v2661
    %v2718 = vadd.f32 %v2645, %v2662
    %v2719 = vadd.f32 %v2646, %v2659
    %v2720 = vadd.f32 %v2647, %v2660
    %v2721 = vadd.f32 %v2648, %v2661
    %v2722 = vadd.f32 %v2649, %v2662
    %v2723 = vadd.f32 %v2650, %v2659
    %v2724 = vadd.f32 %v2651, %v2660
    %v2725 = vadd.f32 %v2652, %v2661
    %v2726 = vadd.f32 %v2653, %v2662
    %v2727 = vadd.f32 %v2654, %v2659
    %v2728 = vadd.f32 %v2655, %v2660
    %v2729 = vadd.f32 %v2656, %v2661
    %v2730 = vadd.f32 %v2657, %v2662
    %v2731 = vmax.f32 %v2667, 0.0
    %v2732 = vmax.f32 %v2668, 0.0
    %v2733 = vmax.f32 %v2669, 0.0
    %v2734 = vmax.f32 %v2670, 0.0
    %v2735 = vmax.f32 %v2671, 0.0
    %v2736 = vmax.f32 %v2672, 0.0
    %v2737 = vmax.f32 %v2673, 0.0
    %v2738 = vmax.f32 %v2674, 0.0
    %v2739 = vmax.f32 %v2675, 0.0
    %v2740 = vmax.f32 %v2676, 0.0
    %v2741 = vmax.f32 %v2677, 0.0
    %v2742 = vmax.f32 %v2678, 0.0
    %v2743 = vmax.f32 %v2679, 0.0
    %v2744 = vmax.f32 %v2680, 0.0
    %v2745 = vmax.f32 %v2681, 0.0
    %v2746 = vmax.f32 %v2682, 0.0
    %v2747 = vmax.f32 %v2683, 0.0
    %v2748 = vmax.f32 %v2684, 0.0
    %v2749 = vmax.f32 %v2685, 0.0
    %v2750 = vmax.f32 %v2686, 0.0
    %v2751 = vmax.f32 %v2687, 0.0
    %v2752 = vmax.f32 %v2688, 0.0
    %v2753 = vmax.f32 %v2689, 0.0
    %v2754 = vmax.f32 %v2690, 0.0
    %v2755 = vmax.f32 %v2691, 0.0
    %v2756 = vmax.f32 %v2692, 0.0
    %v2757 = vmax.f32 %v2693, 0.0
    %v2758 = vmax.f32 %v2694, 0.0
    %v2759 = vmax.f32 %v2695, 0.0
    %v2760 = vmax.f32 %v2696, 0.0
    %v2761 = vmax.f32 %v2697, 0.0
    %v2762 = vmax.f32 %v2698, 0.0
    %v2763 = vmax.f32 %v2699, 0.0
    %v2764 = vmax.f32 %v2700, 0.0
    %v2765 = vmax.f32 %v2701, 0.0
    %v2766 = vmax.f32 %v2702, 0.0
    %v2767 = vmax.f32 %v2703, 0.0
    %v2768 = vmax.f32 %v2704, 0.0
    %v2769 = vmax.f32 %v2705, 0.0
    %v2770 = vmax.f32 %v2706, 0.0
    %v2771 = vmax.f32 %v2707, 0.0
    %v2772 = vmax.f32 %v2708, 0.0
    %v2773 = vmax.f32 %v2709, 0.0
    %v2774 = vmax.f32 %v2710, 0.0
    %v2775 = vmax.f32 %v2711, 0.0
    %v2776 = vmax.f32 %v2712, 0.0
    %v2777 = vmax.f32 %v2713, 0.0
    %v2778 = vmax.f32 %v2714, 0.0
    %v2779 = vmax.f32 %v2715, 0.0
    %v2780 = vmax.f32 %v2716, 0.0
    %v2781 = vmax.f32 %v2717, 0.0
    %v2782 = vmax.f32 %v2718, 0.0
    %v2783 = vmax.f32 %v2719, 0.0
    %v2784 = vmax.f32 %v2720, 0.0
    %v2785 = vmax.f32 %v2721, 0.0
    %v2786 = vmax.f32 %v2722, 0.0
    %v2787 = vmax.f32 %v2723, 0.0
    %v2788 = vmax.f32 %v2724, 0.0
    %v2789 = vmax.f32 %v2725, 0.0
    %v2790 = vmax.f32 %v2726, 0.0
    %v2791 = vmax.f32 %v2727, 0.0
    %v2792 = vmax.f32 %v2728, 0.0
    %v2793 = vmax.f32 %v2729, 0.0
    %v2794 = vmax.f32 %v2730, 0.0
    %v2795 = vld [vmem:[#allocation28] sm:$0xf]
    %v2796 = vld [vmem:[#allocation28 + $0x4] sm:$0xf]
    %v2797 = vld [vmem:[#allocation28 + $0x8] sm:$0xf]
    %v2798 = vld [vmem:[#allocation28 + $0xc] sm:$0xf]
    %v2799 = vld [vmem:[#allocation28 + $0x10] sm:$0xf]
    %v2800 = vld [vmem:[#allocation28 + $0x14] sm:$0xf]
    %v2801 = vld [vmem:[#allocation28 + $0x18] sm:$0xf]
    %v2802 = vld [vmem:[#allocation28 + $0x1c] sm:$0xf]
    %v2803 = vld [vmem:[#allocation28 + $0x20] sm:$0xf]
    %v2804 = vld [vmem:[#allocation28 + $0x24] sm:$0xf]
    %v2805 = vld [vmem:[#allocation28 + $0x28] sm:$0xf]
    %v2806 = vld [vmem:[#allocation28 + $0x2c] sm:$0xf]
    %v2807 = vld [vmem:[#allocation28 + $0x30] sm:$0xf]
    %v2808 = vld [vmem:[#allocation28 + $0x34] sm:$0xf]
    %v2809 = vld [vmem:[#allocation28 + $0x38] sm:$0xf]
    %v2810 = vld [vmem:[#allocation28 + $0x3c] sm:$0xf]
    %v2811 = vld [vmem:[#allocation28 + $0x40] sm:$0xf]
    %v2812 = vld [vmem:[#allocation28 + $0x44] sm:$0xf]
    %v2813 = vld [vmem:[#allocation28 + $0x48] sm:$0xf]
    %v2814 = vld [vmem:[#allocation28 + $0x4c] sm:$0xf]
    %v2815 = vld [vmem:[#allocation28 + $0x50] sm:$0xf]
    %v2816 = vld [vmem:[#allocation28 + $0x54] sm:$0xf]
    %v2817 = vld [vmem:[#allocation28 + $0x58] sm:$0xf]
    %v2818 = vld [vmem:[#allocation28 + $0x5c] sm:$0xf]
    %v2819 = vld [vmem:[#allocation28 + $0x60] sm:$0xf]
    %v2820 = vld [vmem:[#allocation28 + $0x64] sm:$0xf]
    %v2821 = vld [vmem:[#allocation28 + $0x68] sm:$0xf]
    %v2822 = vld [vmem:[#allocation28 + $0x6c] sm:$0xf]
    %v2823 = vld [vmem:[#allocation28 + $0x70] sm:$0xf]
    %v2824 = vld [vmem:[#allocation28 + $0x74] sm:$0xf]
    %v2825 = vld [vmem:[#allocation28 + $0x78] sm:$0xf]
    %v2826 = vld [vmem:[#allocation28 + $0x7c] sm:$0xf]
    %v2827 = vld [vmem:[#allocation28 + $0x80] sm:$0xf]
    %v2828 = vld [vmem:[#allocation28 + $0x84] sm:$0xf]
    %v2829 = vld [vmem:[#allocation28 + $0x88] sm:$0xf]
    %v2830 = vld [vmem:[#allocation28 + $0x8c] sm:$0xf]
    %v2831 = vld [vmem:[#allocation28 + $0x90] sm:$0xf]
    %v2832 = vld [vmem:[#allocation28 + $0x94] sm:$0xf]
    %v2833 = vld [vmem:[#allocation28 + $0x98] sm:$0xf]
    %v2834 = vld [vmem:[#allocation28 + $0x9c] sm:$0xf]
    %v2835 = vld [vmem:[#allocation28 + $0xa0] sm:$0xf]
    %v2836 = vld [vmem:[#allocation28 + $0xa4] sm:$0xf]
    %v2837 = vld [vmem:[#allocation28 + $0xa8] sm:$0xf]
    %v2838 = vld [vmem:[#allocation28 + $0xac] sm:$0xf]
    %v2839 = vld [vmem:[#allocation28 + $0xb0] sm:$0xf]
    %v2840 = vld [vmem:[#allocation28 + $0xb4] sm:$0xf]
    %v2841 = vld [vmem:[#allocation28 + $0xb8] sm:$0xf]
    %v2842 = vld [vmem:[#allocation28 + $0xbc] sm:$0xf]
    %v2843 = vld [vmem:[#allocation28 + $0xc0] sm:$0xf]
    %v2844 = vld [vmem:[#allocation28 + $0xc4] sm:$0xf]
    %v2845 = vld [vmem:[#allocation28 + $0xc8] sm:$0xf]
    %v2846 = vld [vmem:[#allocation28 + $0xcc] sm:$0xf]
    %v2847 = vld [vmem:[#allocation28 + $0xd0] sm:$0xf]
    %v2848 = vld [vmem:[#allocation28 + $0xd4] sm:$0xf]
    %v2849 = vld [vmem:[#allocation28 + $0xd8] sm:$0xf]
    %v2850 = vld [vmem:[#allocation28 + $0xdc] sm:$0xf]
    %v2851 = vld [vmem:[#allocation28 + $0xe0] sm:$0xf]
    %v2852 = vld [vmem:[#allocation28 + $0xe4] sm:$0xf]
    %v2853 = vld [vmem:[#allocation28 + $0xe8] sm:$0xf]
    %v2854 = vld [vmem:[#allocation28 + $0xec] sm:$0xf]
    %v2855 = vld [vmem:[#allocation28 + $0xf0] sm:$0xf]
    %v2856 = vld [vmem:[#allocation28 + $0xf4] sm:$0xf]
    %v2857 = vld [vmem:[#allocation28 + $0xf8] sm:$0xf]
    %v2858 = vld [vmem:[#allocation28 + $0xfc] sm:$0xf]
    %v2859 = vld [vmem:[%s23] sm:$0x1]
    %v2860 = vpack.c.bf16 %v2735, %v2731
    %v2861 = vpack.c.bf16 %v2736, %v2732
    %v2862 = vpack.c.bf16 %v2737, %v2733
    %v2863 = vpack.c.bf16 %v2738, %v2734
    %v2864 = vpack.c.bf16 %v2743, %v2739
    %v2865 = vpack.c.bf16 %v2744, %v2740
    %v2866 = vpack.c.bf16 %v2745, %v2741
    %v2867 = vpack.c.bf16 %v2746, %v2742
    %v2868 = vpack.c.bf16 %v2751, %v2747
    %v2869 = vpack.c.bf16 %v2752, %v2748
    %v2870 = vpack.c.bf16 %v2753, %v2749
    %v2871 = vpack.c.bf16 %v2754, %v2750
    %v2872 = vpack.c.bf16 %v2759, %v2755
    %v2873 = vpack.c.bf16 %v2760, %v2756
    %v2874 = vpack.c.bf16 %v2761, %v2757
    %v2875 = vpack.c.bf16 %v2762, %v2758
    %v2876 = vpack.c.bf16 %v2767, %v2763
    %v2877 = vpack.c.bf16 %v2768, %v2764
    %v2878 = vpack.c.bf16 %v2769, %v2765
    %v2879 = vpack.c.bf16 %v2770, %v2766
    %v2880 = vpack.c.bf16 %v2775, %v2771
    %v2881 = vpack.c.bf16 %v2776, %v2772
    %v2882 = vpack.c.bf16 %v2777, %v2773
    %v2883 = vpack.c.bf16 %v2778, %v2774
    %v2884 = vpack.c.bf16 %v2783, %v2779
    %v2885 = vpack.c.bf16 %v2784, %v2780
    %v2886 = vpack.c.bf16 %v2785, %v2781
    %v2887 = vpack.c.bf16 %v2786, %v2782
    %v2888 = vpack.c.bf16 %v2791, %v2787
    %v2889 = vpack.c.bf16 %v2792, %v2788
    %v2890 = vpack.c.bf16 %v2793, %v2789
    %v2891 = vpack.c.bf16 %v2794, %v2790
    %v2893 = vperm.slane %v2859, 0
    %v2959 = vunpack.c.l.b16 %v2795
    %v2960 = vunpack.c.l.b16 %v2796
    %v2961 = vunpack.c.l.b16 %v2797
    %v2962 = vunpack.c.l.b16 %v2798
    %v2963 = vunpack.c.l.b16 %v2799
    %v2964 = vunpack.c.l.b16 %v2800
    %v2965 = vunpack.c.l.b16 %v2801
    %v2966 = vunpack.c.l.b16 %v2802
    %v2967 = vunpack.c.l.b16 %v2803
    %v2968 = vunpack.c.l.b16 %v2804
    %v2969 = vunpack.c.l.b16 %v2805
    %v2970 = vunpack.c.l.b16 %v2806
    %v2971 = vunpack.c.l.b16 %v2807
    %v2972 = vunpack.c.l.b16 %v2808
    %v2973 = vunpack.c.l.b16 %v2809
    %v2974 = vunpack.c.l.b16 %v2810
    %v2975 = vunpack.c.l.b16 %v2811
    %v2976 = vunpack.c.l.b16 %v2812
    %v2977 = vunpack.c.l.b16 %v2813
    %v2978 = vunpack.c.l.b16 %v2814
    %v2979 = vunpack.c.l.b16 %v2815
    %v2980 = vunpack.c.l.b16 %v2816
    %v2981 = vunpack.c.l.b16 %v2817
    %v2982 = vunpack.c.l.b16 %v2818
    %v2983 = vunpack.c.l.b16 %v2819
    %v2984 = vunpack.c.l.b16 %v2820
    %v2985 = vunpack.c.l.b16 %v2821
    %v2986 = vunpack.c.l.b16 %v2822
    %v2987 = vunpack.c.l.b16 %v2823
    %v2988 = vunpack.c.l.b16 %v2824
    %v2989 = vunpack.c.l.b16 %v2825
    %v2990 = vunpack.c.l.b16 %v2826
    %v2991 = vunpack.c.l.b16 %v2827
    %v2992 = vunpack.c.l.b16 %v2828
    %v2993 = vunpack.c.l.b16 %v2829
    %v2994 = vunpack.c.l.b16 %v2830
    %v2995 = vunpack.c.l.b16 %v2831
    %v2996 = vunpack.c.l.b16 %v2832
    %v2997 = vunpack.c.l.b16 %v2833
    %v2998 = vunpack.c.l.b16 %v2834
    %v2999 = vunpack.c.l.b16 %v2835
    %v3000 = vunpack.c.l.b16 %v2836
    %v3001 = vunpack.c.l.b16 %v2837
    %v3002 = vunpack.c.l.b16 %v2838
    %v3003 = vunpack.c.l.b16 %v2839
    %v3004 = vunpack.c.l.b16 %v2840
    %v3005 = vunpack.c.l.b16 %v2841
    %v3006 = vunpack.c.l.b16 %v2842
    %v3007 = vunpack.c.l.b16 %v2843
    %v3008 = vunpack.c.l.b16 %v2844
    %v3009 = vunpack.c.l.b16 %v2845
    %v3010 = vunpack.c.l.b16 %v2846
    %v3011 = vunpack.c.l.b16 %v2847
    %v3012 = vunpack.c.l.b16 %v2848
    %v3013 = vunpack.c.l.b16 %v2849
    %v3014 = vunpack.c.l.b16 %v2850
    %v3015 = vunpack.c.l.b16 %v2851
    %v3016 = vunpack.c.l.b16 %v2852
    %v3017 = vunpack.c.l.b16 %v2853
    %v3018 = vunpack.c.l.b16 %v2854
    %v3019 = vunpack.c.l.b16 %v2855
    %v3020 = vunpack.c.l.b16 %v2856
    %v3021 = vunpack.c.l.b16 %v2857
    %v3022 = vunpack.c.l.b16 %v2858
    %v3023 = vpack.c.b16 %v2960, %v2959
    %v3024 = vpack.c.b16 %v2962, %v2961
    %v3025 = vpack.c.b16 %v2964, %v2963
    %v3026 = vpack.c.b16 %v2966, %v2965
    %v3027 = vpack.c.b16 %v2968, %v2967
    %v3028 = vpack.c.b16 %v2970, %v2969
    %v3029 = vpack.c.b16 %v2972, %v2971
    %v3030 = vpack.c.b16 %v2974, %v2973
    %v3031 = vpack.c.b16 %v2976, %v2975
    %v3032 = vpack.c.b16 %v2978, %v2977
    %v3033 = vpack.c.b16 %v2980, %v2979
    %v3034 = vpack.c.b16 %v2982, %v2981
    %v3035 = vpack.c.b16 %v2984, %v2983
    %v3036 = vpack.c.b16 %v2986, %v2985
    %v3037 = vpack.c.b16 %v2988, %v2987
    %v3038 = vpack.c.b16 %v2990, %v2989
    %v3039 = vpack.c.b16 %v2992, %v2991
    %v3040 = vpack.c.b16 %v2994, %v2993
    %v3041 = vpack.c.b16 %v2996, %v2995
    %v3042 = vpack.c.b16 %v2998, %v2997
    %v3043 = vpack.c.b16 %v3000, %v2999
    %v3044 = vpack.c.b16 %v3002, %v3001
    %v3045 = vpack.c.b16 %v3004, %v3003
    %v3046 = vpack.c.b16 %v3006, %v3005
    %v3047 = vpack.c.b16 %v3008, %v3007
    %v3048 = vpack.c.b16 %v3010, %v3009
    %v3049 = vpack.c.b16 %v3012, %v3011
    %v3050 = vpack.c.b16 %v3014, %v3013
    %v3051 = vpack.c.b16 %v3016, %v3015
    %v3052 = vpack.c.b16 %v3018, %v3017
    %v3053 = vpack.c.b16 %v3020, %v3019
    %v3054 = vpack.c.b16 %v3022, %v3021
    %3087 = vmatpush.bf16.msra.mxu0 %v3030
    %3088 = vmatpush.bf16.msra.mxu0 %v3029
    %3089 = vmatpush.bf16.msra.mxu0 %v3028
    %3090 = vmatpush.bf16.msra.mxu0 %v3027
    %3091 = vmatpush.bf16.msra.mxu0 %v3026
    %3092 = vmatpush.bf16.msra.mxu0 %v3025
    %3093 = vmatpush.bf16.msra.mxu0 %v3024
    %3094 = vmatpush.bf16.msra.mxu0 %v3023
    %3095 = vmatmul.bf16.gmra.mxu0 %v2860
    %v3096 = vpop.f32.mrf.mxu0
    %v3097 = vadd.f32 %v2893, %v3096
    %v3098 = vpop.f32.mrf.mxu0
    %v3099 = vadd.f32 %v2893, %v3098
    %3100 = vmatmul.bf16.gmra.mxu0 %v2864
    %v3101 = vpop.f32.mrf.mxu0
    %v3102 = vadd.f32 %v2893, %v3101
    %v3103 = vpop.f32.mrf.mxu0
    %v3104 = vadd.f32 %v2893, %v3103
    %3105 = vmatmul.bf16.gmra.mxu0 %v2868
    %v3106 = vpop.f32.mrf.mxu0
    %v3107 = vadd.f32 %v2893, %v3106
    %v3108 = vpop.f32.mrf.mxu0
    %v3109 = vadd.f32 %v2893, %v3108
    %3110 = vmatmul.bf16.gmra.mxu0 %v2872
    %v3111 = vpop.f32.mrf.mxu0
    %v3112 = vadd.f32 %v2893, %v3111
    %v3113 = vpop.f32.mrf.mxu0
    %v3114 = vadd.f32 %v2893, %v3113
    %3115 = vmatmul.bf16.gmra.mxu0 %v2876
    %v3116 = vpop.f32.mrf.mxu0
    %v3117 = vadd.f32 %v2893, %v3116
    %v3118 = vpop.f32.mrf.mxu0
    %v3119 = vadd.f32 %v2893, %v3118
    %3120 = vmatmul.bf16.gmra.mxu0 %v2880
    %v3121 = vpop.f32.mrf.mxu0
    %v3122 = vadd.f32 %v2893, %v3121
    %v3123 = vpop.f32.mrf.mxu0
    %v3124 = vadd.f32 %v2893, %v3123
    %3125 = vmatmul.bf16.gmra.mxu0 %v2884
    %v3126 = vpop.f32.mrf.mxu0
    %v3127 = vadd.f32 %v2893, %v3126
    %v3128 = vpop.f32.mrf.mxu0
    %v3129 = vadd.f32 %v2893, %v3128
    %3130 = vmatmul.bf16.gmra.mxu0 %v2888
    %v3131 = vpop.f32.mrf.mxu0
    %v3132 = vadd.f32 %v2893, %v3131
    %v3133 = vpop.f32.mrf.mxu0
    %v3134 = vadd.f32 %v2893, %v3133
    %3135 = vdwg.mxu0
    %3136 = vmatpush.bf16.msra.mxu0 %v3038
    %3137 = vmatpush.bf16.msra.mxu0 %v3037
    %3138 = vmatpush.bf16.msra.mxu0 %v3036
    %3139 = vmatpush.bf16.msra.mxu0 %v3035
    %3140 = vmatpush.bf16.msra.mxu0 %v3034
    %3141 = vmatpush.bf16.msra.mxu0 %v3033
    %3142 = vmatpush.bf16.msra.mxu0 %v3032
    %3143 = vmatpush.bf16.msra.mxu0 %v3031
    %3144 = vmatmul.bf16.gmra.mxu0 %v2861
    %v3145 = vpop.f32.mrf.mxu0
    %v3146 = vadd.f32 %v3097, %v3145
    %v3147 = vpop.f32.mrf.mxu0
    %v3148 = vadd.f32 %v3099, %v3147
    %3149 = vmatmul.bf16.gmra.mxu0 %v2865
    %v3150 = vpop.f32.mrf.mxu0
    %v3151 = vadd.f32 %v3102, %v3150
    %v3152 = vpop.f32.mrf.mxu0
    %v3153 = vadd.f32 %v3104, %v3152
    %3154 = vmatmul.bf16.gmra.mxu0 %v2869
    %v3155 = vpop.f32.mrf.mxu0
    %v3156 = vadd.f32 %v3107, %v3155
    %v3157 = vpop.f32.mrf.mxu0
    %v3158 = vadd.f32 %v3109, %v3157
    %3159 = vmatmul.bf16.gmra.mxu0 %v2873
    %v3160 = vpop.f32.mrf.mxu0
    %v3161 = vadd.f32 %v3112, %v3160
    %v3162 = vpop.f32.mrf.mxu0
    %v3163 = vadd.f32 %v3114, %v3162
    %3164 = vmatmul.bf16.gmra.mxu0 %v2877
    %v3165 = vpop.f32.mrf.mxu0
    %v3166 = vadd.f32 %v3117, %v3165
    %v3167 = vpop.f32.mrf.mxu0
    %v3168 = vadd.f32 %v3119, %v3167
    %3169 = vmatmul.bf16.gmra.mxu0 %v2881
    %v3170 = vpop.f32.mrf.mxu0
    %v3171 = vadd.f32 %v3122, %v3170
    %v3172 = vpop.f32.mrf.mxu0
    %v3173 = vadd.f32 %v3124, %v3172
    %3174 = vmatmul.bf16.gmra.mxu0 %v2885
    %v3175 = vpop.f32.mrf.mxu0
    %v3176 = vadd.f32 %v3127, %v3175
    %v3177 = vpop.f32.mrf.mxu0
    %v3178 = vadd.f32 %v3129, %v3177
    %3179 = vmatmul.bf16.gmra.mxu0 %v2889
    %v3180 = vpop.f32.mrf.mxu0
    %v3181 = vadd.f32 %v3132, %v3180
    %v3182 = vpop.f32.mrf.mxu0
    %v3183 = vadd.f32 %v3134, %v3182
    %3184 = vdwg.mxu0
    %3185 = vmatpush.bf16.msra.mxu0 %v3046
    %3186 = vmatpush.bf16.msra.mxu0 %v3045
    %3187 = vmatpush.bf16.msra.mxu0 %v3044
    %3188 = vmatpush.bf16.msra.mxu0 %v3043
    %3189 = vmatpush.bf16.msra.mxu0 %v3042
    %3190 = vmatpush.bf16.msra.mxu0 %v3041
    %3191 = vmatpush.bf16.msra.mxu0 %v3040
    %3192 = vmatpush.bf16.msra.mxu0 %v3039
    %3193 = vmatmul.bf16.gmra.mxu0 %v2862
    %v3194 = vpop.f32.mrf.mxu0
    %v3195 = vadd.f32 %v3146, %v3194
    %v3196 = vpop.f32.mrf.mxu0
    %v3197 = vadd.f32 %v3148, %v3196
    %3198 = vmatmul.bf16.gmra.mxu0 %v2866
    %v3199 = vpop.f32.mrf.mxu0
    %v3200 = vadd.f32 %v3151, %v3199
    %v3201 = vpop.f32.mrf.mxu0
    %v3202 = vadd.f32 %v3153, %v3201
    %3203 = vmatmul.bf16.gmra.mxu0 %v2870
    %v3204 = vpop.f32.mrf.mxu0
    %v3205 = vadd.f32 %v3156, %v3204
    %v3206 = vpop.f32.mrf.mxu0
    %v3207 = vadd.f32 %v3158, %v3206
    %3208 = vmatmul.bf16.gmra.mxu0 %v2874
    %v3209 = vpop.f32.mrf.mxu0
    %v3210 = vadd.f32 %v3161, %v3209
    %v3211 = vpop.f32.mrf.mxu0
    %v3212 = vadd.f32 %v3163, %v3211
    %3213 = vmatmul.bf16.gmra.mxu0 %v2878
    %v3214 = vpop.f32.mrf.mxu0
    %v3215 = vadd.f32 %v3166, %v3214
    %v3216 = vpop.f32.mrf.mxu0
    %v3217 = vadd.f32 %v3168, %v3216
    %3218 = vmatmul.bf16.gmra.mxu0 %v2882
    %v3219 = vpop.f32.mrf.mxu0
    %v3220 = vadd.f32 %v3171, %v3219
    %v3221 = vpop.f32.mrf.mxu0
    %v3222 = vadd.f32 %v3173, %v3221
    %3223 = vmatmul.bf16.gmra.mxu0 %v2886
    %v3224 = vpop.f32.mrf.mxu0
    %v3225 = vadd.f32 %v3176, %v3224
    %v3226 = vpop.f32.mrf.mxu0
    %v3227 = vadd.f32 %v3178, %v3226
    %3228 = vmatmul.bf16.gmra.mxu0 %v2890
    %v3229 = vpop.f32.mrf.mxu0
    %v3230 = vadd.f32 %v3181, %v3229
    %v3231 = vpop.f32.mrf.mxu0
    %v3232 = vadd.f32 %v3183, %v3231
    %3233 = vdwg.mxu0
    %3234 = vmatpush.bf16.msra.mxu0 %v3054
    %3235 = vmatpush.bf16.msra.mxu0 %v3053
    %3236 = vmatpush.bf16.msra.mxu0 %v3052
    %3237 = vmatpush.bf16.msra.mxu0 %v3051
    %3238 = vmatpush.bf16.msra.mxu0 %v3050
    %3239 = vmatpush.bf16.msra.mxu0 %v3049
    %3240 = vmatpush.bf16.msra.mxu0 %v3048
    %3241 = vmatpush.bf16.msra.mxu0 %v3047
    %3242 = vmatmul.bf16.gmra.mxu0 %v2863
    %v3243 = vpop.f32.mrf.mxu0
    %v3244 = vadd.f32 %v3195, %v3243
    %v3245 = vpop.f32.mrf.mxu0
    %v3246 = vadd.f32 %v3197, %v3245
    %3247 = vmatmul.bf16.gmra.mxu0 %v2867
    %v3248 = vpop.f32.mrf.mxu0
    %v3249 = vadd.f32 %v3200, %v3248
    %v3250 = vpop.f32.mrf.mxu0
    %v3251 = vadd.f32 %v3202, %v3250
    %3252 = vmatmul.bf16.gmra.mxu0 %v2871
    %v3253 = vpop.f32.mrf.mxu0
    %v3254 = vadd.f32 %v3205, %v3253
    %v3255 = vpop.f32.mrf.mxu0
    %v3256 = vadd.f32 %v3207, %v3255
    %3257 = vmatmul.bf16.gmra.mxu0 %v2875
    %v3258 = vpop.f32.mrf.mxu0
    %v3259 = vadd.f32 %v3210, %v3258
    %v3260 = vpop.f32.mrf.mxu0
    %v3261 = vadd.f32 %v3212, %v3260
    %3262 = vmatmul.bf16.gmra.mxu0 %v2879
    %v3263 = vpop.f32.mrf.mxu0
    %v3264 = vadd.f32 %v3215, %v3263
    %v3265 = vpop.f32.mrf.mxu0
    %v3266 = vadd.f32 %v3217, %v3265
    %3267 = vmatmul.bf16.gmra.mxu0 %v2883
    %v3268 = vpop.f32.mrf.mxu0
    %v3269 = vadd.f32 %v3220, %v3268
    %v3270 = vpop.f32.mrf.mxu0
    %v3271 = vadd.f32 %v3222, %v3270
    %3272 = vmatmul.bf16.gmra.mxu0 %v2887
    %v3273 = vpop.f32.mrf.mxu0
    %v3274 = vadd.f32 %v3225, %v3273
    %v3275 = vpop.f32.mrf.mxu0
    %v3276 = vadd.f32 %v3227, %v3275
    %3277 = vmatmul.bf16.gmra.mxu0 %v2891
    %v3278 = vpop.f32.mrf.mxu0
    %v3279 = vadd.f32 %v3230, %v3278
    %v3280 = vpop.f32.mrf.mxu0
    %v3281 = vadd.f32 %v3232, %v3280
    %3282 = vdwg.mxu0
    %v3283 = vxor.u32 %v3244, 2147483648
    %v3284 = vxor.u32 %v3246, 2147483648
    %v3285 = vxor.u32 %v3249, 2147483648
    %v3286 = vxor.u32 %v3251, 2147483648
    %v3287 = vxor.u32 %v3254, 2147483648
    %v3288 = vxor.u32 %v3256, 2147483648
    %v3289 = vxor.u32 %v3259, 2147483648
    %v3290 = vxor.u32 %v3261, 2147483648
    %v3291 = vxor.u32 %v3264, 2147483648
    %v3292 = vxor.u32 %v3266, 2147483648
    %v3293 = vxor.u32 %v3269, 2147483648
    %v3294 = vxor.u32 %v3271, 2147483648
    %v3295 = vxor.u32 %v3274, 2147483648
    %v3296 = vxor.u32 %v3276, 2147483648
    %v3297 = vxor.u32 %v3279, 2147483648
    %v3298 = vxor.u32 %v3281, 2147483648
    %v3299 = vmul.f32 %v3283, 1.442695
    %v3300 = vpow.pop %v3299
    %v3301 = vmul.f32 %v3284, 1.442695
    %v3302 = vpow.pop %v3301
    %v3303 = vmul.f32 %v3285, 1.442695
    %v3304 = vpow.pop %v3303
    %v3305 = vmul.f32 %v3286, 1.442695
    %v3306 = vpow.pop %v3305
    %v3307 = vmul.f32 %v3287, 1.442695
    %v3308 = vpow.pop %v3307
    %v3309 = vmul.f32 %v3288, 1.442695
    %v3310 = vpow.pop %v3309
    %v3311 = vmul.f32 %v3289, 1.442695
    %v3312 = vpow.pop %v3311
    %v3313 = vmul.f32 %v3290, 1.442695
    %v3314 = vpow.pop %v3313
    %v3315 = vmul.f32 %v3291, 1.442695
    %v3316 = vpow.pop %v3315
    %v3317 = vmul.f32 %v3292, 1.442695
    %v3318 = vpow.pop %v3317
    %v3319 = vmul.f32 %v3293, 1.442695
    %v3320 = vpow.pop %v3319
    %v3321 = vmul.f32 %v3294, 1.442695
    %v3322 = vpow.pop %v3321
    %v3323 = vmul.f32 %v3295, 1.442695
    %v3324 = vpow.pop %v3323
    %v3325 = vmul.f32 %v3296, 1.442695
    %v3326 = vpow.pop %v3325
    %v3327 = vmul.f32 %v3297, 1.442695
    %v3328 = vpow.pop %v3327
    %v3329 = vmul.f32 %v3298, 1.442695
    %v3330 = vpow.pop %v3329
    %v3331 = vadd.f32 %v3300, 1.0
    %v3332 = vadd.f32 %v3302, 1.0
    %v3333 = vadd.f32 %v3304, 1.0
    %v3334 = vadd.f32 %v3306, 1.0
    %v3335 = vadd.f32 %v3308, 1.0
    %v3336 = vadd.f32 %v3310, 1.0
    %v3337 = vadd.f32 %v3312, 1.0
    %v3338 = vadd.f32 %v3314, 1.0
    %v3339 = vadd.f32 %v3316, 1.0
    %v3340 = vadd.f32 %v3318, 1.0
    %v3341 = vadd.f32 %v3320, 1.0
    %v3342 = vadd.f32 %v3322, 1.0
    %v3343 = vadd.f32 %v3324, 1.0
    %v3344 = vadd.f32 %v3326, 1.0
    %v3345 = vadd.f32 %v3328, 1.0
    %v3346 = vadd.f32 %v3330, 1.0
    %v3347 = vrcp.pop %v3331
    %v3348 = vmul.f32 %v3331, %v3347
    %v3349 = vsub.f32 1.0, %v3348
    %v3350 = vmul.f32 %v3347, %v3349
    %v3351 = vadd.f32 %v3347, %v3350
    %vm3352 = vweird.f32 %v3331
    %vm3353 = vweird.f32 %v3347
    %vm3354 = vmor %vm3352, %vm3353
    %v3355 = vsel %vm3354, %v3347, %v3351
    %v3356 = vand.u32 2147483647, %v3331
    %vm3357 = vcmp.eq.f32.partialorder %v3356, 8.507059e+37
    %v3358 = vand.u32 %v3331, 2147483648
    %v3359 = vor.u32 1.1754944e-38, %v3358
    %v3360 = vsel %vm3357, %v3359, %v3355
    %v3361 = vmul.f32 1.0, %v3360
    %v3362 = vrcp.pop %v3332
    %v3363 = vmul.f32 %v3332, %v3362
    %v3364 = vsub.f32 1.0, %v3363
    %v3365 = vmul.f32 %v3362, %v3364
    %v3366 = vadd.f32 %v3362, %v3365
    %vm3367 = vweird.f32 %v3332
    %vm3368 = vweird.f32 %v3362
    %vm3369 = vmor %vm3367, %vm3368
    %v3370 = vsel %vm3369, %v3362, %v3366
    %v3371 = vand.u32 2147483647, %v3332
    %vm3372 = vcmp.eq.f32.partialorder %v3371, 8.507059e+37
    %v3373 = vand.u32 %v3332, 2147483648
    %v3374 = vor.u32 1.1754944e-38, %v3373
    %v3375 = vsel %vm3372, %v3374, %v3370
    %v3376 = vmul.f32 1.0, %v3375
    %v3377 = vrcp.pop %v3333
    %v3378 = vmul.f32 %v3333, %v3377
    %v3379 = vsub.f32 1.0, %v3378
    %v3380 = vmul.f32 %v3377, %v3379
    %v3381 = vadd.f32 %v3377, %v3380
    %vm3382 = vweird.f32 %v3333
    %vm3383 = vweird.f32 %v3377
    %vm3384 = vmor %vm3382, %vm3383
    %v3385 = vsel %vm3384, %v3377, %v3381
    %v3386 = vand.u32 2147483647, %v3333
    %vm3387 = vcmp.eq.f32.partialorder %v3386, 8.507059e+37
    %v3388 = vand.u32 %v3333, 2147483648
    %v3389 = vor.u32 1.1754944e-38, %v3388
    %v3390 = vsel %vm3387, %v3389, %v3385
    %v3391 = vmul.f32 1.0, %v3390
    %v3392 = vrcp.pop %v3334
    %v3393 = vmul.f32 %v3334, %v3392
    %v3394 = vsub.f32 1.0, %v3393
    %v3395 = vmul.f32 %v3392, %v3394
    %v3396 = vadd.f32 %v3392, %v3395
    %vm3397 = vweird.f32 %v3334
    %vm3398 = vweird.f32 %v3392
    %vm3399 = vmor %vm3397, %vm3398
    %v3400 = vsel %vm3399, %v3392, %v3396
    %v3401 = vand.u32 2147483647, %v3334
    %vm3402 = vcmp.eq.f32.partialorder %v3401, 8.507059e+37
    %v3403 = vand.u32 %v3334, 2147483648
    %v3404 = vor.u32 1.1754944e-38, %v3403
    %v3405 = vsel %vm3402, %v3404, %v3400
    %v3406 = vmul.f32 1.0, %v3405
    %v3407 = vrcp.pop %v3335
    %v3408 = vmul.f32 %v3335, %v3407
    %v3409 = vsub.f32 1.0, %v3408
    %v3410 = vmul.f32 %v3407, %v3409
    %v3411 = vadd.f32 %v3407, %v3410
    %vm3412 = vweird.f32 %v3335
    %vm3413 = vweird.f32 %v3407
    %vm3414 = vmor %vm3412, %vm3413
    %v3415 = vsel %vm3414, %v3407, %v3411
    %v3416 = vand.u32 2147483647, %v3335
    %vm3417 = vcmp.eq.f32.partialorder %v3416, 8.507059e+37
    %v3418 = vand.u32 %v3335, 2147483648
    %v3419 = vor.u32 1.1754944e-38, %v3418
    %v3420 = vsel %vm3417, %v3419, %v3415
    %v3421 = vmul.f32 1.0, %v3420
    %v3422 = vrcp.pop %v3336
    %v3423 = vmul.f32 %v3336, %v3422
    %v3424 = vsub.f32 1.0, %v3423
    %v3425 = vmul.f32 %v3422, %v3424
    %v3426 = vadd.f32 %v3422, %v3425
    %vm3427 = vweird.f32 %v3336
    %vm3428 = vweird.f32 %v3422
    %vm3429 = vmor %vm3427, %vm3428
    %v3430 = vsel %vm3429, %v3422, %v3426
    %v3431 = vand.u32 2147483647, %v3336
    %vm3432 = vcmp.eq.f32.partialorder %v3431, 8.507059e+37
    %v3433 = vand.u32 %v3336, 2147483648
    %v3434 = vor.u32 1.1754944e-38, %v3433
    %v3435 = vsel %vm3432, %v3434, %v3430
    %v3436 = vmul.f32 1.0, %v3435
    %v3437 = vrcp.pop %v3337
    %v3438 = vmul.f32 %v3337, %v3437
    %v3439 = vsub.f32 1.0, %v3438
    %v3440 = vmul.f32 %v3437, %v3439
    %v3441 = vadd.f32 %v3437, %v3440
    %vm3442 = vweird.f32 %v3337
    %vm3443 = vweird.f32 %v3437
    %vm3444 = vmor %vm3442, %vm3443
    %v3445 = vsel %vm3444, %v3437, %v3441
    %v3446 = vand.u32 2147483647, %v3337
    %vm3447 = vcmp.eq.f32.partialorder %v3446, 8.507059e+37
    %v3448 = vand.u32 %v3337, 2147483648
    %v3449 = vor.u32 1.1754944e-38, %v3448
    %v3450 = vsel %vm3447, %v3449, %v3445
    %v3451 = vmul.f32 1.0, %v3450
    %v3452 = vrcp.pop %v3338
    %v3453 = vmul.f32 %v3338, %v3452
    %v3454 = vsub.f32 1.0, %v3453
    %v3455 = vmul.f32 %v3452, %v3454
    %v3456 = vadd.f32 %v3452, %v3455
    %vm3457 = vweird.f32 %v3338
    %vm3458 = vweird.f32 %v3452
    %vm3459 = vmor %vm3457, %vm3458
    %v3460 = vsel %vm3459, %v3452, %v3456
    %v3461 = vand.u32 2147483647, %v3338
    %vm3462 = vcmp.eq.f32.partialorder %v3461, 8.507059e+37
    %v3463 = vand.u32 %v3338, 2147483648
    %v3464 = vor.u32 1.1754944e-38, %v3463
    %v3465 = vsel %vm3462, %v3464, %v3460
    %v3466 = vmul.f32 1.0, %v3465
    %v3467 = vrcp.pop %v3339
    %v3468 = vmul.f32 %v3339, %v3467
    %v3469 = vsub.f32 1.0, %v3468
    %v3470 = vmul.f32 %v3467, %v3469
    %v3471 = vadd.f32 %v3467, %v3470
    %vm3472 = vweird.f32 %v3339
    %vm3473 = vweird.f32 %v3467
    %vm3474 = vmor %vm3472, %vm3473
    %v3475 = vsel %vm3474, %v3467, %v3471
    %v3476 = vand.u32 2147483647, %v3339
    %vm3477 = vcmp.eq.f32.partialorder %v3476, 8.507059e+37
    %v3478 = vand.u32 %v3339, 2147483648
    %v3479 = vor.u32 1.1754944e-38, %v3478
    %v3480 = vsel %vm3477, %v3479, %v3475
    %v3481 = vmul.f32 1.0, %v3480
    %v3482 = vrcp.pop %v3340
    %v3483 = vmul.f32 %v3340, %v3482
    %v3484 = vsub.f32 1.0, %v3483
    %v3485 = vmul.f32 %v3482, %v3484
    %v3486 = vadd.f32 %v3482, %v3485
    %vm3487 = vweird.f32 %v3340
    %vm3488 = vweird.f32 %v3482
    %vm3489 = vmor %vm3487, %vm3488
    %v3490 = vsel %vm3489, %v3482, %v3486
    %v3491 = vand.u32 2147483647, %v3340
    %vm3492 = vcmp.eq.f32.partialorder %v3491, 8.507059e+37
    %v3493 = vand.u32 %v3340, 2147483648
    %v3494 = vor.u32 1.1754944e-38, %v3493
    %v3495 = vsel %vm3492, %v3494, %v3490
    %v3496 = vmul.f32 1.0, %v3495
    %v3497 = vrcp.pop %v3341
    %v3498 = vmul.f32 %v3341, %v3497
    %v3499 = vsub.f32 1.0, %v3498
    %v3500 = vmul.f32 %v3497, %v3499
    %v3501 = vadd.f32 %v3497, %v3500
    %vm3502 = vweird.f32 %v3341
    %vm3503 = vweird.f32 %v3497
    %vm3504 = vmor %vm3502, %vm3503
    %v3505 = vsel %vm3504, %v3497, %v3501
    %v3506 = vand.u32 2147483647, %v3341
    %vm3507 = vcmp.eq.f32.partialorder %v3506, 8.507059e+37
    %v3508 = vand.u32 %v3341, 2147483648
    %v3509 = vor.u32 1.1754944e-38, %v3508
    %v3510 = vsel %vm3507, %v3509, %v3505
    %v3511 = vmul.f32 1.0, %v3510
    %v3512 = vrcp.pop %v3342
    %v3513 = vmul.f32 %v3342, %v3512
    %v3514 = vsub.f32 1.0, %v3513
    %v3515 = vmul.f32 %v3512, %v3514
    %v3516 = vadd.f32 %v3512, %v3515
    %vm3517 = vweird.f32 %v3342
    %vm3518 = vweird.f32 %v3512
    %vm3519 = vmor %vm3517, %vm3518
    %v3520 = vsel %vm3519, %v3512, %v3516
    %v3521 = vand.u32 2147483647, %v3342
    %vm3522 = vcmp.eq.f32.partialorder %v3521, 8.507059e+37
    %v3523 = vand.u32 %v3342, 2147483648
    %v3524 = vor.u32 1.1754944e-38, %v3523
    %v3525 = vsel %vm3522, %v3524, %v3520
    %v3526 = vmul.f32 1.0, %v3525
    %v3527 = vrcp.pop %v3343
    %v3528 = vmul.f32 %v3343, %v3527
    %v3529 = vsub.f32 1.0, %v3528
    %v3530 = vmul.f32 %v3527, %v3529
    %v3531 = vadd.f32 %v3527, %v3530
    %vm3532 = vweird.f32 %v3343
    %vm3533 = vweird.f32 %v3527
    %vm3534 = vmor %vm3532, %vm3533
    %v3535 = vsel %vm3534, %v3527, %v3531
    %v3536 = vand.u32 2147483647, %v3343
    %vm3537 = vcmp.eq.f32.partialorder %v3536, 8.507059e+37
    %v3538 = vand.u32 %v3343, 2147483648
    %v3539 = vor.u32 1.1754944e-38, %v3538
    %v3540 = vsel %vm3537, %v3539, %v3535
    %v3541 = vmul.f32 1.0, %v3540
    %v3542 = vrcp.pop %v3344
    %v3543 = vmul.f32 %v3344, %v3542
    %v3544 = vsub.f32 1.0, %v3543
    %v3545 = vmul.f32 %v3542, %v3544
    %v3546 = vadd.f32 %v3542, %v3545
    %vm3547 = vweird.f32 %v3344
    %vm3548 = vweird.f32 %v3542
    %vm3549 = vmor %vm3547, %vm3548
    %v3550 = vsel %vm3549, %v3542, %v3546
    %v3551 = vand.u32 2147483647, %v3344
    %vm3552 = vcmp.eq.f32.partialorder %v3551, 8.507059e+37
    %v3553 = vand.u32 %v3344, 2147483648
    %v3554 = vor.u32 1.1754944e-38, %v3553
    %v3555 = vsel %vm3552, %v3554, %v3550
    %v3556 = vmul.f32 1.0, %v3555
    %v3557 = vrcp.pop %v3345
    %v3558 = vmul.f32 %v3345, %v3557
    %v3559 = vsub.f32 1.0, %v3558
    %v3560 = vmul.f32 %v3557, %v3559
    %v3561 = vadd.f32 %v3557, %v3560
    %vm3562 = vweird.f32 %v3345
    %vm3563 = vweird.f32 %v3557
    %vm3564 = vmor %vm3562, %vm3563
    %v3565 = vsel %vm3564, %v3557, %v3561
    %v3566 = vand.u32 2147483647, %v3345
    %vm3567 = vcmp.eq.f32.partialorder %v3566, 8.507059e+37
    %v3568 = vand.u32 %v3345, 2147483648
    %v3569 = vor.u32 1.1754944e-38, %v3568
    %v3570 = vsel %vm3567, %v3569, %v3565
    %v3571 = vmul.f32 1.0, %v3570
    %v3572 = vrcp.pop %v3346
    %v3573 = vmul.f32 %v3346, %v3572
    %v3574 = vsub.f32 1.0, %v3573
    %v3575 = vmul.f32 %v3572, %v3574
    %v3576 = vadd.f32 %v3572, %v3575
    %vm3577 = vweird.f32 %v3346
    %vm3578 = vweird.f32 %v3572
    %vm3579 = vmor %vm3577, %vm3578
    %v3580 = vsel %vm3579, %v3572, %v3576
    %v3581 = vand.u32 2147483647, %v3346
    %vm3582 = vcmp.eq.f32.partialorder %v3581, 8.507059e+37
    %v3583 = vand.u32 %v3346, 2147483648
    %v3584 = vor.u32 1.1754944e-38, %v3583
    %v3585 = vsel %vm3582, %v3584, %v3580
    %v3586 = vmul.f32 1.0, %v3585
    %3587 = vst [vmem:[#allocation29] sm:$0xff] %v3361
    %3588 = vst [vmem:[#allocation29 + $0x8] sm:$0xff] %v3376
    %3589 = vst [vmem:[#allocation29 + $0x10] sm:$0xff] %v3391
    %3590 = vst [vmem:[#allocation29 + $0x18] sm:$0xff] %v3406
    %3591 = vst [vmem:[#allocation29 + $0x20] sm:$0xff] %v3421
    %3592 = vst [vmem:[#allocation29 + $0x28] sm:$0xff] %v3436
    %3593 = vst [vmem:[#allocation29 + $0x30] sm:$0xff] %v3451
    %3594 = vst [vmem:[#allocation29 + $0x38] sm:$0xff] %v3466
    %3595 = vst [vmem:[#allocation29 + $0x40] sm:$0xff] %v3481
    %3596 = vst [vmem:[#allocation29 + $0x48] sm:$0xff] %v3496
    %3597 = vst [vmem:[#allocation29 + $0x50] sm:$0xff] %v3511
    %3598 = vst [vmem:[#allocation29 + $0x58] sm:$0xff] %v3526
    %3599 = vst [vmem:[#allocation29 + $0x60] sm:$0xff] %v3541
    %3600 = vst [vmem:[#allocation29 + $0x68] sm:$0xff] %v3556
    %3601 = vst [vmem:[#allocation29 + $0x70] sm:$0xff] %v3571
    %3602 = vst [vmem:[#allocation29 + $0x78] sm:$0xff] %v3586
    // Predicated region
    $region166: #{tpu_custom_call.1} parent=1 // pred_check
      _
    $region167: #{tpu_custom_call.1} parent=1 // pred_check_branch
      %3604 = sbr.rel (0) target = $region169
    $region168: #{tpu_custom_call.1} parent=1 // pred_region
      %3606 = vsyncadd [#allocation4], 0
      %s3607 = sshll.u32 [#allocation29], 4
      %s3608 = int_to_ptr.vmem [resolvable:$true] %s3607
      %s3609 = sshll.u32 %s24, 4
      %s3610 = int_to_ptr.hbm [resolvable:$true] %s3609
      %3615 = dma.vmem_to_hbm [thread:$0]  %s3608, 2048, %s3610, [#allocation4], 128, 128, 8
    $region169: #{tpu_custom_call.1} parent=1 // pred_fallthru
      _
    // Predicated region
    $region170: #{tpu_custom_call.1} parent=1 // pred_check
      _
    $region171: #{tpu_custom_call.1} parent=1 // pred_check_branch
      %3617 = sbr.rel (0) target = $region173
    $region172: #{tpu_custom_call.1} parent=1 // pred_region
      %3619 = dma.done [#allocation4], 2048
    $region173: #{tpu_custom_call.1} parent=1 // pred_fallthru
      _
    %3620 = vsyncpa [#allocation3], 1
    %3621 = vsyncpa [#allocation6], 1
    %3622 = vsyncpa [#allocation9], 1
    %3623 = vsyncpa [#allocation12], 1
    %3624 = vsyncpa [#allocation15], 1
    %3625 = vsyncpa [#allocation18], 1
    %3626 = vsyncpa [#allocation21], 1
    %3627 = vsyncpa [#allocation24], 1
    %3628 = vsyncpa [#allocation27], 1
    %3629 = vsyncpa [#allocation4], 1

</llo_original>
